<compile_context>
chip_gen: v7x
topology: tpu7x:2x2x1
jax: 0.10.0
libtpu: 0.0.40
codegen_flags: <defaults>
</compile_context>

<pallas_src>
import math
import jax
import jax.numpy as jnp
from jax.experimental import pallas as pl
from jax.experimental.pallas import tpu as pltpu

# ---------------- small hyper-parameters (scaled-down from the original) ----
D_MODEL    = 32
N_HEADS    = 4
D_K = D_V  = 8                      # D_MODEL == N_HEADS * D_K
D_FF       = 4 * D_MODEL
N_LAYERS   = 2
VOCAB_SIZE = 64
VOCAB_PAD  = 128                    # lane-dense (128-wide) logits store
N_PASSEND  = 6
TIME_RANGE = 32
BATCH      = 2
SEQ_LEN    = 8
N_MASKED   = 4
LN_EPS     = 1e-5                   # PyTorch nn.LayerNorm default
NEG_INF    = -1e9

N_LAYER_PARAMS = 12                 # refs per encoder layer


# ---------------- in-kernel helpers ------------------------------------------
def _layer_norm(x, g, b):
    # PyTorch LayerNorm: biased variance, eps=1e-5.  x: (rows, D); g, b: (1, D).
    mu = jnp.mean(x, axis=-1, keepdims=True)
    xc = x - mu
    var = jnp.mean(xc * xc, axis=-1, keepdims=True)
    return xc * jax.lax.rsqrt(var + LN_EPS) * g + b


def _erf(x):
    # TODO(synk): exact lax.erf has no Mosaic lowering; Abramowitz & Stegun
    # 7.1.26 polynomial (max abs error 1.5e-7 == f32 resolution) is used instead.
    ax = jnp.abs(x)
    t = 1.0 / (1.0 + 0.3275911 * ax)
    poly = t * (0.254829592 + t * (-0.284496736 + t * (1.421413741
             + t * (-1.453152027 + t * 1.061405429))))
    y = 1.0 - poly * jnp.exp(-ax * ax)
    return jnp.where(x < 0.0, -y, y)


def _gelu(x):
    return x * 0.5 * (1.0 + _erf(x * (1.0 / math.sqrt(2.0))))


# ---------------- the single fused Pallas kernel ------------------------------
def fused_bert_kernel(*refs):
    # ref layout:
    #   x(BL,D), kmask(B,L), sel(BM,1),
    #   emb_g, emb_b,
    #   N_LAYERS x [wqkv, bqkv, wo, bo, ln1g, ln1b, w1, b1, w2, b2, ln2g, ln2b],
    #   fc_w, fc_b, head_g, head_b, dec_w, dec_b,
    #   o_ref(BM, VOCAB_PAD)
    x_ref, kmask_ref, sel_ref, emb_g, emb_b = refs[:5]
    layer_refs = refs[5:5 + N_LAYER_PARAMS * N_LAYERS]
    fc_w, fc_b, head_g, head_b, dec_w, dec_b, o_ref = refs[5 + N_LAYER_PARAMS * N_LAYERS:]

    BL = BATCH * SEQ_LEN
    BM = BATCH * N_MASKED
    scale = 1.0 / math.sqrt(D_K)

    # embedding LayerNorm
    x = _layer_norm(x_ref[...], emb_g[...], emb_b[...])          # (BL, D)
    kmask = kmask_ref[...]                                        # (B, L) additive mask

    for layer in range(N_LAYERS):                                 # static unroll
        (wqkv, bqkv, wo, bo, ln1g, ln1b,
         w1, b1, w2, b2, ln2g, ln2b) = layer_refs[layer * N_LAYER_PARAMS:
                                                  (layer + 1) * N_LAYER_PARAMS]

        # fused Q/K/V projection: one (BL,D) @ (D,3D) matmul
        qkv = jnp.dot(x, wqkv[...], preferred_element_type=jnp.float32) + bqkv[...]
        q = qkv[:, 0 * D_MODEL:1 * D_MODEL]
        k = qkv[:, 1 * D_MODEL:2 * D_MODEL]
        v = qkv[:, 2 * D_MODEL:3 * D_MODEL]

        batch_ctx = []
        for b in range(BATCH):                                    # static unroll
            r0 = b * SEQ_LEN
            addm = kmask[b:b + 1, :]                              # (1, L), -1e9 at PAD keys
            qb = q[r0:r0 + SEQ_LEN, :]
            kb = k[r0:r0 + SEQ_LEN, :]
            vb = v[r0:r0 + SEQ_LEN, :]
            head_ctx = []
            for h in range(N_HEADS):                              # static unroll
                c0 = h * D_K
                qh = qb[:, c0:c0 + D_K]
                kh = kb[:, c0:c0 + D_K]
                vh = vb[:, c0:c0 + D_K]
                s = jax.lax.dot_general(qh, kh, (((1,), (1,)), ((), ())),
                                        preferred_element_type=jnp.float32) * scale
                s = s + addm                                      # additive pad mask
                s = s - jnp.max(s, axis=-1, keepdims=True)
                p = jnp.exp(s)
                denom = jnp.sum(p, axis=-1, keepdims=True)
                attn = p * pl.reciprocal(denom, approx=True)      # EUP reciprocal
                head_ctx.append(jnp.dot(attn, vh,
                                        preferred_element_type=jnp.float32))
            batch_ctx.append(jnp.concatenate(head_ctx, axis=-1))  # (L, D)
        ctx = jnp.concatenate(batch_ctx, axis=0)                  # (BL, D)

        # single output projection over the concatenated heads
        attn_out = jnp.dot(ctx, wo[...], preferred_element_type=jnp.float32) + bo[...]
        y = _layer_norm(attn_out + x, ln1g[...], ln1b[...])

        # position-wise FFN (1x1 convs == matmuls) + ReLU + residual + LayerNorm
        h1 = jnp.maximum(
            jnp.dot(y, w1[...], preferred_element_type=jnp.float32) + b1[...], 0.0)
        h2 = jnp.dot(h1, w2[...], preferred_element_type=jnp.float32) + b2[...]
        x = _layer_norm(h2 + y, ln2g[...], ln2b[...])

    # masked-position gather as a one-hot matmul (stays in VMEM)
    sel = sel_ref[...]                                            # (BM, 1) int32 flat rows
    cols = jax.lax.broadcasted_iota(jnp.int32, (BM, BL), 1)
    onehot = jnp.where(cols == sel, 1.0, 0.0)                     # (BM, BL)
    gathered = jnp.dot(onehot, x, preferred_element_type=jnp.float32)   # (BM, D)

    # fc -> gelu -> LayerNorm -> tied decoder (padded to 128 lanes)
    hfc = jnp.dot(gathered, fc_w[...], preferred_element_type=jnp.float32) + fc_b[...]
    hact = _gelu(hfc)
    hn = _layer_norm(hact, head_g[...], head_b[...])
    o_ref[...] = (jnp.dot(hn, dec_w[...], preferred_element_type=jnp.float32)
                  + dec_b[...])


def run_fused_bert(x_flat, kmask, sel, params_flat):
    n_in = 3 + len(params_flat)
    vmem_spec = pl.BlockSpec(memory_space=pltpu.MemorySpace.VMEM)
    return pl.pallas_call(
        fused_bert_kernel,
        out_shape=jax.ShapeDtypeStruct((BATCH * N_MASKED, VOCAB_PAD), jnp.float32),
        in_specs=[vmem_spec] * n_in,
        out_specs=vmem_spec,
    )(x_flat, kmask, sel, *params_flat)


# ---------------- parameters (deterministic synthetic init) ------------------
def init_params(key):
    keys = iter(jax.random.split(key, 64))

    def nrm(shape, scale=0.02):
        return jax.random.normal(next(keys), shape, jnp.float32) * scale

    tok_embed     = nrm((VOCAB_SIZE, D_MODEL))
    passend_embed = nrm((N_PASSEND, D_MODEL))
    mjd_embed     = nrm((TIME_RANGE, D_MODEL))
    emb_ln_g = jnp.ones((1, D_MODEL), jnp.float32)
    emb_ln_b = jnp.zeros((1, D_MODEL), jnp.float32)

    layers = []
    for _ in range(N_LAYERS):
        wq = nrm((D_MODEL, N_HEADS * D_K)); bq = nrm((1, N_HEADS * D_K))
        wk = nrm((D_MODEL, N_HEADS * D_K)); bk = nrm((1, N_HEADS * D_K))
        wv = nrm((D_MODEL, N_HEADS * D_V)); bv = nrm((1, N_HEADS * D_V))
        wqkv = jnp.concatenate([wq, wk, wv], axis=1)      # fused QKV weight (D, 3D)
        bqkv = jnp.concatenate([bq, bk, bv], axis=1)      # fused QKV bias   (1, 3D)
        wo = nrm((N_HEADS * D_V, D_MODEL)); bo = nrm((1, D_MODEL))
        ln1g = jnp.ones((1, D_MODEL), jnp.float32)
        ln1b = jnp.zeros((1, D_MODEL), jnp.float32)
        w1 = nrm((D_MODEL, D_FF)); b1 = nrm((1, D_FF))
        w2 = nrm((D_FF, D_MODEL)); b2 = nrm((1, D_MODEL))
        ln2g = jnp.ones((1, D_MODEL), jnp.float32)
        ln2b = jnp.zeros((1, D_MODEL), jnp.float32)
        layers.append((wqkv, bqkv, wo, bo, ln1g, ln1b,
                       w1, b1, w2, b2, ln2g, ln2b))

    fc_w = nrm((D_MODEL, D_MODEL)); fc_b = nrm((1, D_MODEL))
    head_ln_g = jnp.ones((1, D_MODEL), jnp.float32)
    head_ln_b = jnp.zeros((1, D_MODEL), jnp.float32)
    # weight tying (decoder.weight = tok_embed) + zero-padding to 128 lanes
    dec_w = jnp.zeros((D_MODEL, VOCAB_PAD), jnp.float32).at[:, :VOCAB_SIZE].set(tok_embed.T)
    dec_b = jnp.zeros((1, VOCAB_PAD), jnp.float32)        # decoder_bias init = zeros

    return dict(tok_embed=tok_embed, passend_embed=passend_embed,
                mjd_embed=mjd_embed, emb_ln_g=emb_ln_g, emb_ln_b=emb_ln_b,
                layers=layers, fc_w=fc_w, fc_b=fc_b,
                head_ln_g=head_ln_g, head_ln_b=head_ln_b,
                dec_w=dec_w, dec_b=dec_b)


# ---------------- full forward ------------------------------------------------
def bert_forward(params, input_ids, mjd_ids, passend_ids, masked_pos):
    B, L = input_ids.shape

    # Embedding lookups: tok + passend + mjd (plain-JAX glue feeding the kernel).
    emb = (params["tok_embed"][input_ids]
           + params["passend_embed"][passend_ids]
           + params["mjd_embed"][mjd_ids])                      # (B, L, D)
    x_flat = emb.reshape(B * L, D_MODEL)

    # get_attn_pad_mask, pre-scaled to an additive key mask: -1e9 where id == 0.
    kmask = jnp.where(input_ids == 0, NEG_INF, 0.0).astype(jnp.float32)   # (B, L)

    # flat row indices of the masked positions in the (B*L, D) activation
    sel = masked_pos + jnp.arange(B, dtype=jnp.int32)[:, None] * L
    sel = sel.reshape(B * N_MASKED, 1).astype(jnp.int32)

    params_flat = [params["emb_ln_g"], params["emb_ln_b"]]
    for lp in params["layers"]:
        params_flat.extend(lp)
    params_flat += [params["fc_w"], params["fc_b"],
                    params["head_ln_g"], params["head_ln_b"],
                    params["dec_w"], params["dec_b"]]

    logits_pad = run_fused_bert(x_flat, kmask, sel, params_flat)   # (B*M, 128)
    logits_lm = logits_pad.reshape(B, N_MASKED, VOCAB_PAD)[:, :, :VOCAB_SIZE]
    return logits_lm


# ---------------- main --------------------------------------------------------
if __name__ == "__main__":
    key = jax.random.PRNGKey(0)
    pkey, k1, k2, k3, k4 = jax.random.split(key, 5)
    params = init_params(pkey)

    input_ids = jax.random.randint(k1, (BATCH, SEQ_LEN), 1, VOCAB_SIZE, dtype=jnp.int32)
    input_ids = input_ids.at[:, -2:].set(0)      # PAD tokens -> exercises the attention mask
    mjd_ids = jax.random.randint(k2, (BATCH, SEQ_LEN), 0, TIME_RANGE, dtype=jnp.int32)
    passend_ids = jax.random.randint(k3, (BATCH, SEQ_LEN), 0, N_PASSEND, dtype=jnp.int32)
    masked_pos = jax.random.randint(k4, (BATCH, N_MASKED), 0, SEQ_LEN, dtype=jnp.int32)

    logits = jax.jit(bert_forward)(params, input_ids, mjd_ids, passend_ids, masked_pos)
    jax.block_until_ready(logits)

    assert logits.shape == (BATCH, N_MASKED, VOCAB_SIZE), logits.shape
    assert bool(jnp.all(jnp.isfinite(logits)))
    print("KERNEL_OK")
</pallas_src>

<mosaic_0001>
module attributes {stable_mosaic.version = 11 : i64} {
  func.func @fused_bert_kernel(%arg0: memref<16x32xf32, #tpu.memory_space<vmem>>, %arg1: memref<2x8xf32, #tpu.memory_space<vmem>>, %arg2: memref<8x1xi32, #tpu.memory_space<vmem>>, %arg3: memref<1x32xf32, #tpu.memory_space<vmem>>, %arg4: memref<1x32xf32, #tpu.memory_space<vmem>>, %arg5: memref<32x96xf32, #tpu.memory_space<vmem>>, %arg6: memref<1x96xf32, #tpu.memory_space<vmem>>, %arg7: memref<32x32xf32, #tpu.memory_space<vmem>>, %arg8: memref<1x32xf32, #tpu.memory_space<vmem>>, %arg9: memref<1x32xf32, #tpu.memory_space<vmem>>, %arg10: memref<1x32xf32, #tpu.memory_space<vmem>>, %arg11: memref<32x128xf32, #tpu.memory_space<vmem>>, %arg12: memref<1x128xf32, #tpu.memory_space<vmem>>, %arg13: memref<128x32xf32, #tpu.memory_space<vmem>>, %arg14: memref<1x32xf32, #tpu.memory_space<vmem>>, %arg15: memref<1x32xf32, #tpu.memory_space<vmem>>, %arg16: memref<1x32xf32, #tpu.memory_space<vmem>>, %arg17: memref<32x96xf32, #tpu.memory_space<vmem>>, %arg18: memref<1x96xf32, #tpu.memory_space<vmem>>, %arg19: memref<32x32xf32, #tpu.memory_space<vmem>>, %arg20: memref<1x32xf32, #tpu.memory_space<vmem>>, %arg21: memref<1x32xf32, #tpu.memory_space<vmem>>, %arg22: memref<1x32xf32, #tpu.memory_space<vmem>>, %arg23: memref<32x128xf32, #tpu.memory_space<vmem>>, %arg24: memref<1x128xf32, #tpu.memory_space<vmem>>, %arg25: memref<128x32xf32, #tpu.memory_space<vmem>>, %arg26: memref<1x32xf32, #tpu.memory_space<vmem>>, %arg27: memref<1x32xf32, #tpu.memory_space<vmem>>, %arg28: memref<1x32xf32, #tpu.memory_space<vmem>>, %arg29: memref<32x32xf32, #tpu.memory_space<vmem>>, %arg30: memref<1x32xf32, #tpu.memory_space<vmem>>, %arg31: memref<1x32xf32, #tpu.memory_space<vmem>>, %arg32: memref<1x32xf32, #tpu.memory_space<vmem>>, %arg33: memref<32x128xf32, #tpu.memory_space<vmem>>, %arg34: memref<1x128xf32, #tpu.memory_space<vmem>>, %arg35: memref<8x128xf32, #tpu.memory_space<vmem>>) attributes {dimension_semantics = [], scalar_prefetch = 0 : i64, scratch_operands = 0 : i64, tpu.core_type = #tpu.core_type<tc>} {
    %c0 = arith.constant 0 : index
    %c0_0 = arith.constant 0 : index
    %0 = vector.load %arg0[%c0, %c0_0] : memref<16x32xf32, #tpu.memory_space<vmem>>, vector<16x32xf32>
    %c0_1 = arith.constant 0 : index
    %c0_2 = arith.constant 0 : index
    %1 = vector.load %arg3[%c0_1, %c0_2] : memref<1x32xf32, #tpu.memory_space<vmem>>, vector<1x32xf32>
    %c0_3 = arith.constant 0 : index
    %c0_4 = arith.constant 0 : index
    %2 = vector.load %arg4[%c0_3, %c0_4] : memref<1x32xf32, #tpu.memory_space<vmem>>, vector<1x32xf32>
    %cst = arith.constant dense<0.000000e+00> : vector<16xf32>
    %3 = vector.multi_reduction <add>, %0, %cst [1] : vector<16x32xf32> to vector<16xf32>
    %4 = vector.shape_cast %3 : vector<16xf32> to vector<16x1xf32>
    %cst_5 = arith.constant 3.200000e+01 : f32
    %5 = vector.broadcast %cst_5 : f32 to vector<16x1xf32>
    %6 = arith.divf %4, %5 : vector<16x1xf32>
    %7 = vector.broadcast %6 : vector<16x1xf32> to vector<16x32xf32>
    %8 = arith.subf %0, %7 : vector<16x32xf32>
    %9 = arith.mulf %8, %8 : vector<16x32xf32>
    %cst_6 = arith.constant dense<0.000000e+00> : vector<16xf32>
    %10 = vector.multi_reduction <add>, %9, %cst_6 [1] : vector<16x32xf32> to vector<16xf32>
    %11 = vector.shape_cast %10 : vector<16xf32> to vector<16x1xf32>
    %cst_7 = arith.constant 3.200000e+01 : f32
    %12 = vector.broadcast %cst_7 : f32 to vector<16x1xf32>
    %13 = arith.divf %11, %12 : vector<16x1xf32>
    %cst_8 = arith.constant 9.99999974E-6 : f32
    %14 = vector.broadcast %cst_8 : f32 to vector<16x1xf32>
    %15 = arith.addf %13, %14 : vector<16x1xf32>
    %16 = math.rsqrt %15 : vector<16x1xf32>
    %17 = vector.broadcast %16 : vector<16x1xf32> to vector<16x32xf32>
    %18 = arith.mulf %8, %17 : vector<16x32xf32>
    %19 = vector.broadcast %1 : vector<1x32xf32> to vector<16x32xf32>
    %20 = arith.mulf %18, %19 : vector<16x32xf32>
    %21 = vector.broadcast %2 : vector<1x32xf32> to vector<16x32xf32>
    %22 = arith.addf %20, %21 : vector<16x32xf32>
    %c0_9 = arith.constant 0 : index
    %c0_10 = arith.constant 0 : index
    %23 = vector.load %arg1[%c0_9, %c0_10] : memref<2x8xf32, #tpu.memory_space<vmem>>, vector<2x8xf32>
    %c0_11 = arith.constant 0 : index
    %c0_12 = arith.constant 0 : index
    %24 = vector.load %arg5[%c0_11, %c0_12] : memref<32x96xf32, #tpu.memory_space<vmem>>, vector<32x96xf32>
    %cst_13 = arith.constant dense<0.000000e+00> : vector<16x96xf32>
    %25 = tpu.matmul %22, %24, %cst_13 {dimension_numbers = #tpu.dot_dimension_numbers<[1], [0], [0], [1], [0, 0, 1, 1], [], []>} : vector<16x32xf32>, vector<32x96xf32>, vector<16x96xf32> -> vector<16x96xf32>
    %c0_14 = arith.constant 0 : index
    %c0_15 = arith.constant 0 : index
    %26 = vector.load %arg6[%c0_14, %c0_15] : memref<1x96xf32, #tpu.memory_space<vmem>>, vector<1x96xf32>
    %27 = vector.broadcast %26 : vector<1x96xf32> to vector<16x96xf32>
    %28 = arith.addf %25, %27 : vector<16x96xf32>
    %29 = vector.extract_strided_slice %28 {offsets = [0, 0], sizes = [16, 32], strides = [1, 1]} : vector<16x96xf32> to vector<16x32xf32>
    %30 = vector.extract_strided_slice %28 {offsets = [0, 32], sizes = [16, 32], strides = [1, 1]} : vector<16x96xf32> to vector<16x32xf32>
    %31 = vector.extract_strided_slice %28 {offsets = [0, 64], sizes = [16, 32], strides = [1, 1]} : vector<16x96xf32> to vector<16x32xf32>
    %32 = vector.extract_strided_slice %23 {offsets = [0, 0], sizes = [1, 8], strides = [1, 1]} : vector<2x8xf32> to vector<1x8xf32>
    %33 = vector.extract_strided_slice %29 {offsets = [0, 0], sizes = [8, 32], strides = [1, 1]} : vector<16x32xf32> to vector<8x32xf32>
    %34 = vector.extract_strided_slice %30 {offsets = [0, 0], sizes = [8, 32], strides = [1, 1]} : vector<16x32xf32> to vector<8x32xf32>
    %35 = vector.extract_strided_slice %31 {offsets = [0, 0], sizes = [8, 32], strides = [1, 1]} : vector<16x32xf32> to vector<8x32xf32>
    %36 = vector.extract_strided_slice %33 {offsets = [0, 0], sizes = [8, 8], strides = [1, 1]} : vector<8x32xf32> to vector<8x8xf32>
    %37 = vector.extract_strided_slice %34 {offsets = [0, 0], sizes = [8, 8], strides = [1, 1]} : vector<8x32xf32> to vector<8x8xf32>
    %38 = vector.extract_strided_slice %35 {offsets = [0, 0], sizes = [8, 8], strides = [1, 1]} : vector<8x32xf32> to vector<8x8xf32>
    %cst_16 = arith.constant dense<0.000000e+00> : vector<8x8xf32>
    %39 = tpu.matmul %36, %37, %cst_16 {dimension_numbers = #tpu.dot_dimension_numbers<[1], [1], [0], [0], [0, 0, 1, 0], [], []>} : vector<8x8xf32>, vector<8x8xf32>, vector<8x8xf32> -> vector<8x8xf32>
    %cst_17 = arith.constant 0.353553385 : f32
    %40 = vector.broadcast %cst_17 : f32 to vector<8x8xf32>
    %41 = arith.mulf %39, %40 : vector<8x8xf32>
    %42 = vector.broadcast %32 : vector<1x8xf32> to vector<8x8xf32>
    %43 = arith.addf %41, %42 : vector<8x8xf32>
    %cst_18 = arith.constant dense<0xFF800000> : vector<8xf32>
    %44 = vector.multi_reduction <maximumf>, %43, %cst_18 [1] : vector<8x8xf32> to vector<8xf32>
    %45 = vector.shape_cast %44 : vector<8xf32> to vector<8x1xf32>
    %46 = vector.broadcast %45 : vector<8x1xf32> to vector<8x8xf32>
    %47 = arith.subf %43, %46 : vector<8x8xf32>
    %48 = math.exp %47 : vector<8x8xf32>
    %cst_19 = arith.constant dense<0.000000e+00> : vector<8xf32>
    %49 = vector.multi_reduction <add>, %48, %cst_19 [1] : vector<8x8xf32> to vector<8xf32>
    %50 = vector.shape_cast %49 : vector<8xf32> to vector<8x1xf32>
    %51 = tpu.reciprocal %50 {approx = true} : vector<8x1xf32> -> vector<8x1xf32>
    %52 = vector.broadcast %51 : vector<8x1xf32> to vector<8x8xf32>
    %53 = arith.mulf %48, %52 : vector<8x8xf32>
    %cst_20 = arith.constant dense<0.000000e+00> : vector<8x8xf32>
    %54 = tpu.matmul %53, %38, %cst_20 {dimension_numbers = #tpu.dot_dimension_numbers<[1], [0], [0], [1], [0, 0, 1, 1], [], []>} : vector<8x8xf32>, vector<8x8xf32>, vector<8x8xf32> -> vector<8x8xf32>
    %55 = vector.extract_strided_slice %33 {offsets = [0, 8], sizes = [8, 8], strides = [1, 1]} : vector<8x32xf32> to vector<8x8xf32>
    %56 = vector.extract_strided_slice %34 {offsets = [0, 8], sizes = [8, 8], strides = [1, 1]} : vector<8x32xf32> to vector<8x8xf32>
    %57 = vector.extract_strided_slice %35 {offsets = [0, 8], sizes = [8, 8], strides = [1, 1]} : vector<8x32xf32> to vector<8x8xf32>
    %cst_21 = arith.constant dense<0.000000e+00> : vector<8x8xf32>
    %58 = tpu.matmul %55, %56, %cst_21 {dimension_numbers = #tpu.dot_dimension_numbers<[1], [1], [0], [0], [0, 0, 1, 0], [], []>} : vector<8x8xf32>, vector<8x8xf32>, vector<8x8xf32> -> vector<8x8xf32>
    %cst_22 = arith.constant 0.353553385 : f32
    %59 = vector.broadcast %cst_22 : f32 to vector<8x8xf32>
    %60 = arith.mulf %58, %59 : vector<8x8xf32>
    %61 = vector.broadcast %32 : vector<1x8xf32> to vector<8x8xf32>
    %62 = arith.addf %60, %61 : vector<8x8xf32>
    %cst_23 = arith.constant dense<0xFF800000> : vector<8xf32>
    %63 = vector.multi_reduction <maximumf>, %62, %cst_23 [1] : vector<8x8xf32> to vector<8xf32>
    %64 = vector.shape_cast %63 : vector<8xf32> to vector<8x1xf32>
    %65 = vector.broadcast %64 : vector<8x1xf32> to vector<8x8xf32>
    %66 = arith.subf %62, %65 : vector<8x8xf32>
    %67 = math.exp %66 : vector<8x8xf32>
    %cst_24 = arith.constant dense<0.000000e+00> : vector<8xf32>
    %68 = vector.multi_reduction <add>, %67, %cst_24 [1] : vector<8x8xf32> to vector<8xf32>
    %69 = vector.shape_cast %68 : vector<8xf32> to vector<8x1xf32>
    %70 = tpu.reciprocal %69 {approx = true} : vector<8x1xf32> -> vector<8x1xf32>
    %71 = vector.broadcast %70 : vector<8x1xf32> to vector<8x8xf32>
    %72 = arith.mulf %67, %71 : vector<8x8xf32>
    %cst_25 = arith.constant dense<0.000000e+00> : vector<8x8xf32>
    %73 = tpu.matmul %72, %57, %cst_25 {dimension_numbers = #tpu.dot_dimension_numbers<[1], [0], [0], [1], [0, 0, 1, 1], [], []>} : vector<8x8xf32>, vector<8x8xf32>, vector<8x8xf32> -> vector<8x8xf32>
    %74 = vector.extract_strided_slice %33 {offsets = [0, 16], sizes = [8, 8], strides = [1, 1]} : vector<8x32xf32> to vector<8x8xf32>
    %75 = vector.extract_strided_slice %34 {offsets = [0, 16], sizes = [8, 8], strides = [1, 1]} : vector<8x32xf32> to vector<8x8xf32>
    %76 = vector.extract_strided_slice %35 {offsets = [0, 16], sizes = [8, 8], strides = [1, 1]} : vector<8x32xf32> to vector<8x8xf32>
    %cst_26 = arith.constant dense<0.000000e+00> : vector<8x8xf32>
    %77 = tpu.matmul %74, %75, %cst_26 {dimension_numbers = #tpu.dot_dimension_numbers<[1], [1], [0], [0], [0, 0, 1, 0], [], []>} : vector<8x8xf32>, vector<8x8xf32>, vector<8x8xf32> -> vector<8x8xf32>
    %cst_27 = arith.constant 0.353553385 : f32
    %78 = vector.broadcast %cst_27 : f32 to vector<8x8xf32>
    %79 = arith.mulf %77, %78 : vector<8x8xf32>
    %80 = vector.broadcast %32 : vector<1x8xf32> to vector<8x8xf32>
    %81 = arith.addf %79, %80 : vector<8x8xf32>
    %cst_28 = arith.constant dense<0xFF800000> : vector<8xf32>
    %82 = vector.multi_reduction <maximumf>, %81, %cst_28 [1] : vector<8x8xf32> to vector<8xf32>
    %83 = vector.shape_cast %82 : vector<8xf32> to vector<8x1xf32>
    %84 = vector.broadcast %83 : vector<8x1xf32> to vector<8x8xf32>
    %85 = arith.subf %81, %84 : vector<8x8xf32>
    %86 = math.exp %85 : vector<8x8xf32>
    %cst_29 = arith.constant dense<0.000000e+00> : vector<8xf32>
    %87 = vector.multi_reduction <add>, %86, %cst_29 [1] : vector<8x8xf32> to vector<8xf32>
    %88 = vector.shape_cast %87 : vector<8xf32> to vector<8x1xf32>
    %89 = tpu.reciprocal %88 {approx = true} : vector<8x1xf32> -> vector<8x1xf32>
    %90 = vector.broadcast %89 : vector<8x1xf32> to vector<8x8xf32>
    %91 = arith.mulf %86, %90 : vector<8x8xf32>
    %cst_30 = arith.constant dense<0.000000e+00> : vector<8x8xf32>
    %92 = tpu.matmul %91, %76, %cst_30 {dimension_numbers = #tpu.dot_dimension_numbers<[1], [0], [0], [1], [0, 0, 1, 1], [], []>} : vector<8x8xf32>, vector<8x8xf32>, vector<8x8xf32> -> vector<8x8xf32>
    %93 = vector.extract_strided_slice %33 {offsets = [0, 24], sizes = [8, 8], strides = [1, 1]} : vector<8x32xf32> to vector<8x8xf32>
    %94 = vector.extract_strided_slice %34 {offsets = [0, 24], sizes = [8, 8], strides = [1, 1]} : vector<8x32xf32> to vector<8x8xf32>
    %95 = vector.extract_strided_slice %35 {offsets = [0, 24], sizes = [8, 8], strides = [1, 1]} : vector<8x32xf32> to vector<8x8xf32>
    %cst_31 = arith.constant dense<0.000000e+00> : vector<8x8xf32>
    %96 = tpu.matmul %93, %94, %cst_31 {dimension_numbers = #tpu.dot_dimension_numbers<[1], [1], [0], [0], [0, 0, 1, 0], [], []>} : vector<8x8xf32>, vector<8x8xf32>, vector<8x8xf32> -> vector<8x8xf32>
    %cst_32 = arith.constant 0.353553385 : f32
    %97 = vector.broadcast %cst_32 : f32 to vector<8x8xf32>
    %98 = arith.mulf %96, %97 : vector<8x8xf32>
    %99 = vector.broadcast %32 : vector<1x8xf32> to vector<8x8xf32>
    %100 = arith.addf %98, %99 : vector<8x8xf32>
    %cst_33 = arith.constant dense<0xFF800000> : vector<8xf32>
    %101 = vector.multi_reduction <maximumf>, %100, %cst_33 [1] : vector<8x8xf32> to vector<8xf32>
    %102 = vector.shape_cast %101 : vector<8xf32> to vector<8x1xf32>
    %103 = vector.broadcast %102 : vector<8x1xf32> to vector<8x8xf32>
    %104 = arith.subf %100, %103 : vector<8x8xf32>
    %105 = math.exp %104 : vector<8x8xf32>
    %cst_34 = arith.constant dense<0.000000e+00> : vector<8xf32>
    %106 = vector.multi_reduction <add>, %105, %cst_34 [1] : vector<8x8xf32> to vector<8xf32>
    %107 = vector.shape_cast %106 : vector<8xf32> to vector<8x1xf32>
    %108 = tpu.reciprocal %107 {approx = true} : vector<8x1xf32> -> vector<8x1xf32>
    %109 = vector.broadcast %108 : vector<8x1xf32> to vector<8x8xf32>
    %110 = arith.mulf %105, %109 : vector<8x8xf32>
    %cst_35 = arith.constant dense<0.000000e+00> : vector<8x8xf32>
    %111 = tpu.matmul %110, %95, %cst_35 {dimension_numbers = #tpu.dot_dimension_numbers<[1], [0], [0], [1], [0, 0, 1, 1], [], []>} : vector<8x8xf32>, vector<8x8xf32>, vector<8x8xf32> -> vector<8x8xf32>
    %112 = tpu.concatenate %54, %73, %92, %111 in 1 : vector<8x8xf32>, vector<8x8xf32>, vector<8x8xf32>, vector<8x8xf32> -> vector<8x32xf32>
    %113 = vector.extract_strided_slice %23 {offsets = [1, 0], sizes = [1, 8], strides = [1, 1]} : vector<2x8xf32> to vector<1x8xf32>
    %114 = vector.extract_strided_slice %29 {offsets = [8, 0], sizes = [8, 32], strides = [1, 1]} : vector<16x32xf32> to vector<8x32xf32>
    %115 = vector.extract_strided_slice %30 {offsets = [8, 0], sizes = [8, 32], strides = [1, 1]} : vector<16x32xf32> to vector<8x32xf32>
    %116 = vector.extract_strided_slice %31 {offsets = [8, 0], sizes = [8, 32], strides = [1, 1]} : vector<16x32xf32> to vector<8x32xf32>
    %117 = vector.extract_strided_slice %114 {offsets = [0, 0], sizes = [8, 8], strides = [1, 1]} : vector<8x32xf32> to vector<8x8xf32>
    %118 = vector.extract_strided_slice %115 {offsets = [0, 0], sizes = [8, 8], strides = [1, 1]} : vector<8x32xf32> to vector<8x8xf32>
    %119 = vector.extract_strided_slice %116 {offsets = [0, 0], sizes = [8, 8], strides = [1, 1]} : vector<8x32xf32> to vector<8x8xf32>
    %cst_36 = arith.constant dense<0.000000e+00> : vector<8x8xf32>
    %120 = tpu.matmul %117, %118, %cst_36 {dimension_numbers = #tpu.dot_dimension_numbers<[1], [1], [0], [0], [0, 0, 1, 0], [], []>} : vector<8x8xf32>, vector<8x8xf32>, vector<8x8xf32> -> vector<8x8xf32>
    %cst_37 = arith.constant 0.353553385 : f32
    %121 = vector.broadcast %cst_37 : f32 to vector<8x8xf32>
    %122 = arith.mulf %120, %121 : vector<8x8xf32>
    %123 = vector.broadcast %113 : vector<1x8xf32> to vector<8x8xf32>
    %124 = arith.addf %122, %123 : vector<8x8xf32>
    %cst_38 = arith.constant dense<0xFF800000> : vector<8xf32>
    %125 = vector.multi_reduction <maximumf>, %124, %cst_38 [1] : vector<8x8xf32> to vector<8xf32>
    %126 = vector.shape_cast %125 : vector<8xf32> to vector<8x1xf32>
    %127 = vector.broadcast %126 : vector<8x1xf32> to vector<8x8xf32>
    %128 = arith.subf %124, %127 : vector<8x8xf32>
    %129 = math.exp %128 : vector<8x8xf32>
    %cst_39 = arith.constant dense<0.000000e+00> : vector<8xf32>
    %130 = vector.multi_reduction <add>, %129, %cst_39 [1] : vector<8x8xf32> to vector<8xf32>
    %131 = vector.shape_cast %130 : vector<8xf32> to vector<8x1xf32>
    %132 = tpu.reciprocal %131 {approx = true} : vector<8x1xf32> -> vector<8x1xf32>
    %133 = vector.broadcast %132 : vector<8x1xf32> to vector<8x8xf32>
    %134 = arith.mulf %129, %133 : vector<8x8xf32>
    %cst_40 = arith.constant dense<0.000000e+00> : vector<8x8xf32>
    %135 = tpu.matmul %134, %119, %cst_40 {dimension_numbers = #tpu.dot_dimension_numbers<[1], [0], [0], [1], [0, 0, 1, 1], [], []>} : vector<8x8xf32>, vector<8x8xf32>, vector<8x8xf32> -> vector<8x8xf32>
    %136 = vector.extract_strided_slice %114 {offsets = [0, 8], sizes = [8, 8], strides = [1, 1]} : vector<8x32xf32> to vector<8x8xf32>
    %137 = vector.extract_strided_slice %115 {offsets = [0, 8], sizes = [8, 8], strides = [1, 1]} : vector<8x32xf32> to vector<8x8xf32>
    %138 = vector.extract_strided_slice %116 {offsets = [0, 8], sizes = [8, 8], strides = [1, 1]} : vector<8x32xf32> to vector<8x8xf32>
    %cst_41 = arith.constant dense<0.000000e+00> : vector<8x8xf32>
    %139 = tpu.matmul %136, %137, %cst_41 {dimension_numbers = #tpu.dot_dimension_numbers<[1], [1], [0], [0], [0, 0, 1, 0], [], []>} : vector<8x8xf32>, vector<8x8xf32>, vector<8x8xf32> -> vector<8x8xf32>
    %cst_42 = arith.constant 0.353553385 : f32
    %140 = vector.broadcast %cst_42 : f32 to vector<8x8xf32>
    %141 = arith.mulf %139, %140 : vector<8x8xf32>
    %142 = vector.broadcast %113 : vector<1x8xf32> to vector<8x8xf32>
    %143 = arith.addf %141, %142 : vector<8x8xf32>
    %cst_43 = arith.constant dense<0xFF800000> : vector<8xf32>
    %144 = vector.multi_reduction <maximumf>, %143, %cst_43 [1] : vector<8x8xf32> to vector<8xf32>
    %145 = vector.shape_cast %144 : vector<8xf32> to vector<8x1xf32>
    %146 = vector.broadcast %145 : vector<8x1xf32> to vector<8x8xf32>
    %147 = arith.subf %143, %146 : vector<8x8xf32>
    %148 = math.exp %147 : vector<8x8xf32>
    %cst_44 = arith.constant dense<0.000000e+00> : vector<8xf32>
    %149 = vector.multi_reduction <add>, %148, %cst_44 [1] : vector<8x8xf32> to vector<8xf32>
    %150 = vector.shape_cast %149 : vector<8xf32> to vector<8x1xf32>
    %151 = tpu.reciprocal %150 {approx = true} : vector<8x1xf32> -> vector<8x1xf32>
    %152 = vector.broadcast %151 : vector<8x1xf32> to vector<8x8xf32>
    %153 = arith.mulf %148, %152 : vector<8x8xf32>
    %cst_45 = arith.constant dense<0.000000e+00> : vector<8x8xf32>
    %154 = tpu.matmul %153, %138, %cst_45 {dimension_numbers = #tpu.dot_dimension_numbers<[1], [0], [0], [1], [0, 0, 1, 1], [], []>} : vector<8x8xf32>, vector<8x8xf32>, vector<8x8xf32> -> vector<8x8xf32>
    %155 = vector.extract_strided_slice %114 {offsets = [0, 16], sizes = [8, 8], strides = [1, 1]} : vector<8x32xf32> to vector<8x8xf32>
    %156 = vector.extract_strided_slice %115 {offsets = [0, 16], sizes = [8, 8], strides = [1, 1]} : vector<8x32xf32> to vector<8x8xf32>
    %157 = vector.extract_strided_slice %116 {offsets = [0, 16], sizes = [8, 8], strides = [1, 1]} : vector<8x32xf32> to vector<8x8xf32>
    %cst_46 = arith.constant dense<0.000000e+00> : vector<8x8xf32>
    %158 = tpu.matmul %155, %156, %cst_46 {dimension_numbers = #tpu.dot_dimension_numbers<[1], [1], [0], [0], [0, 0, 1, 0], [], []>} : vector<8x8xf32>, vector<8x8xf32>, vector<8x8xf32> -> vector<8x8xf32>
    %cst_47 = arith.constant 0.353553385 : f32
    %159 = vector.broadcast %cst_47 : f32 to vector<8x8xf32>
    %160 = arith.mulf %158, %159 : vector<8x8xf32>
    %161 = vector.broadcast %113 : vector<1x8xf32> to vector<8x8xf32>
    %162 = arith.addf %160, %161 : vector<8x8xf32>
    %cst_48 = arith.constant dense<0xFF800000> : vector<8xf32>
    %163 = vector.multi_reduction <maximumf>, %162, %cst_48 [1] : vector<8x8xf32> to vector<8xf32>
    %164 = vector.shape_cast %163 : vector<8xf32> to vector<8x1xf32>
    %165 = vector.broadcast %164 : vector<8x1xf32> to vector<8x8xf32>
    %166 = arith.subf %162, %165 : vector<8x8xf32>
    %167 = math.exp %166 : vector<8x8xf32>
    %cst_49 = arith.constant dense<0.000000e+00> : vector<8xf32>
    %168 = vector.multi_reduction <add>, %167, %cst_49 [1] : vector<8x8xf32> to vector<8xf32>
    %169 = vector.shape_cast %168 : vector<8xf32> to vector<8x1xf32>
    %170 = tpu.reciprocal %169 {approx = true} : vector<8x1xf32> -> vector<8x1xf32>
    %171 = vector.broadcast %170 : vector<8x1xf32> to vector<8x8xf32>
    %172 = arith.mulf %167, %171 : vector<8x8xf32>
    %cst_50 = arith.constant dense<0.000000e+00> : vector<8x8xf32>
    %173 = tpu.matmul %172, %157, %cst_50 {dimension_numbers = #tpu.dot_dimension_numbers<[1], [0], [0], [1], [0, 0, 1, 1], [], []>} : vector<8x8xf32>, vector<8x8xf32>, vector<8x8xf32> -> vector<8x8xf32>
    %174 = vector.extract_strided_slice %114 {offsets = [0, 24], sizes = [8, 8], strides = [1, 1]} : vector<8x32xf32> to vector<8x8xf32>
    %175 = vector.extract_strided_slice %115 {offsets = [0, 24], sizes = [8, 8], strides = [1, 1]} : vector<8x32xf32> to vector<8x8xf32>
    %176 = vector.extract_strided_slice %116 {offsets = [0, 24], sizes = [8, 8], strides = [1, 1]} : vector<8x32xf32> to vector<8x8xf32>
    %cst_51 = arith.constant dense<0.000000e+00> : vector<8x8xf32>
    %177 = tpu.matmul %174, %175, %cst_51 {dimension_numbers = #tpu.dot_dimension_numbers<[1], [1], [0], [0], [0, 0, 1, 0], [], []>} : vector<8x8xf32>, vector<8x8xf32>, vector<8x8xf32> -> vector<8x8xf32>
    %cst_52 = arith.constant 0.353553385 : f32
    %178 = vector.broadcast %cst_52 : f32 to vector<8x8xf32>
    %179 = arith.mulf %177, %178 : vector<8x8xf32>
    %180 = vector.broadcast %113 : vector<1x8xf32> to vector<8x8xf32>
    %181 = arith.addf %179, %180 : vector<8x8xf32>
    %cst_53 = arith.constant dense<0xFF800000> : vector<8xf32>
    %182 = vector.multi_reduction <maximumf>, %181, %cst_53 [1] : vector<8x8xf32> to vector<8xf32>
    %183 = vector.shape_cast %182 : vector<8xf32> to vector<8x1xf32>
    %184 = vector.broadcast %183 : vector<8x1xf32> to vector<8x8xf32>
    %185 = arith.subf %181, %184 : vector<8x8xf32>
    %186 = math.exp %185 : vector<8x8xf32>
    %cst_54 = arith.constant dense<0.000000e+00> : vector<8xf32>
    %187 = vector.multi_reduction <add>, %186, %cst_54 [1] : vector<8x8xf32> to vector<8xf32>
    %188 = vector.shape_cast %187 : vector<8xf32> to vector<8x1xf32>
    %189 = tpu.reciprocal %188 {approx = true} : vector<8x1xf32> -> vector<8x1xf32>
    %190 = vector.broadcast %189 : vector<8x1xf32> to vector<8x8xf32>
    %191 = arith.mulf %186, %190 : vector<8x8xf32>
    %cst_55 = arith.constant dense<0.000000e+00> : vector<8x8xf32>
    %192 = tpu.matmul %191, %176, %cst_55 {dimension_numbers = #tpu.dot_dimension_numbers<[1], [0], [0], [1], [0, 0, 1, 1], [], []>} : vector<8x8xf32>, vector<8x8xf32>, vector<8x8xf32> -> vector<8x8xf32>
    %193 = tpu.concatenate %135, %154, %173, %192 in 1 : vector<8x8xf32>, vector<8x8xf32>, vector<8x8xf32>, vector<8x8xf32> -> vector<8x32xf32>
    %194 = tpu.concatenate %112, %193 in 0 : vector<8x32xf32>, vector<8x32xf32> -> vector<16x32xf32>
    %c0_56 = arith.constant 0 : index
    %c0_57 = arith.constant 0 : index
    %195 = vector.load %arg7[%c0_56, %c0_57] : memref<32x32xf32, #tpu.memory_space<vmem>>, vector<32x32xf32>
    %cst_58 = arith.constant dense<0.000000e+00> : vector<16x32xf32>
    %196 = tpu.matmul %194, %195, %cst_58 {dimension_numbers = #tpu.dot_dimension_numbers<[1], [0], [0], [1], [0, 0, 1, 1], [], []>} : vector<16x32xf32>, vector<32x32xf32>, vector<16x32xf32> -> vector<16x32xf32>
    %c0_59 = arith.constant 0 : index
    %c0_60 = arith.constant 0 : index
    %197 = vector.load %arg8[%c0_59, %c0_60] : memref<1x32xf32, #tpu.memory_space<vmem>>, vector<1x32xf32>
    %198 = vector.broadcast %197 : vector<1x32xf32> to vector<16x32xf32>
    %199 = arith.addf %196, %198 : vector<16x32xf32>
    %200 = arith.addf %199, %22 : vector<16x32xf32>
    %c0_61 = arith.constant 0 : index
    %c0_62 = arith.constant 0 : index
    %201 = vector.load %arg9[%c0_61, %c0_62] : memref<1x32xf32, #tpu.memory_space<vmem>>, vector<1x32xf32>
    %c0_63 = arith.constant 0 : index
    %c0_64 = arith.constant 0 : index
    %202 = vector.load %arg10[%c0_63, %c0_64] : memref<1x32xf32, #tpu.memory_space<vmem>>, vector<1x32xf32>
    %cst_65 = arith.constant dense<0.000000e+00> : vector<16xf32>
    %203 = vector.multi_reduction <add>, %200, %cst_65 [1] : vector<16x32xf32> to vector<16xf32>
    %204 = vector.shape_cast %203 : vector<16xf32> to vector<16x1xf32>
    %cst_66 = arith.constant 3.200000e+01 : f32
    %205 = vector.broadcast %cst_66 : f32 to vector<16x1xf32>
    %206 = arith.divf %204, %205 : vector<16x1xf32>
    %207 = vector.broadcast %206 : vector<16x1xf32> to vector<16x32xf32>
    %208 = arith.subf %200, %207 : vector<16x32xf32>
    %209 = arith.mulf %208, %208 : vector<16x32xf32>
    %cst_67 = arith.constant dense<0.000000e+00> : vector<16xf32>
    %210 = vector.multi_reduction <add>, %209, %cst_67 [1] : vector<16x32xf32> to vector<16xf32>
    %211 = vector.shape_cast %210 : vector<16xf32> to vector<16x1xf32>
    %cst_68 = arith.constant 3.200000e+01 : f32
    %212 = vector.broadcast %cst_68 : f32 to vector<16x1xf32>
    %213 = arith.divf %211, %212 : vector<16x1xf32>
    %cst_69 = arith.constant 9.99999974E-6 : f32
    %214 = vector.broadcast %cst_69 : f32 to vector<16x1xf32>
    %215 = arith.addf %213, %214 : vector<16x1xf32>
    %216 = math.rsqrt %215 : vector<16x1xf32>
    %217 = vector.broadcast %216 : vector<16x1xf32> to vector<16x32xf32>
    %218 = arith.mulf %208, %217 : vector<16x32xf32>
    %219 = vector.broadcast %201 : vector<1x32xf32> to vector<16x32xf32>
    %220 = arith.mulf %218, %219 : vector<16x32xf32>
    %221 = vector.broadcast %202 : vector<1x32xf32> to vector<16x32xf32>
    %222 = arith.addf %220, %221 : vector<16x32xf32>
    %c0_70 = arith.constant 0 : index
    %c0_71 = arith.constant 0 : index
    %223 = vector.load %arg11[%c0_70, %c0_71] : memref<32x128xf32, #tpu.memory_space<vmem>>, vector<32x128xf32>
    %cst_72 = arith.constant dense<0.000000e+00> : vector<16x128xf32>
    %224 = tpu.matmul %222, %223, %cst_72 {dimension_numbers = #tpu.dot_dimension_numbers<[1], [0], [0], [1], [0, 0, 1, 1], [], []>} : vector<16x32xf32>, vector<32x128xf32>, vector<16x128xf32> -> vector<16x128xf32>
    %c0_73 = arith.constant 0 : index
    %c0_74 = arith.constant 0 : index
    %225 = vector.load %arg12[%c0_73, %c0_74] : memref<1x128xf32, #tpu.memory_space<vmem>>, vector<1x128xf32>
    %226 = vector.broadcast %225 : vector<1x128xf32> to vector<16x128xf32>
    %227 = arith.addf %224, %226 : vector<16x128xf32>
    %cst_75 = arith.constant 0.000000e+00 : f32
    %228 = vector.broadcast %cst_75 : f32 to vector<16x128xf32>
    %229 = arith.maximumf %227, %228 : vector<16x128xf32>
    %c0_76 = arith.constant 0 : index
    %c0_77 = arith.constant 0 : index
    %230 = vector.load %arg13[%c0_76, %c0_77] : memref<128x32xf32, #tpu.memory_space<vmem>>, vector<128x32xf32>
    %cst_78 = arith.constant dense<0.000000e+00> : vector<16x32xf32>
    %231 = tpu.matmul %229, %230, %cst_78 {dimension_numbers = #tpu.dot_dimension_numbers<[1], [0], [0], [1], [0, 0, 1, 1], [], []>} : vector<16x128xf32>, vector<128x32xf32>, vector<16x32xf32> -> vector<16x32xf32>
    %c0_79 = arith.constant 0 : index
    %c0_80 = arith.constant 0 : index
    %232 = vector.load %arg14[%c0_79, %c0_80] : memref<1x32xf32, #tpu.memory_space<vmem>>, vector<1x32xf32>
    %233 = vector.broadcast %232 : vector<1x32xf32> to vector<16x32xf32>
    %234 = arith.addf %231, %233 : vector<16x32xf32>
    %235 = arith.addf %234, %222 : vector<16x32xf32>
    %c0_81 = arith.constant 0 : index
    %c0_82 = arith.constant 0 : index
    %236 = vector.load %arg15[%c0_81, %c0_82] : memref<1x32xf32, #tpu.memory_space<vmem>>, vector<1x32xf32>
    %c0_83 = arith.constant 0 : index
    %c0_84 = arith.constant 0 : index
    %237 = vector.load %arg16[%c0_83, %c0_84] : memref<1x32xf32, #tpu.memory_space<vmem>>, vector<1x32xf32>
    %cst_85 = arith.constant dense<0.000000e+00> : vector<16xf32>
    %238 = vector.multi_reduction <add>, %235, %cst_85 [1] : vector<16x32xf32> to vector<16xf32>
    %239 = vector.shape_cast %238 : vector<16xf32> to vector<16x1xf32>
    %cst_86 = arith.constant 3.200000e+01 : f32
    %240 = vector.broadcast %cst_86 : f32 to vector<16x1xf32>
    %241 = arith.divf %239, %240 : vector<16x1xf32>
    %242 = vector.broadcast %241 : vector<16x1xf32> to vector<16x32xf32>
    %243 = arith.subf %235, %242 : vector<16x32xf32>
    %244 = arith.mulf %243, %243 : vector<16x32xf32>
    %cst_87 = arith.constant dense<0.000000e+00> : vector<16xf32>
    %245 = vector.multi_reduction <add>, %244, %cst_87 [1] : vector<16x32xf32> to vector<16xf32>
    %246 = vector.shape_cast %245 : vector<16xf32> to vector<16x1xf32>
    %cst_88 = arith.constant 3.200000e+01 : f32
    %247 = vector.broadcast %cst_88 : f32 to vector<16x1xf32>
    %248 = arith.divf %246, %247 : vector<16x1xf32>
    %cst_89 = arith.constant 9.99999974E-6 : f32
    %249 = vector.broadcast %cst_89 : f32 to vector<16x1xf32>
    %250 = arith.addf %248, %249 : vector<16x1xf32>
    %251 = math.rsqrt %250 : vector<16x1xf32>
    %252 = vector.broadcast %251 : vector<16x1xf32> to vector<16x32xf32>
    %253 = arith.mulf %243, %252 : vector<16x32xf32>
    %254 = vector.broadcast %236 : vector<1x32xf32> to vector<16x32xf32>
    %255 = arith.mulf %253, %254 : vector<16x32xf32>
    %256 = vector.broadcast %237 : vector<1x32xf32> to vector<16x32xf32>
    %257 = arith.addf %255, %256 : vector<16x32xf32>
    %c0_90 = arith.constant 0 : index
    %c0_91 = arith.constant 0 : index
    %258 = vector.load %arg17[%c0_90, %c0_91] : memref<32x96xf32, #tpu.memory_space<vmem>>, vector<32x96xf32>
    %cst_92 = arith.constant dense<0.000000e+00> : vector<16x96xf32>
    %259 = tpu.matmul %257, %258, %cst_92 {dimension_numbers = #tpu.dot_dimension_numbers<[1], [0], [0], [1], [0, 0, 1, 1], [], []>} : vector<16x32xf32>, vector<32x96xf32>, vector<16x96xf32> -> vector<16x96xf32>
    %c0_93 = arith.constant 0 : index
    %c0_94 = arith.constant 0 : index
    %260 = vector.load %arg18[%c0_93, %c0_94] : memref<1x96xf32, #tpu.memory_space<vmem>>, vector<1x96xf32>
    %261 = vector.broadcast %260 : vector<1x96xf32> to vector<16x96xf32>
    %262 = arith.addf %259, %261 : vector<16x96xf32>
    %263 = vector.extract_strided_slice %262 {offsets = [0, 0], sizes = [16, 32], strides = [1, 1]} : vector<16x96xf32> to vector<16x32xf32>
    %264 = vector.extract_strided_slice %262 {offsets = [0, 32], sizes = [16, 32], strides = [1, 1]} : vector<16x96xf32> to vector<16x32xf32>
    %265 = vector.extract_strided_slice %262 {offsets = [0, 64], sizes = [16, 32], strides = [1, 1]} : vector<16x96xf32> to vector<16x32xf32>
    %266 = vector.extract_strided_slice %23 {offsets = [0, 0], sizes = [1, 8], strides = [1, 1]} : vector<2x8xf32> to vector<1x8xf32>
    %267 = vector.extract_strided_slice %263 {offsets = [0, 0], sizes = [8, 32], strides = [1, 1]} : vector<16x32xf32> to vector<8x32xf32>
    %268 = vector.extract_strided_slice %264 {offsets = [0, 0], sizes = [8, 32], strides = [1, 1]} : vector<16x32xf32> to vector<8x32xf32>
    %269 = vector.extract_strided_slice %265 {offsets = [0, 0], sizes = [8, 32], strides = [1, 1]} : vector<16x32xf32> to vector<8x32xf32>
    %270 = vector.extract_strided_slice %267 {offsets = [0, 0], sizes = [8, 8], strides = [1, 1]} : vector<8x32xf32> to vector<8x8xf32>
    %271 = vector.extract_strided_slice %268 {offsets = [0, 0], sizes = [8, 8], strides = [1, 1]} : vector<8x32xf32> to vector<8x8xf32>
    %272 = vector.extract_strided_slice %269 {offsets = [0, 0], sizes = [8, 8], strides = [1, 1]} : vector<8x32xf32> to vector<8x8xf32>
    %cst_95 = arith.constant dense<0.000000e+00> : vector<8x8xf32>
    %273 = tpu.matmul %270, %271, %cst_95 {dimension_numbers = #tpu.dot_dimension_numbers<[1], [1], [0], [0], [0, 0, 1, 0], [], []>} : vector<8x8xf32>, vector<8x8xf32>, vector<8x8xf32> -> vector<8x8xf32>
    %cst_96 = arith.constant 0.353553385 : f32
    %274 = vector.broadcast %cst_96 : f32 to vector<8x8xf32>
    %275 = arith.mulf %273, %274 : vector<8x8xf32>
    %276 = vector.broadcast %266 : vector<1x8xf32> to vector<8x8xf32>
    %277 = arith.addf %275, %276 : vector<8x8xf32>
    %cst_97 = arith.constant dense<0xFF800000> : vector<8xf32>
    %278 = vector.multi_reduction <maximumf>, %277, %cst_97 [1] : vector<8x8xf32> to vector<8xf32>
    %279 = vector.shape_cast %278 : vector<8xf32> to vector<8x1xf32>
    %280 = vector.broadcast %279 : vector<8x1xf32> to vector<8x8xf32>
    %281 = arith.subf %277, %280 : vector<8x8xf32>
    %282 = math.exp %281 : vector<8x8xf32>
    %cst_98 = arith.constant dense<0.000000e+00> : vector<8xf32>
    %283 = vector.multi_reduction <add>, %282, %cst_98 [1] : vector<8x8xf32> to vector<8xf32>
    %284 = vector.shape_cast %283 : vector<8xf32> to vector<8x1xf32>
    %285 = tpu.reciprocal %284 {approx = true} : vector<8x1xf32> -> vector<8x1xf32>
    %286 = vector.broadcast %285 : vector<8x1xf32> to vector<8x8xf32>
    %287 = arith.mulf %282, %286 : vector<8x8xf32>
    %cst_99 = arith.constant dense<0.000000e+00> : vector<8x8xf32>
    %288 = tpu.matmul %287, %272, %cst_99 {dimension_numbers = #tpu.dot_dimension_numbers<[1], [0], [0], [1], [0, 0, 1, 1], [], []>} : vector<8x8xf32>, vector<8x8xf32>, vector<8x8xf32> -> vector<8x8xf32>
    %289 = vector.extract_strided_slice %267 {offsets = [0, 8], sizes = [8, 8], strides = [1, 1]} : vector<8x32xf32> to vector<8x8xf32>
    %290 = vector.extract_strided_slice %268 {offsets = [0, 8], sizes = [8, 8], strides = [1, 1]} : vector<8x32xf32> to vector<8x8xf32>
    %291 = vector.extract_strided_slice %269 {offsets = [0, 8], sizes = [8, 8], strides = [1, 1]} : vector<8x32xf32> to vector<8x8xf32>
    %cst_100 = arith.constant dense<0.000000e+00> : vector<8x8xf32>
    %292 = tpu.matmul %289, %290, %cst_100 {dimension_numbers = #tpu.dot_dimension_numbers<[1], [1], [0], [0], [0, 0, 1, 0], [], []>} : vector<8x8xf32>, vector<8x8xf32>, vector<8x8xf32> -> vector<8x8xf32>
    %cst_101 = arith.constant 0.353553385 : f32
    %293 = vector.broadcast %cst_101 : f32 to vector<8x8xf32>
    %294 = arith.mulf %292, %293 : vector<8x8xf32>
    %295 = vector.broadcast %266 : vector<1x8xf32> to vector<8x8xf32>
    %296 = arith.addf %294, %295 : vector<8x8xf32>
    %cst_102 = arith.constant dense<0xFF800000> : vector<8xf32>
    %297 = vector.multi_reduction <maximumf>, %296, %cst_102 [1] : vector<8x8xf32> to vector<8xf32>
    %298 = vector.shape_cast %297 : vector<8xf32> to vector<8x1xf32>
    %299 = vector.broadcast %298 : vector<8x1xf32> to vector<8x8xf32>
    %300 = arith.subf %296, %299 : vector<8x8xf32>
    %301 = math.exp %300 : vector<8x8xf32>
    %cst_103 = arith.constant dense<0.000000e+00> : vector<8xf32>
    %302 = vector.multi_reduction <add>, %301, %cst_103 [1] : vector<8x8xf32> to vector<8xf32>
    %303 = vector.shape_cast %302 : vector<8xf32> to vector<8x1xf32>
    %304 = tpu.reciprocal %303 {approx = true} : vector<8x1xf32> -> vector<8x1xf32>
    %305 = vector.broadcast %304 : vector<8x1xf32> to vector<8x8xf32>
    %306 = arith.mulf %301, %305 : vector<8x8xf32>
    %cst_104 = arith.constant dense<0.000000e+00> : vector<8x8xf32>
    %307 = tpu.matmul %306, %291, %cst_104 {dimension_numbers = #tpu.dot_dimension_numbers<[1], [0], [0], [1], [0, 0, 1, 1], [], []>} : vector<8x8xf32>, vector<8x8xf32>, vector<8x8xf32> -> vector<8x8xf32>
    %308 = vector.extract_strided_slice %267 {offsets = [0, 16], sizes = [8, 8], strides = [1, 1]} : vector<8x32xf32> to vector<8x8xf32>
    %309 = vector.extract_strided_slice %268 {offsets = [0, 16], sizes = [8, 8], strides = [1, 1]} : vector<8x32xf32> to vector<8x8xf32>
    %310 = vector.extract_strided_slice %269 {offsets = [0, 16], sizes = [8, 8], strides = [1, 1]} : vector<8x32xf32> to vector<8x8xf32>
    %cst_105 = arith.constant dense<0.000000e+00> : vector<8x8xf32>
    %311 = tpu.matmul %308, %309, %cst_105 {dimension_numbers = #tpu.dot_dimension_numbers<[1], [1], [0], [0], [0, 0, 1, 0], [], []>} : vector<8x8xf32>, vector<8x8xf32>, vector<8x8xf32> -> vector<8x8xf32>
    %cst_106 = arith.constant 0.353553385 : f32
    %312 = vector.broadcast %cst_106 : f32 to vector<8x8xf32>
    %313 = arith.mulf %311, %312 : vector<8x8xf32>
    %314 = vector.broadcast %266 : vector<1x8xf32> to vector<8x8xf32>
    %315 = arith.addf %313, %314 : vector<8x8xf32>
    %cst_107 = arith.constant dense<0xFF800000> : vector<8xf32>
    %316 = vector.multi_reduction <maximumf>, %315, %cst_107 [1] : vector<8x8xf32> to vector<8xf32>
    %317 = vector.shape_cast %316 : vector<8xf32> to vector<8x1xf32>
    %318 = vector.broadcast %317 : vector<8x1xf32> to vector<8x8xf32>
    %319 = arith.subf %315, %318 : vector<8x8xf32>
    %320 = math.exp %319 : vector<8x8xf32>
    %cst_108 = arith.constant dense<0.000000e+00> : vector<8xf32>
    %321 = vector.multi_reduction <add>, %320, %cst_108 [1] : vector<8x8xf32> to vector<8xf32>
    %322 = vector.shape_cast %321 : vector<8xf32> to vector<8x1xf32>
    %323 = tpu.reciprocal %322 {approx = true} : vector<8x1xf32> -> vector<8x1xf32>
    %324 = vector.broadcast %323 : vector<8x1xf32> to vector<8x8xf32>
    %325 = arith.mulf %320, %324 : vector<8x8xf32>
    %cst_109 = arith.constant dense<0.000000e+00> : vector<8x8xf32>
    %326 = tpu.matmul %325, %310, %cst_109 {dimension_numbers = #tpu.dot_dimension_numbers<[1], [0], [0], [1], [0, 0, 1, 1], [], []>} : vector<8x8xf32>, vector<8x8xf32>, vector<8x8xf32> -> vector<8x8xf32>
    %327 = vector.extract_strided_slice %267 {offsets = [0, 24], sizes = [8, 8], strides = [1, 1]} : vector<8x32xf32> to vector<8x8xf32>
    %328 = vector.extract_strided_slice %268 {offsets = [0, 24], sizes = [8, 8], strides = [1, 1]} : vector<8x32xf32> to vector<8x8xf32>
    %329 = vector.extract_strided_slice %269 {offsets = [0, 24], sizes = [8, 8], strides = [1, 1]} : vector<8x32xf32> to vector<8x8xf32>
    %cst_110 = arith.constant dense<0.000000e+00> : vector<8x8xf32>
    %330 = tpu.matmul %327, %328, %cst_110 {dimension_numbers = #tpu.dot_dimension_numbers<[1], [1], [0], [0], [0, 0, 1, 0], [], []>} : vector<8x8xf32>, vector<8x8xf32>, vector<8x8xf32> -> vector<8x8xf32>
    %cst_111 = arith.constant 0.353553385 : f32
    %331 = vector.broadcast %cst_111 : f32 to vector<8x8xf32>
    %332 = arith.mulf %330, %331 : vector<8x8xf32>
    %333 = vector.broadcast %266 : vector<1x8xf32> to vector<8x8xf32>
    %334 = arith.addf %332, %333 : vector<8x8xf32>
    %cst_112 = arith.constant dense<0xFF800000> : vector<8xf32>
    %335 = vector.multi_reduction <maximumf>, %334, %cst_112 [1] : vector<8x8xf32> to vector<8xf32>
    %336 = vector.shape_cast %335 : vector<8xf32> to vector<8x1xf32>
    %337 = vector.broadcast %336 : vector<8x1xf32> to vector<8x8xf32>
    %338 = arith.subf %334, %337 : vector<8x8xf32>
    %339 = math.exp %338 : vector<8x8xf32>
    %cst_113 = arith.constant dense<0.000000e+00> : vector<8xf32>
    %340 = vector.multi_reduction <add>, %339, %cst_113 [1] : vector<8x8xf32> to vector<8xf32>
    %341 = vector.shape_cast %340 : vector<8xf32> to vector<8x1xf32>
    %342 = tpu.reciprocal %341 {approx = true} : vector<8x1xf32> -> vector<8x1xf32>
    %343 = vector.broadcast %342 : vector<8x1xf32> to vector<8x8xf32>
    %344 = arith.mulf %339, %343 : vector<8x8xf32>
    %cst_114 = arith.constant dense<0.000000e+00> : vector<8x8xf32>
    %345 = tpu.matmul %344, %329, %cst_114 {dimension_numbers = #tpu.dot_dimension_numbers<[1], [0], [0], [1], [0, 0, 1, 1], [], []>} : vector<8x8xf32>, vector<8x8xf32>, vector<8x8xf32> -> vector<8x8xf32>
    %346 = tpu.concatenate %288, %307, %326, %345 in 1 : vector<8x8xf32>, vector<8x8xf32>, vector<8x8xf32>, vector<8x8xf32> -> vector<8x32xf32>
    %347 = vector.extract_strided_slice %23 {offsets = [1, 0], sizes = [1, 8], strides = [1, 1]} : vector<2x8xf32> to vector<1x8xf32>
    %348 = vector.extract_strided_slice %263 {offsets = [8, 0], sizes = [8, 32], strides = [1, 1]} : vector<16x32xf32> to vector<8x32xf32>
    %349 = vector.extract_strided_slice %264 {offsets = [8, 0], sizes = [8, 32], strides = [1, 1]} : vector<16x32xf32> to vector<8x32xf32>
    %350 = vector.extract_strided_slice %265 {offsets = [8, 0], sizes = [8, 32], strides = [1, 1]} : vector<16x32xf32> to vector<8x32xf32>
    %351 = vector.extract_strided_slice %348 {offsets = [0, 0], sizes = [8, 8], strides = [1, 1]} : vector<8x32xf32> to vector<8x8xf32>
    %352 = vector.extract_strided_slice %349 {offsets = [0, 0], sizes = [8, 8], strides = [1, 1]} : vector<8x32xf32> to vector<8x8xf32>
    %353 = vector.extract_strided_slice %350 {offsets = [0, 0], sizes = [8, 8], strides = [1, 1]} : vector<8x32xf32> to vector<8x8xf32>
    %cst_115 = arith.constant dense<0.000000e+00> : vector<8x8xf32>
    %354 = tpu.matmul %351, %352, %cst_115 {dimension_numbers = #tpu.dot_dimension_numbers<[1], [1], [0], [0], [0, 0, 1, 0], [], []>} : vector<8x8xf32>, vector<8x8xf32>, vector<8x8xf32> -> vector<8x8xf32>
    %cst_116 = arith.constant 0.353553385 : f32
    %355 = vector.broadcast %cst_116 : f32 to vector<8x8xf32>
    %356 = arith.mulf %354, %355 : vector<8x8xf32>
    %357 = vector.broadcast %347 : vector<1x8xf32> to vector<8x8xf32>
    %358 = arith.addf %356, %357 : vector<8x8xf32>
    %cst_117 = arith.constant dense<0xFF800000> : vector<8xf32>
    %359 = vector.multi_reduction <maximumf>, %358, %cst_117 [1] : vector<8x8xf32> to vector<8xf32>
    %360 = vector.shape_cast %359 : vector<8xf32> to vector<8x1xf32>
    %361 = vector.broadcast %360 : vector<8x1xf32> to vector<8x8xf32>
    %362 = arith.subf %358, %361 : vector<8x8xf32>
    %363 = math.exp %362 : vector<8x8xf32>
    %cst_118 = arith.constant dense<0.000000e+00> : vector<8xf32>
    %364 = vector.multi_reduction <add>, %363, %cst_118 [1] : vector<8x8xf32> to vector<8xf32>
    %365 = vector.shape_cast %364 : vector<8xf32> to vector<8x1xf32>
    %366 = tpu.reciprocal %365 {approx = true} : vector<8x1xf32> -> vector<8x1xf32>
    %367 = vector.broadcast %366 : vector<8x1xf32> to vector<8x8xf32>
    %368 = arith.mulf %363, %367 : vector<8x8xf32>
    %cst_119 = arith.constant dense<0.000000e+00> : vector<8x8xf32>
    %369 = tpu.matmul %368, %353, %cst_119 {dimension_numbers = #tpu.dot_dimension_numbers<[1], [0], [0], [1], [0, 0, 1, 1], [], []>} : vector<8x8xf32>, vector<8x8xf32>, vector<8x8xf32> -> vector<8x8xf32>
    %370 = vector.extract_strided_slice %348 {offsets = [0, 8], sizes = [8, 8], strides = [1, 1]} : vector<8x32xf32> to vector<8x8xf32>
    %371 = vector.extract_strided_slice %349 {offsets = [0, 8], sizes = [8, 8], strides = [1, 1]} : vector<8x32xf32> to vector<8x8xf32>
    %372 = vector.extract_strided_slice %350 {offsets = [0, 8], sizes = [8, 8], strides = [1, 1]} : vector<8x32xf32> to vector<8x8xf32>
    %cst_120 = arith.constant dense<0.000000e+00> : vector<8x8xf32>
    %373 = tpu.matmul %370, %371, %cst_120 {dimension_numbers = #tpu.dot_dimension_numbers<[1], [1], [0], [0], [0, 0, 1, 0], [], []>} : vector<8x8xf32>, vector<8x8xf32>, vector<8x8xf32> -> vector<8x8xf32>
    %cst_121 = arith.constant 0.353553385 : f32
    %374 = vector.broadcast %cst_121 : f32 to vector<8x8xf32>
    %375 = arith.mulf %373, %374 : vector<8x8xf32>
    %376 = vector.broadcast %347 : vector<1x8xf32> to vector<8x8xf32>
    %377 = arith.addf %375, %376 : vector<8x8xf32>
    %cst_122 = arith.constant dense<0xFF800000> : vector<8xf32>
    %378 = vector.multi_reduction <maximumf>, %377, %cst_122 [1] : vector<8x8xf32> to vector<8xf32>
    %379 = vector.shape_cast %378 : vector<8xf32> to vector<8x1xf32>
    %380 = vector.broadcast %379 : vector<8x1xf32> to vector<8x8xf32>
    %381 = arith.subf %377, %380 : vector<8x8xf32>
    %382 = math.exp %381 : vector<8x8xf32>
    %cst_123 = arith.constant dense<0.000000e+00> : vector<8xf32>
    %383 = vector.multi_reduction <add>, %382, %cst_123 [1] : vector<8x8xf32> to vector<8xf32>
    %384 = vector.shape_cast %383 : vector<8xf32> to vector<8x1xf32>
    %385 = tpu.reciprocal %384 {approx = true} : vector<8x1xf32> -> vector<8x1xf32>
    %386 = vector.broadcast %385 : vector<8x1xf32> to vector<8x8xf32>
    %387 = arith.mulf %382, %386 : vector<8x8xf32>
    %cst_124 = arith.constant dense<0.000000e+00> : vector<8x8xf32>
    %388 = tpu.matmul %387, %372, %cst_124 {dimension_numbers = #tpu.dot_dimension_numbers<[1], [0], [0], [1], [0, 0, 1, 1], [], []>} : vector<8x8xf32>, vector<8x8xf32>, vector<8x8xf32> -> vector<8x8xf32>
    %389 = vector.extract_strided_slice %348 {offsets = [0, 16], sizes = [8, 8], strides = [1, 1]} : vector<8x32xf32> to vector<8x8xf32>
    %390 = vector.extract_strided_slice %349 {offsets = [0, 16], sizes = [8, 8], strides = [1, 1]} : vector<8x32xf32> to vector<8x8xf32>
    %391 = vector.extract_strided_slice %350 {offsets = [0, 16], sizes = [8, 8], strides = [1, 1]} : vector<8x32xf32> to vector<8x8xf32>
    %cst_125 = arith.constant dense<0.000000e+00> : vector<8x8xf32>
    %392 = tpu.matmul %389, %390, %cst_125 {dimension_numbers = #tpu.dot_dimension_numbers<[1], [1], [0], [0], [0, 0, 1, 0], [], []>} : vector<8x8xf32>, vector<8x8xf32>, vector<8x8xf32> -> vector<8x8xf32>
    %cst_126 = arith.constant 0.353553385 : f32
    %393 = vector.broadcast %cst_126 : f32 to vector<8x8xf32>
    %394 = arith.mulf %392, %393 : vector<8x8xf32>
    %395 = vector.broadcast %347 : vector<1x8xf32> to vector<8x8xf32>
    %396 = arith.addf %394, %395 : vector<8x8xf32>
    %cst_127 = arith.constant dense<0xFF800000> : vector<8xf32>
    %397 = vector.multi_reduction <maximumf>, %396, %cst_127 [1] : vector<8x8xf32> to vector<8xf32>
    %398 = vector.shape_cast %397 : vector<8xf32> to vector<8x1xf32>
    %399 = vector.broadcast %398 : vector<8x1xf32> to vector<8x8xf32>
    %400 = arith.subf %396, %399 : vector<8x8xf32>
    %401 = math.exp %400 : vector<8x8xf32>
    %cst_128 = arith.constant dense<0.000000e+00> : vector<8xf32>
    %402 = vector.multi_reduction <add>, %401, %cst_128 [1] : vector<8x8xf32> to vector<8xf32>
    %403 = vector.shape_cast %402 : vector<8xf32> to vector<8x1xf32>
    %404 = tpu.reciprocal %403 {approx = true} : vector<8x1xf32> -> vector<8x1xf32>
    %405 = vector.broadcast %404 : vector<8x1xf32> to vector<8x8xf32>
    %406 = arith.mulf %401, %405 : vector<8x8xf32>
    %cst_129 = arith.constant dense<0.000000e+00> : vector<8x8xf32>
    %407 = tpu.matmul %406, %391, %cst_129 {dimension_numbers = #tpu.dot_dimension_numbers<[1], [0], [0], [1], [0, 0, 1, 1], [], []>} : vector<8x8xf32>, vector<8x8xf32>, vector<8x8xf32> -> vector<8x8xf32>
    %408 = vector.extract_strided_slice %348 {offsets = [0, 24], sizes = [8, 8], strides = [1, 1]} : vector<8x32xf32> to vector<8x8xf32>
    %409 = vector.extract_strided_slice %349 {offsets = [0, 24], sizes = [8, 8], strides = [1, 1]} : vector<8x32xf32> to vector<8x8xf32>
    %410 = vector.extract_strided_slice %350 {offsets = [0, 24], sizes = [8, 8], strides = [1, 1]} : vector<8x32xf32> to vector<8x8xf32>
    %cst_130 = arith.constant dense<0.000000e+00> : vector<8x8xf32>
    %411 = tpu.matmul %408, %409, %cst_130 {dimension_numbers = #tpu.dot_dimension_numbers<[1], [1], [0], [0], [0, 0, 1, 0], [], []>} : vector<8x8xf32>, vector<8x8xf32>, vector<8x8xf32> -> vector<8x8xf32>
    %cst_131 = arith.constant 0.353553385 : f32
    %412 = vector.broadcast %cst_131 : f32 to vector<8x8xf32>
    %413 = arith.mulf %411, %412 : vector<8x8xf32>
    %414 = vector.broadcast %347 : vector<1x8xf32> to vector<8x8xf32>
    %415 = arith.addf %413, %414 : vector<8x8xf32>
    %cst_132 = arith.constant dense<0xFF800000> : vector<8xf32>
    %416 = vector.multi_reduction <maximumf>, %415, %cst_132 [1] : vector<8x8xf32> to vector<8xf32>
    %417 = vector.shape_cast %416 : vector<8xf32> to vector<8x1xf32>
    %418 = vector.broadcast %417 : vector<8x1xf32> to vector<8x8xf32>
    %419 = arith.subf %415, %418 : vector<8x8xf32>
    %420 = math.exp %419 : vector<8x8xf32>
    %cst_133 = arith.constant dense<0.000000e+00> : vector<8xf32>
    %421 = vector.multi_reduction <add>, %420, %cst_133 [1] : vector<8x8xf32> to vector<8xf32>
    %422 = vector.shape_cast %421 : vector<8xf32> to vector<8x1xf32>
    %423 = tpu.reciprocal %422 {approx = true} : vector<8x1xf32> -> vector<8x1xf32>
    %424 = vector.broadcast %423 : vector<8x1xf32> to vector<8x8xf32>
    %425 = arith.mulf %420, %424 : vector<8x8xf32>
    %cst_134 = arith.constant dense<0.000000e+00> : vector<8x8xf32>
    %426 = tpu.matmul %425, %410, %cst_134 {dimension_numbers = #tpu.dot_dimension_numbers<[1], [0], [0], [1], [0, 0, 1, 1], [], []>} : vector<8x8xf32>, vector<8x8xf32>, vector<8x8xf32> -> vector<8x8xf32>
    %427 = tpu.concatenate %369, %388, %407, %426 in 1 : vector<8x8xf32>, vector<8x8xf32>, vector<8x8xf32>, vector<8x8xf32> -> vector<8x32xf32>
    %428 = tpu.concatenate %346, %427 in 0 : vector<8x32xf32>, vector<8x32xf32> -> vector<16x32xf32>
    %c0_135 = arith.constant 0 : index
    %c0_136 = arith.constant 0 : index
    %429 = vector.load %arg19[%c0_135, %c0_136] : memref<32x32xf32, #tpu.memory_space<vmem>>, vector<32x32xf32>
    %cst_137 = arith.constant dense<0.000000e+00> : vector<16x32xf32>
    %430 = tpu.matmul %428, %429, %cst_137 {dimension_numbers = #tpu.dot_dimension_numbers<[1], [0], [0], [1], [0, 0, 1, 1], [], []>} : vector<16x32xf32>, vector<32x32xf32>, vector<16x32xf32> -> vector<16x32xf32>
    %c0_138 = arith.constant 0 : index
    %c0_139 = arith.constant 0 : index
    %431 = vector.load %arg20[%c0_138, %c0_139] : memref<1x32xf32, #tpu.memory_space<vmem>>, vector<1x32xf32>
    %432 = vector.broadcast %431 : vector<1x32xf32> to vector<16x32xf32>
    %433 = arith.addf %430, %432 : vector<16x32xf32>
    %434 = arith.addf %433, %257 : vector<16x32xf32>
    %c0_140 = arith.constant 0 : index
    %c0_141 = arith.constant 0 : index
    %435 = vector.load %arg21[%c0_140, %c0_141] : memref<1x32xf32, #tpu.memory_space<vmem>>, vector<1x32xf32>
    %c0_142 = arith.constant 0 : index
    %c0_143 = arith.constant 0 : index
    %436 = vector.load %arg22[%c0_142, %c0_143] : memref<1x32xf32, #tpu.memory_space<vmem>>, vector<1x32xf32>
    %cst_144 = arith.constant dense<0.000000e+00> : vector<16xf32>
    %437 = vector.multi_reduction <add>, %434, %cst_144 [1] : vector<16x32xf32> to vector<16xf32>
    %438 = vector.shape_cast %437 : vector<16xf32> to vector<16x1xf32>
    %cst_145 = arith.constant 3.200000e+01 : f32
    %439 = vector.broadcast %cst_145 : f32 to vector<16x1xf32>
    %440 = arith.divf %438, %439 : vector<16x1xf32>
    %441 = vector.broadcast %440 : vector<16x1xf32> to vector<16x32xf32>
    %442 = arith.subf %434, %441 : vector<16x32xf32>
    %443 = arith.mulf %442, %442 : vector<16x32xf32>
    %cst_146 = arith.constant dense<0.000000e+00> : vector<16xf32>
    %444 = vector.multi_reduction <add>, %443, %cst_146 [1] : vector<16x32xf32> to vector<16xf32>
    %445 = vector.shape_cast %444 : vector<16xf32> to vector<16x1xf32>
    %cst_147 = arith.constant 3.200000e+01 : f32
    %446 = vector.broadcast %cst_147 : f32 to vector<16x1xf32>
    %447 = arith.divf %445, %446 : vector<16x1xf32>
    %cst_148 = arith.constant 9.99999974E-6 : f32
    %448 = vector.broadcast %cst_148 : f32 to vector<16x1xf32>
    %449 = arith.addf %447, %448 : vector<16x1xf32>
    %450 = math.rsqrt %449 : vector<16x1xf32>
    %451 = vector.broadcast %450 : vector<16x1xf32> to vector<16x32xf32>
    %452 = arith.mulf %442, %451 : vector<16x32xf32>
    %453 = vector.broadcast %435 : vector<1x32xf32> to vector<16x32xf32>
    %454 = arith.mulf %452, %453 : vector<16x32xf32>
    %455 = vector.broadcast %436 : vector<1x32xf32> to vector<16x32xf32>
    %456 = arith.addf %454, %455 : vector<16x32xf32>
    %c0_149 = arith.constant 0 : index
    %c0_150 = arith.constant 0 : index
    %457 = vector.load %arg23[%c0_149, %c0_150] : memref<32x128xf32, #tpu.memory_space<vmem>>, vector<32x128xf32>
    %cst_151 = arith.constant dense<0.000000e+00> : vector<16x128xf32>
    %458 = tpu.matmul %456, %457, %cst_151 {dimension_numbers = #tpu.dot_dimension_numbers<[1], [0], [0], [1], [0, 0, 1, 1], [], []>} : vector<16x32xf32>, vector<32x128xf32>, vector<16x128xf32> -> vector<16x128xf32>
    %c0_152 = arith.constant 0 : index
    %c0_153 = arith.constant 0 : index
    %459 = vector.load %arg24[%c0_152, %c0_153] : memref<1x128xf32, #tpu.memory_space<vmem>>, vector<1x128xf32>
    %460 = vector.broadcast %459 : vector<1x128xf32> to vector<16x128xf32>
    %461 = arith.addf %458, %460 : vector<16x128xf32>
    %cst_154 = arith.constant 0.000000e+00 : f32
    %462 = vector.broadcast %cst_154 : f32 to vector<16x128xf32>
    %463 = arith.maximumf %461, %462 : vector<16x128xf32>
    %c0_155 = arith.constant 0 : index
    %c0_156 = arith.constant 0 : index
    %464 = vector.load %arg25[%c0_155, %c0_156] : memref<128x32xf32, #tpu.memory_space<vmem>>, vector<128x32xf32>
    %cst_157 = arith.constant dense<0.000000e+00> : vector<16x32xf32>
    %465 = tpu.matmul %463, %464, %cst_157 {dimension_numbers = #tpu.dot_dimension_numbers<[1], [0], [0], [1], [0, 0, 1, 1], [], []>} : vector<16x128xf32>, vector<128x32xf32>, vector<16x32xf32> -> vector<16x32xf32>
    %c0_158 = arith.constant 0 : index
    %c0_159 = arith.constant 0 : index
    %466 = vector.load %arg26[%c0_158, %c0_159] : memref<1x32xf32, #tpu.memory_space<vmem>>, vector<1x32xf32>
    %467 = vector.broadcast %466 : vector<1x32xf32> to vector<16x32xf32>
    %468 = arith.addf %465, %467 : vector<16x32xf32>
    %469 = arith.addf %468, %456 : vector<16x32xf32>
    %c0_160 = arith.constant 0 : index
    %c0_161 = arith.constant 0 : index
    %470 = vector.load %arg27[%c0_160, %c0_161] : memref<1x32xf32, #tpu.memory_space<vmem>>, vector<1x32xf32>
    %c0_162 = arith.constant 0 : index
    %c0_163 = arith.constant 0 : index
    %471 = vector.load %arg28[%c0_162, %c0_163] : memref<1x32xf32, #tpu.memory_space<vmem>>, vector<1x32xf32>
    %cst_164 = arith.constant dense<0.000000e+00> : vector<16xf32>
    %472 = vector.multi_reduction <add>, %469, %cst_164 [1] : vector<16x32xf32> to vector<16xf32>
    %473 = vector.shape_cast %472 : vector<16xf32> to vector<16x1xf32>
    %cst_165 = arith.constant 3.200000e+01 : f32
    %474 = vector.broadcast %cst_165 : f32 to vector<16x1xf32>
    %475 = arith.divf %473, %474 : vector<16x1xf32>
    %476 = vector.broadcast %475 : vector<16x1xf32> to vector<16x32xf32>
    %477 = arith.subf %469, %476 : vector<16x32xf32>
    %478 = arith.mulf %477, %477 : vector<16x32xf32>
    %cst_166 = arith.constant dense<0.000000e+00> : vector<16xf32>
    %479 = vector.multi_reduction <add>, %478, %cst_166 [1] : vector<16x32xf32> to vector<16xf32>
    %480 = vector.shape_cast %479 : vector<16xf32> to vector<16x1xf32>
    %cst_167 = arith.constant 3.200000e+01 : f32
    %481 = vector.broadcast %cst_167 : f32 to vector<16x1xf32>
    %482 = arith.divf %480, %481 : vector<16x1xf32>
    %cst_168 = arith.constant 9.99999974E-6 : f32
    %483 = vector.broadcast %cst_168 : f32 to vector<16x1xf32>
    %484 = arith.addf %482, %483 : vector<16x1xf32>
    %485 = math.rsqrt %484 : vector<16x1xf32>
    %486 = vector.broadcast %485 : vector<16x1xf32> to vector<16x32xf32>
    %487 = arith.mulf %477, %486 : vector<16x32xf32>
    %488 = vector.broadcast %470 : vector<1x32xf32> to vector<16x32xf32>
    %489 = arith.mulf %487, %488 : vector<16x32xf32>
    %490 = vector.broadcast %471 : vector<1x32xf32> to vector<16x32xf32>
    %491 = arith.addf %489, %490 : vector<16x32xf32>
    %c0_169 = arith.constant 0 : index
    %c0_170 = arith.constant 0 : index
    %492 = vector.load %arg2[%c0_169, %c0_170] : memref<8x1xi32, #tpu.memory_space<vmem>>, vector<8x1xi32>
    %493 = tpu.iota {dimensions = array<i32: 1>} : vector<8x16xi32>
    %494 = vector.broadcast %492 : vector<8x1xi32> to vector<8x16xi32>
    %495 = arith.cmpi eq, %493, %494 : vector<8x16xi32>
    %cst_171 = arith.constant 1.000000e+00 : f32
    %cst_172 = arith.constant 0.000000e+00 : f32
    %496 = vector.broadcast %cst_171 : f32 to vector<8x16xf32>
    %497 = vector.broadcast %cst_172 : f32 to vector<8x16xf32>
    %498 = arith.select %495, %496, %497 : vector<8x16xi1>, vector<8x16xf32>
    %cst_173 = arith.constant dense<0.000000e+00> : vector<8x32xf32>
    %499 = tpu.matmul %498, %491, %cst_173 {dimension_numbers = #tpu.dot_dimension_numbers<[1], [0], [0], [1], [0, 0, 1, 1], [], []>} : vector<8x16xf32>, vector<16x32xf32>, vector<8x32xf32> -> vector<8x32xf32>
    %c0_174 = arith.constant 0 : index
    %c0_175 = arith.constant 0 : index
    %500 = vector.load %arg29[%c0_174, %c0_175] : memref<32x32xf32, #tpu.memory_space<vmem>>, vector<32x32xf32>
    %cst_176 = arith.constant dense<0.000000e+00> : vector<8x32xf32>
    %501 = tpu.matmul %499, %500, %cst_176 {dimension_numbers = #tpu.dot_dimension_numbers<[1], [0], [0], [1], [0, 0, 1, 1], [], []>} : vector<8x32xf32>, vector<32x32xf32>, vector<8x32xf32> -> vector<8x32xf32>
    %c0_177 = arith.constant 0 : index
    %c0_178 = arith.constant 0 : index
    %502 = vector.load %arg30[%c0_177, %c0_178] : memref<1x32xf32, #tpu.memory_space<vmem>>, vector<1x32xf32>
    %503 = vector.broadcast %502 : vector<1x32xf32> to vector<8x32xf32>
    %504 = arith.addf %501, %503 : vector<8x32xf32>
    %cst_179 = arith.constant 5.000000e-01 : f32
    %505 = vector.broadcast %cst_179 : f32 to vector<8x32xf32>
    %506 = arith.mulf %504, %505 : vector<8x32xf32>
    %cst_180 = arith.constant 0.707106769 : f32
    %507 = vector.broadcast %cst_180 : f32 to vector<8x32xf32>
    %508 = arith.mulf %504, %507 : vector<8x32xf32>
    %509 = math.absf %508 : vector<8x32xf32>
    %cst_181 = arith.constant 0.327591091 : f32
    %510 = vector.broadcast %cst_181 : f32 to vector<8x32xf32>
    %511 = arith.mulf %510, %509 : vector<8x32xf32>
    %cst_182 = arith.constant 1.000000e+00 : f32
    %512 = vector.broadcast %cst_182 : f32 to vector<8x32xf32>
    %513 = arith.addf %512, %511 : vector<8x32xf32>
    %cst_183 = arith.constant 1.000000e+00 : f32
    %514 = vector.broadcast %cst_183 : f32 to vector<8x32xf32>
    %515 = arith.divf %514, %513 : vector<8x32xf32>
    %cst_184 = arith.constant 1.06140542 : f32
    %516 = vector.broadcast %cst_184 : f32 to vector<8x32xf32>
    %517 = arith.mulf %515, %516 : vector<8x32xf32>
    %cst_185 = arith.constant -1.45315206 : f32
    %518 = vector.broadcast %cst_185 : f32 to vector<8x32xf32>
    %519 = arith.addf %518, %517 : vector<8x32xf32>
    %520 = arith.mulf %515, %519 : vector<8x32xf32>
    %cst_186 = arith.constant 1.42141378 : f32
    %521 = vector.broadcast %cst_186 : f32 to vector<8x32xf32>
    %522 = arith.addf %521, %520 : vector<8x32xf32>
    %523 = arith.mulf %515, %522 : vector<8x32xf32>
    %cst_187 = arith.constant -0.284496725 : f32
    %524 = vector.broadcast %cst_187 : f32 to vector<8x32xf32>
    %525 = arith.addf %524, %523 : vector<8x32xf32>
    %526 = arith.mulf %515, %525 : vector<8x32xf32>
    %cst_188 = arith.constant 0.254829586 : f32
    %527 = vector.broadcast %cst_188 : f32 to vector<8x32xf32>
    %528 = arith.addf %527, %526 : vector<8x32xf32>
    %529 = arith.mulf %515, %528 : vector<8x32xf32>
    %cst_189 = arith.constant 0.000000e+00 : f32
    %530 = vector.broadcast %cst_189 : f32 to vector<8x32xf32>
    %531 = arith.subf %530, %509 : vector<8x32xf32>
    %532 = arith.mulf %531, %509 : vector<8x32xf32>
    %533 = math.exp %532 : vector<8x32xf32>
    %534 = arith.mulf %529, %533 : vector<8x32xf32>
    %cst_190 = arith.constant 1.000000e+00 : f32
    %535 = vector.broadcast %cst_190 : f32 to vector<8x32xf32>
    %536 = arith.subf %535, %534 : vector<8x32xf32>
    %cst_191 = arith.constant 0.000000e+00 : f32
    %537 = vector.broadcast %cst_191 : f32 to vector<8x32xf32>
    %538 = arith.cmpf olt, %508, %537 : vector<8x32xf32>
    %cst_192 = arith.constant 0.000000e+00 : f32
    %539 = vector.broadcast %cst_192 : f32 to vector<8x32xf32>
    %540 = arith.subf %539, %536 : vector<8x32xf32>
    %541 = arith.select %538, %540, %536 : vector<8x32xi1>, vector<8x32xf32>
    %cst_193 = arith.constant 1.000000e+00 : f32
    %542 = vector.broadcast %cst_193 : f32 to vector<8x32xf32>
    %543 = arith.addf %542, %541 : vector<8x32xf32>
    %544 = arith.mulf %506, %543 : vector<8x32xf32>
    %c0_194 = arith.constant 0 : index
    %c0_195 = arith.constant 0 : index
    %545 = vector.load %arg31[%c0_194, %c0_195] : memref<1x32xf32, #tpu.memory_space<vmem>>, vector<1x32xf32>
    %c0_196 = arith.constant 0 : index
    %c0_197 = arith.constant 0 : index
    %546 = vector.load %arg32[%c0_196, %c0_197] : memref<1x32xf32, #tpu.memory_space<vmem>>, vector<1x32xf32>
    %cst_198 = arith.constant dense<0.000000e+00> : vector<8xf32>
    %547 = vector.multi_reduction <add>, %544, %cst_198 [1] : vector<8x32xf32> to vector<8xf32>
    %548 = vector.shape_cast %547 : vector<8xf32> to vector<8x1xf32>
    %cst_199 = arith.constant 3.200000e+01 : f32
    %549 = vector.broadcast %cst_199 : f32 to vector<8x1xf32>
    %550 = arith.divf %548, %549 : vector<8x1xf32>
    %551 = vector.broadcast %550 : vector<8x1xf32> to vector<8x32xf32>
    %552 = arith.subf %544, %551 : vector<8x32xf32>
    %553 = arith.mulf %552, %552 : vector<8x32xf32>
    %cst_200 = arith.constant dense<0.000000e+00> : vector<8xf32>
    %554 = vector.multi_reduction <add>, %553, %cst_200 [1] : vector<8x32xf32> to vector<8xf32>
    %555 = vector.shape_cast %554 : vector<8xf32> to vector<8x1xf32>
    %cst_201 = arith.constant 3.200000e+01 : f32
    %556 = vector.broadcast %cst_201 : f32 to vector<8x1xf32>
    %557 = arith.divf %555, %556 : vector<8x1xf32>
    %cst_202 = arith.constant 9.99999974E-6 : f32
    %558 = vector.broadcast %cst_202 : f32 to vector<8x1xf32>
    %559 = arith.addf %557, %558 : vector<8x1xf32>
    %560 = math.rsqrt %559 : vector<8x1xf32>
    %561 = vector.broadcast %560 : vector<8x1xf32> to vector<8x32xf32>
    %562 = arith.mulf %552, %561 : vector<8x32xf32>
    %563 = vector.broadcast %545 : vector<1x32xf32> to vector<8x32xf32>
    %564 = arith.mulf %562, %563 : vector<8x32xf32>
    %565 = vector.broadcast %546 : vector<1x32xf32> to vector<8x32xf32>
    %566 = arith.addf %564, %565 : vector<8x32xf32>
    %c0_203 = arith.constant 0 : index
    %c0_204 = arith.constant 0 : index
    %567 = vector.load %arg33[%c0_203, %c0_204] : memref<32x128xf32, #tpu.memory_space<vmem>>, vector<32x128xf32>
    %cst_205 = arith.constant dense<0.000000e+00> : vector<8x128xf32>
    %568 = tpu.matmul %566, %567, %cst_205 {dimension_numbers = #tpu.dot_dimension_numbers<[1], [0], [0], [1], [0, 0, 1, 1], [], []>} : vector<8x32xf32>, vector<32x128xf32>, vector<8x128xf32> -> vector<8x128xf32>
    %c0_206 = arith.constant 0 : index
    %c0_207 = arith.constant 0 : index
    %569 = vector.load %arg34[%c0_206, %c0_207] : memref<1x128xf32, #tpu.memory_space<vmem>>, vector<1x128xf32>
    %570 = vector.broadcast %569 : vector<1x128xf32> to vector<8x128xf32>
    %571 = arith.addf %568, %570 : vector<8x128xf32>
    %c0_208 = arith.constant 0 : index
    %c0_209 = arith.constant 0 : index
    %572 = vector.load %arg35[%c0_208, %c0_209] : memref<8x128xf32, #tpu.memory_space<vmem>>, vector<8x128xf32>
    tpu.vector_store %arg35[%c0_208, %c0_209], %571 {strides = array<i32>} : memref<8x128xf32, #tpu.memory_space<vmem>>, vector<8x128xf32>,
    return
  }
}

</mosaic_0001>

<llo_original>
// kernel: bert_forward.1
$region0: #{bert_forward.1}
  #allocation0 [shape = 'u32[]', space=smem, size = 0x4, offset = 0x4, fixed_abs, tag = 'smem constant byte address 0x4 - core index']
  #allocation1 [shape = 'u32[144,128]{1,0:T(1,128)}', space=vmem, size = 0x12000, scoped, tag = 'internal scratch']
  %s0 = inlined_call_operand.smem [shape: u32[36], index: -1, kind: input, shape index: {}]
  %s1 = sld [smem:[%s0]]
  %s2 = scalar_lea.smem %s0, 1
  %s3 = sld [smem:[%s2]]
  %s4 = scalar_lea.smem %s0, 2
  %s5 = sld [smem:[%s4]]
  %s6 = scalar_lea.smem %s0, 3
  %s7 = sld [smem:[%s6]]
  %s8 = scalar_lea.smem %s0, 4
  %s9 = sld [smem:[%s8]]
  %s10 = scalar_lea.smem %s0, 5
  %s11 = sld [smem:[%s10]]
  %s12 = scalar_lea.smem %s0, 6
  %s13 = sld [smem:[%s12]]
  %s14 = scalar_lea.smem %s0, 7
  %s15 = sld [smem:[%s14]]
  %s16 = scalar_lea.smem %s0, 8
  %s17 = sld [smem:[%s16]]
  %s18 = scalar_lea.smem %s0, 9
  %s19 = sld [smem:[%s18]]
  %s20 = scalar_lea.smem %s0, 10
  %s21 = sld [smem:[%s20]]
  %s22 = scalar_lea.smem %s0, 11
  %s23 = sld [smem:[%s22]]
  %s24 = scalar_lea.smem %s0, 12
  %s25 = sld [smem:[%s24]]
  %s26 = scalar_lea.smem %s0, 13
  %s27 = sld [smem:[%s26]]
  %s28 = scalar_lea.smem %s0, 14
  %s29 = sld [smem:[%s28]]
  %s30 = scalar_lea.smem %s0, 15
  %s31 = sld [smem:[%s30]]
  %s32 = scalar_lea.smem %s0, 16
  %s33 = sld [smem:[%s32]]
  %s34 = scalar_lea.smem %s0, 17
  %s35 = sld [smem:[%s34]]
  %s36 = scalar_lea.smem %s0, 18
  %s37 = sld [smem:[%s36]]
  %s38 = scalar_lea.smem %s0, 19
  %s39 = sld [smem:[%s38]]
  %s40 = scalar_lea.smem %s0, 20
  %s41 = sld [smem:[%s40]]
  %s42 = scalar_lea.smem %s0, 21
  %s43 = sld [smem:[%s42]]
  %s44 = scalar_lea.smem %s0, 22
  %s45 = sld [smem:[%s44]]
  %s46 = scalar_lea.smem %s0, 23
  %s47 = sld [smem:[%s46]]
  %s48 = scalar_lea.smem %s0, 24
  %s49 = sld [smem:[%s48]]
  %s50 = scalar_lea.smem %s0, 25
  %s51 = sld [smem:[%s50]]
  %s52 = scalar_lea.smem %s0, 26
  %s53 = sld [smem:[%s52]]
  %s54 = scalar_lea.smem %s0, 27
  %s55 = sld [smem:[%s54]]
  %s56 = scalar_lea.smem %s0, 28
  %s57 = sld [smem:[%s56]]
  %s58 = scalar_lea.smem %s0, 29
  %s59 = sld [smem:[%s58]]
  %s60 = scalar_lea.smem %s0, 30
  %s61 = sld [smem:[%s60]]
  %s62 = scalar_lea.smem %s0, 31
  %s63 = sld [smem:[%s62]]
  %s64 = scalar_lea.smem %s0, 32
  %s65 = sld [smem:[%s64]]
  %s66 = scalar_lea.smem %s0, 33
  %s67 = sld [smem:[%s66]]
  %s68 = scalar_lea.smem %s0, 34
  %s69 = sld [smem:[%s68]]
  %s70 = scalar_lea.smem %s0, 35
  %s71 = sld [smem:[%s70]]
  %s72 = sld [smem:[#allocation0]]
  $region150: #{bert_forward.1} parent=0
    _
  %s74 = ssub.s32 1, %s72
  %s75 = scalar_select 0, %s74, %s72
  $region1: #{bert_forward.1} parent=0
    #allocation2 [shape = 'u8[4096]{0}', space=vmem, size = 0x1000, scoped, tag = 'output window, operand 0, single buffered']
    #allocation3 [shape = 's32[1]{0}', space=sflag, size = 0x4, scoped, tag = 'scoped memory for bert_forward.1']
    %76 = vsyncpa [#allocation3], 0
    // Predicated region
    $region2: #{bert_forward.1} parent=1 // pred_check
      _
    $region3: #{bert_forward.1} parent=1 // pred_check_branch
      %78 = sbr.rel (0) target = $region5
    $region4: #{bert_forward.1} parent=1 // pred_region
      _
    $region5: #{bert_forward.1} parent=1 // pred_fallthru
      _
    // Predicated region
    $region6: #{bert_forward.1} parent=1 // pred_check
      _
    $region7: #{bert_forward.1} parent=1 // pred_check_branch
      %80 = sbr.rel (0) target = $region9
    $region8: #{bert_forward.1} parent=1 // pred_region
      _
    $region9: #{bert_forward.1} parent=1 // pred_fallthru
      _
    // Predicated region
    $region10: #{bert_forward.1} parent=1 // pred_check
      _
    $region11: #{bert_forward.1} parent=1 // pred_check_branch
      %82 = sbr.rel (0) target = $region13
    $region12: #{bert_forward.1} parent=1 // pred_region
      _
    $region13: #{bert_forward.1} parent=1 // pred_fallthru
      _
    // Predicated region
    $region14: #{bert_forward.1} parent=1 // pred_check
      _
    $region15: #{bert_forward.1} parent=1 // pred_check_branch
      %84 = sbr.rel (0) target = $region17
    $region16: #{bert_forward.1} parent=1 // pred_region
      _
    $region17: #{bert_forward.1} parent=1 // pred_fallthru
      _
    // Predicated region
    $region18: #{bert_forward.1} parent=1 // pred_check
      _
    $region19: #{bert_forward.1} parent=1 // pred_check_branch
      %86 = sbr.rel (0) target = $region21
    $region20: #{bert_forward.1} parent=1 // pred_region
      _
    $region21: #{bert_forward.1} parent=1 // pred_fallthru
      _
    // Predicated region
    $region22: #{bert_forward.1} parent=1 // pred_check
      _
    $region23: #{bert_forward.1} parent=1 // pred_check_branch
      %88 = sbr.rel (0) target = $region25
    $region24: #{bert_forward.1} parent=1 // pred_region
      _
    $region25: #{bert_forward.1} parent=1 // pred_fallthru
      _
    // Predicated region
    $region26: #{bert_forward.1} parent=1 // pred_check
      _
    $region27: #{bert_forward.1} parent=1 // pred_check_branch
      %90 = sbr.rel (0) target = $region29
    $region28: #{bert_forward.1} parent=1 // pred_region
      _
    $region29: #{bert_forward.1} parent=1 // pred_fallthru
      _
    // Predicated region
    $region30: #{bert_forward.1} parent=1 // pred_check
      _
    $region31: #{bert_forward.1} parent=1 // pred_check_branch
      %92 = sbr.rel (0) target = $region33
    $region32: #{bert_forward.1} parent=1 // pred_region
      _
    $region33: #{bert_forward.1} parent=1 // pred_fallthru
      _
    // Predicated region
    $region34: #{bert_forward.1} parent=1 // pred_check
      _
    $region35: #{bert_forward.1} parent=1 // pred_check_branch
      %94 = sbr.rel (0) target = $region37
    $region36: #{bert_forward.1} parent=1 // pred_region
      _
    $region37: #{bert_forward.1} parent=1 // pred_fallthru
      _
    // Predicated region
    $region38: #{bert_forward.1} parent=1 // pred_check
      _
    $region39: #{bert_forward.1} parent=1 // pred_check_branch
      %96 = sbr.rel (0) target = $region41
    $region40: #{bert_forward.1} parent=1 // pred_region
      _
    $region41: #{bert_forward.1} parent=1 // pred_fallthru
      _
    // Predicated region
    $region42: #{bert_forward.1} parent=1 // pred_check
      _
    $region43: #{bert_forward.1} parent=1 // pred_check_branch
      %98 = sbr.rel (0) target = $region45
    $region44: #{bert_forward.1} parent=1 // pred_region
      _
    $region45: #{bert_forward.1} parent=1 // pred_fallthru
      _
    // Predicated region
    $region46: #{bert_forward.1} parent=1 // pred_check
      _
    $region47: #{bert_forward.1} parent=1 // pred_check_branch
      %100 = sbr.rel (0) target = $region49
    $region48: #{bert_forward.1} parent=1 // pred_region
      _
    $region49: #{bert_forward.1} parent=1 // pred_fallthru
      _
    // Predicated region
    $region50: #{bert_forward.1} parent=1 // pred_check
      _
    $region51: #{bert_forward.1} parent=1 // pred_check_branch
      %102 = sbr.rel (0) target = $region53
    $region52: #{bert_forward.1} parent=1 // pred_region
      _
    $region53: #{bert_forward.1} parent=1 // pred_fallthru
      _
    // Predicated region
    $region54: #{bert_forward.1} parent=1 // pred_check
      _
    $region55: #{bert_forward.1} parent=1 // pred_check_branch
      %104 = sbr.rel (0) target = $region57
    $region56: #{bert_forward.1} parent=1 // pred_region
      _
    $region57: #{bert_forward.1} parent=1 // pred_fallthru
      _
    // Predicated region
    $region58: #{bert_forward.1} parent=1 // pred_check
      _
    $region59: #{bert_forward.1} parent=1 // pred_check_branch
      %106 = sbr.rel (0) target = $region61
    $region60: #{bert_forward.1} parent=1 // pred_region
      _
    $region61: #{bert_forward.1} parent=1 // pred_fallthru
      _
    // Predicated region
    $region62: #{bert_forward.1} parent=1 // pred_check
      _
    $region63: #{bert_forward.1} parent=1 // pred_check_branch
      %108 = sbr.rel (0) target = $region65
    $region64: #{bert_forward.1} parent=1 // pred_region
      _
    $region65: #{bert_forward.1} parent=1 // pred_fallthru
      _
    // Predicated region
    $region66: #{bert_forward.1} parent=1 // pred_check
      _
    $region67: #{bert_forward.1} parent=1 // pred_check_branch
      %110 = sbr.rel (0) target = $region69
    $region68: #{bert_forward.1} parent=1 // pred_region
      _
    $region69: #{bert_forward.1} parent=1 // pred_fallthru
      _
    // Predicated region
    $region70: #{bert_forward.1} parent=1 // pred_check
      _
    $region71: #{bert_forward.1} parent=1 // pred_check_branch
      %112 = sbr.rel (0) target = $region73
    $region72: #{bert_forward.1} parent=1 // pred_region
      _
    $region73: #{bert_forward.1} parent=1 // pred_fallthru
      _
    // Predicated region
    $region74: #{bert_forward.1} parent=1 // pred_check
      _
    $region75: #{bert_forward.1} parent=1 // pred_check_branch
      %114 = sbr.rel (0) target = $region77
    $region76: #{bert_forward.1} parent=1 // pred_region
      _
    $region77: #{bert_forward.1} parent=1 // pred_fallthru
      _
    // Predicated region
    $region78: #{bert_forward.1} parent=1 // pred_check
      _
    $region79: #{bert_forward.1} parent=1 // pred_check_branch
      %116 = sbr.rel (0) target = $region81
    $region80: #{bert_forward.1} parent=1 // pred_region
      _
    $region81: #{bert_forward.1} parent=1 // pred_fallthru
      _
    // Predicated region
    $region82: #{bert_forward.1} parent=1 // pred_check
      _
    $region83: #{bert_forward.1} parent=1 // pred_check_branch
      %118 = sbr.rel (0) target = $region85
    $region84: #{bert_forward.1} parent=1 // pred_region
      _
    $region85: #{bert_forward.1} parent=1 // pred_fallthru
      _
    // Predicated region
    $region86: #{bert_forward.1} parent=1 // pred_check
      _
    $region87: #{bert_forward.1} parent=1 // pred_check_branch
      %120 = sbr.rel (0) target = $region89
    $region88: #{bert_forward.1} parent=1 // pred_region
      _
    $region89: #{bert_forward.1} parent=1 // pred_fallthru
      _
    // Predicated region
    $region90: #{bert_forward.1} parent=1 // pred_check
      _
    $region91: #{bert_forward.1} parent=1 // pred_check_branch
      %122 = sbr.rel (0) target = $region93
    $region92: #{bert_forward.1} parent=1 // pred_region
      _
    $region93: #{bert_forward.1} parent=1 // pred_fallthru
      _
    // Predicated region
    $region94: #{bert_forward.1} parent=1 // pred_check
      _
    $region95: #{bert_forward.1} parent=1 // pred_check_branch
      %124 = sbr.rel (0) target = $region97
    $region96: #{bert_forward.1} parent=1 // pred_region
      _
    $region97: #{bert_forward.1} parent=1 // pred_fallthru
      _
    // Predicated region
    $region98: #{bert_forward.1} parent=1 // pred_check
      _
    $region99: #{bert_forward.1} parent=1 // pred_check_branch
      %126 = sbr.rel (0) target = $region101
    $region100: #{bert_forward.1} parent=1 // pred_region
      _
    $region101: #{bert_forward.1} parent=1 // pred_fallthru
      _
    // Predicated region
    $region102: #{bert_forward.1} parent=1 // pred_check
      _
    $region103: #{bert_forward.1} parent=1 // pred_check_branch
      %128 = sbr.rel (0) target = $region105
    $region104: #{bert_forward.1} parent=1 // pred_region
      _
    $region105: #{bert_forward.1} parent=1 // pred_fallthru
      _
    // Predicated region
    $region106: #{bert_forward.1} parent=1 // pred_check
      _
    $region107: #{bert_forward.1} parent=1 // pred_check_branch
      %130 = sbr.rel (0) target = $region109
    $region108: #{bert_forward.1} parent=1 // pred_region
      _
    $region109: #{bert_forward.1} parent=1 // pred_fallthru
      _
    // Predicated region
    $region110: #{bert_forward.1} parent=1 // pred_check
      _
    $region111: #{bert_forward.1} parent=1 // pred_check_branch
      %132 = sbr.rel (0) target = $region113
    $region112: #{bert_forward.1} parent=1 // pred_region
      _
    $region113: #{bert_forward.1} parent=1 // pred_fallthru
      _
    // Predicated region
    $region114: #{bert_forward.1} parent=1 // pred_check
      _
    $region115: #{bert_forward.1} parent=1 // pred_check_branch
      %134 = sbr.rel (0) target = $region117
    $region116: #{bert_forward.1} parent=1 // pred_region
      _
    $region117: #{bert_forward.1} parent=1 // pred_fallthru
      _
    // Predicated region
    $region118: #{bert_forward.1} parent=1 // pred_check
      _
    $region119: #{bert_forward.1} parent=1 // pred_check_branch
      %136 = sbr.rel (0) target = $region121
    $region120: #{bert_forward.1} parent=1 // pred_region
      _
    $region121: #{bert_forward.1} parent=1 // pred_fallthru
      _
    // Predicated region
    $region122: #{bert_forward.1} parent=1 // pred_check
      _
    $region123: #{bert_forward.1} parent=1 // pred_check_branch
      %138 = sbr.rel (0) target = $region125
    $region124: #{bert_forward.1} parent=1 // pred_region
      _
    $region125: #{bert_forward.1} parent=1 // pred_fallthru
      _
    // Predicated region
    $region126: #{bert_forward.1} parent=1 // pred_check
      _
    $region127: #{bert_forward.1} parent=1 // pred_check_branch
      %140 = sbr.rel (0) target = $region129
    $region128: #{bert_forward.1} parent=1 // pred_region
      _
    $region129: #{bert_forward.1} parent=1 // pred_fallthru
      _
    // Predicated region
    $region130: #{bert_forward.1} parent=1 // pred_check
      _
    $region131: #{bert_forward.1} parent=1 // pred_check_branch
      %142 = sbr.rel (0) target = $region133
    $region132: #{bert_forward.1} parent=1 // pred_region
      _
    $region133: #{bert_forward.1} parent=1 // pred_fallthru
      _
    // Predicated region
    $region134: #{bert_forward.1} parent=1 // pred_check
      _
    $region135: #{bert_forward.1} parent=1 // pred_check_branch
      %144 = sbr.rel (0) target = $region137
    $region136: #{bert_forward.1} parent=1 // pred_region
      _
    $region137: #{bert_forward.1} parent=1 // pred_fallthru
      _
    // Predicated region
    $region138: #{bert_forward.1} parent=1 // pred_check
      _
    $region139: #{bert_forward.1} parent=1 // pred_check_branch
      %146 = sbr.rel (0) target = $region141
    $region140: #{bert_forward.1} parent=1 // pred_region
      _
    $region141: #{bert_forward.1} parent=1 // pred_fallthru
      _
    %v147 = vld [vmem:[%s1] sm:$0xff]
    %v148 = vld [vmem:[%s1 + $0x8] sm:$0xff]
    %v149 = vld [vmem:[%s7] sm:$0x1]
    %v150 = vld [vmem:[%s9] sm:$0x1]
    %vm151 = vcmask 261120
    %v152 = vsel %vm151, %v147, 0.0
    %153 = vadd.xlane.f32.xlu0 %v152
    %v154 = vpop.xlane.xlu0 %153
    %v155 = vsel %vm151, %v148, 0.0
    %156 = vadd.xlane.f32.xlu0 %v155
    %v157 = vpop.xlane.xlu0 %156
    %v158 = vrcp.pop 32.0
    %v159 = vmul.f32 %v154, %v158
    %v160 = vmul.f32 %v157, %v158
    %v161 = vsub.f32 %v147, %v159
    %v162 = vsub.f32 %v148, %v160
    %v163 = vmul.f32 %v161, %v161
    %v164 = vmul.f32 %v162, %v162
    %v165 = vsel %vm151, %v163, 0.0
    %166 = vadd.xlane.f32.xlu0 %v165
    %v167 = vpop.xlane.xlu0 %166
    %v168 = vsel %vm151, %v164, 0.0
    %169 = vadd.xlane.f32.xlu0 %v168
    %v170 = vpop.xlane.xlu0 %169
    %v171 = vmul.f32 %v167, %v158
    %v172 = vmul.f32 %v170, %v158
    %v173 = vadd.f32 %v171, 1e-05
    %v174 = vadd.f32 %v172, 1e-05
    %v175 = vrsqrt.pop %v173
    %v176 = vrsqrt.pop %v174
    %v177 = vmul.f32 %v161, %v175
    %v178 = vmul.f32 %v162, %v176
    %v180 = vlaneseq
    %v181 = vshrl.u32 %v180, 7
    %v182 = vsub.s32 0, %v181
    %v183 = vrot.slane %v149, %v182
    %v185 = vmul.f32 %v177, %v183
    %v186 = vmul.f32 %v178, %v183
    %v188 = vlaneseq
    %v189 = vshrl.u32 %v188, 7
    %v190 = vsub.s32 0, %v189
    %v191 = vrot.slane %v150, %v190
    %v193 = vadd.f32 %v185, %v191
    %v194 = vadd.f32 %v186, %v191
    %v195 = vld [vmem:[%s3] sm:$0x3]
    %v196 = vld [vmem:[%s11] sm:$0xff]
    %v197 = vld [vmem:[%s11 + $0x8] sm:$0xff]
    %v198 = vld [vmem:[%s11 + $0x10] sm:$0xff]
    %v199 = vld [vmem:[%s11 + $0x18] sm:$0xff]
    %v200 = vld [vmem:[%s13] sm:$0x1]
    %v202 = vlaneseq
    %v203 = vshrl.u32 %v202, 7
    %v204 = vsub.s32 0, %v203
    %v205 = vrot.slane %v200, %v204
    %v208 = vsel %vm151, %v193, 0
    %v211 = vsel %vm151, %v194, 0
    %213 = vmatprep.subr.mxu0 0.0
    %214 = vmatpush1.msra.mxu0 %v196
    %215 = vmatprep.subr.mxu0 0.0
    %216 = vmatpush1.msra.mxu0 %v197
    %217 = vmatprep.subr.mxu0 0.0
    %218 = vmatpush1.msra.mxu0 %v198
    %219 = vmatprep.subr.mxu0 0.0
    %220 = vmatpush1.msra.mxu0 %v199
    %221 = vmatprep.subr.mxu0 0.0
    %222 = vmatpush1.msra.mxu0 0.0
    %223 = vmatprep.subr.mxu0 0.0
    %224 = vmatpush1.msra.mxu0 0.0
    %225 = vmatprep.subr.mxu0 0.0
    %226 = vmatpush1.msra.mxu0 0.0
    %227 = vmatprep.subr.mxu0 0.0
    %228 = vmatpush1.msra.mxu0 0.0
    %229 = vmatprep.subr.mxu0 0.0
    %230 = vmatpush1.msra.mxu0 0.0
    %231 = vmatprep.subr.mxu0 0.0
    %232 = vmatpush1.msra.mxu0 0.0
    %233 = vmatprep.subr.mxu0 0.0
    %234 = vmatpush1.msra.mxu0 0.0
    %235 = vmatprep.subr.mxu0 0.0
    %236 = vmatpush1.msra.mxu0 0.0
    %237 = vmatprep.subr.mxu0 0.0
    %238 = vmatpush1.msra.mxu0 0.0
    %239 = vmatprep.subr.mxu0 0.0
    %240 = vmatpush1.msra.mxu0 0.0
    %241 = vmatprep.subr.mxu0 0.0
    %242 = vmatpush1.msra.mxu0 0.0
    %243 = vmatprep.subr.mxu0 0.0
    %244 = vmatpush1.msra.mxu0 0.0
    %245 = vmatprep.subr.mxu0 0.0
    %246 = vmatpush1.msra.mxu0 0.0
    %247 = vmatprep.subr.mxu0 0.0
    %248 = vmatpush1.msra.mxu0 0.0
    %249 = vmatprep.subr.mxu0 0.0
    %250 = vmatpush1.msra.mxu0 0.0
    %251 = vmatprep.subr.mxu0 0.0
    %252 = vmatpush1.msra.mxu0 0.0
    %253 = vmatprep.subr.mxu0 0.0
    %254 = vmatpush1.msra.mxu0 0.0
    %255 = vmatprep.subr.mxu0 0.0
    %256 = vmatpush1.msra.mxu0 0.0
    %257 = vmatprep.subr.mxu0 0.0
    %258 = vmatpush1.msra.mxu0 0.0
    %259 = vmatprep.subr.mxu0 0.0
    %260 = vmatpush1.msra.mxu0 0.0
    %261 = vmatprep.subr.mxu0 0.0
    %262 = vmatpush1.msra.mxu0 0.0
    %263 = vmatprep.subr.mxu0 0.0
    %264 = vmatpush1.msra.mxu0 0.0
    %265 = vmatprep.subr.mxu0 0.0
    %266 = vmatpush1.msra.mxu0 0.0
    %267 = vmatprep.subr.mxu0 0.0
    %268 = vmatpush1.msra.mxu0 0.0
    %269 = vmatprep.subr.mxu0 0.0
    %270 = vmatpush1.msra.mxu0 0.0
    %271 = vmatprep.subr.mxu0 0.0
    %272 = vmatpush1.msra.mxu0 0.0
    %273 = vmatprep.subr.mxu0 0.0
    %274 = vmatpush1.msra.mxu0 0.0
    %275 = vmatprep.subr.mxu0 0.0
    %276 = vmatpush1.msra.mxu0 0.0
    %277 = vmatprep.mubr.f32.mxu0 0.0
    %278 = vmatmul.mubr.f32.gmra.mrb[0].mxu0 %v208
    %v279 = vpop.f32.mrb[0].mxu0
    %v280 = vadd.f32 %v205, %v279
    %v281 = vpop.f32.mrb[0].mxu0
    %282 = vmatprep.mubr.f32.mxu0 0.0
    %283 = vmatmul.mubr.f32.gmra.mrb[0].mxu0 %v211
    %v284 = vpop.f32.mrb[0].mxu0
    %v285 = vadd.f32 %v205, %v284
    %v286 = vpop.f32.mrb[0].mxu0
    %287 = vdwg.mxu0
    %289 = vrot.lane.b32.xlu0 %v280, 96
    %v290 = vpop.permute.xlu0 %289
    %vm291 = vcmask 64512
    %v292 = vsel %vm291, %v280, 0
    %v294 = vsel %vm291, %v290, 0
    %296 = vmatprep.subr.mxu0 0.0
    %297 = vmatpush1.xpose.msra.mxu0 %v294
    %298 = vmatprep.subr.mxu0 0.0
    %299 = vmatpush1.xpose.msra.mxu0 0.0
    %300 = vmatprep.subr.mxu0 0.0
    %301 = vmatpush1.xpose.msra.mxu0 0.0
    %302 = vmatprep.subr.mxu0 0.0
    %303 = vmatpush1.xpose.msra.mxu0 0.0
    %304 = vmatprep.subr.mxu0 0.0
    %305 = vmatpush1.xpose.msra.mxu0 0.0
    %306 = vmatprep.subr.mxu0 0.0
    %307 = vmatpush1.xpose.msra.mxu0 0.0
    %308 = vmatprep.subr.mxu0 0.0
    %309 = vmatpush1.xpose.msra.mxu0 0.0
    %310 = vmatprep.subr.mxu0 0.0
    %311 = vmatpush1.xpose.msra.mxu0 0.0
    %312 = vmatprep.subr.mxu0 0.0
    %313 = vmatpush1.xpose.msra.mxu0 0.0
    %314 = vmatprep.subr.mxu0 0.0
    %315 = vmatpush1.xpose.msra.mxu0 0.0
    %316 = vmatprep.subr.mxu0 0.0
    %317 = vmatpush1.xpose.msra.mxu0 0.0
    %318 = vmatprep.subr.mxu0 0.0
    %319 = vmatpush1.xpose.msra.mxu0 0.0
    %320 = vmatprep.subr.mxu0 0.0
    %321 = vmatpush1.xpose.msra.mxu0 0.0
    %322 = vmatprep.subr.mxu0 0.0
    %323 = vmatpush1.xpose.msra.mxu0 0.0
    %324 = vmatprep.subr.mxu0 0.0
    %325 = vmatpush1.xpose.msra.mxu0 0.0
    %326 = vmatprep.subr.mxu0 0.0
    %327 = vmatpush1.xpose.msra.mxu0 0.0
    %328 = vmatprep.subr.mxu0 0.0
    %329 = vmatpush1.xpose.msra.mxu0 0.0
    %330 = vmatprep.subr.mxu0 0.0
    %331 = vmatpush1.xpose.msra.mxu0 0.0
    %332 = vmatprep.subr.mxu0 0.0
    %333 = vmatpush1.xpose.msra.mxu0 0.0
    %334 = vmatprep.subr.mxu0 0.0
    %335 = vmatpush1.xpose.msra.mxu0 0.0
    %336 = vmatprep.subr.mxu0 0.0
    %337 = vmatpush1.xpose.msra.mxu0 0.0
    %338 = vmatprep.subr.mxu0 0.0
    %339 = vmatpush1.xpose.msra.mxu0 0.0
    %340 = vmatprep.subr.mxu0 0.0
    %341 = vmatpush1.xpose.msra.mxu0 0.0
    %342 = vmatprep.subr.mxu0 0.0
    %343 = vmatpush1.xpose.msra.mxu0 0.0
    %344 = vmatprep.subr.mxu0 0.0
    %345 = vmatpush1.xpose.msra.mxu0 0.0
    %346 = vmatprep.subr.mxu0 0.0
    %347 = vmatpush1.xpose.msra.mxu0 0.0
    %348 = vmatprep.subr.mxu0 0.0
    %349 = vmatpush1.xpose.msra.mxu0 0.0
    %350 = vmatprep.subr.mxu0 0.0
    %351 = vmatpush1.xpose.msra.mxu0 0.0
    %352 = vmatprep.subr.mxu0 0.0
    %353 = vmatpush1.xpose.msra.mxu0 0.0
    %354 = vmatprep.subr.mxu0 0.0
    %355 = vmatpush1.xpose.msra.mxu0 0.0
    %356 = vmatprep.subr.mxu0 0.0
    %357 = vmatpush1.xpose.msra.mxu0 0.0
    %358 = vmatprep.subr.mxu0 0.0
    %359 = vmatpush1.xpose.msra.mxu0 0.0
    %360 = vmatprep.mubr.f32.mxu0 0.0
    %361 = vmatmul.mubr.f32.gmra.mrb[0].mxu0 %v292
    %v362 = vpop.f32.mrb[0].mxu0
    %v363 = vadd.f32 0.0, %v362
    %v364 = vpop.f32.mrb[0].mxu0
    %365 = vdwg.mxu0
    %v366 = vmul.f32 %v363, 0.35355338
    %v367 = vlaneseq
    %v368 = vshrl.u32 %v367, 7
    %v369 = vsub.s32 0, %v368
    %v370 = vrot.slane %v195, %v369
    %v371 = vadd.f32 %v366, %v370
    %v372 = vsel %vm291, %v371, -inf
    %373 = vmax.xlane.f32.xlu0 %v372
    %v374 = vpop.xlane.xlu0 %373
    %v375 = vsub.f32 %v371, %v374
    %v376 = vmul.f32 %v375, 1.442695
    %v377 = vpow.pop %v376
    %v378 = vsel %vm291, %v377, 0.0
    %379 = vadd.xlane.f32.xlu0 %v378
    %v380 = vpop.xlane.xlu0 %379
    %v381 = vrcp.pop %v380
    %v382 = vmul.f32 %v377, %v381
    %383 = vrot.lane.b32.xlu0 %v280, 64
    %v384 = vpop.permute.xlu0 %383
    %v387 = vsel %vm291, %v382, 0
    %389 = vmatprep.subr.mxu0 0.0
    %390 = vmatpush1.msra.mxu0 %v384
    %391 = vmatprep.subr.mxu0 0.0
    %392 = vmatpush1.msra.mxu0 0.0
    %393 = vmatprep.subr.mxu0 0.0
    %394 = vmatpush1.msra.mxu0 0.0
    %395 = vmatprep.subr.mxu0 0.0
    %396 = vmatpush1.msra.mxu0 0.0
    %397 = vmatprep.subr.mxu0 0.0
    %398 = vmatpush1.msra.mxu0 0.0
    %399 = vmatprep.subr.mxu0 0.0
    %400 = vmatpush1.msra.mxu0 0.0
    %401 = vmatprep.subr.mxu0 0.0
    %402 = vmatpush1.msra.mxu0 0.0
    %403 = vmatprep.subr.mxu0 0.0
    %404 = vmatpush1.msra.mxu0 0.0
    %405 = vmatprep.subr.mxu0 0.0
    %406 = vmatpush1.msra.mxu0 0.0
    %407 = vmatprep.subr.mxu0 0.0
    %408 = vmatpush1.msra.mxu0 0.0
    %409 = vmatprep.subr.mxu0 0.0
    %410 = vmatpush1.msra.mxu0 0.0
    %411 = vmatprep.subr.mxu0 0.0
    %412 = vmatpush1.msra.mxu0 0.0
    %413 = vmatprep.subr.mxu0 0.0
    %414 = vmatpush1.msra.mxu0 0.0
    %415 = vmatprep.subr.mxu0 0.0
    %416 = vmatpush1.msra.mxu0 0.0
    %417 = vmatprep.subr.mxu0 0.0
    %418 = vmatpush1.msra.mxu0 0.0
    %419 = vmatprep.subr.mxu0 0.0
    %420 = vmatpush1.msra.mxu0 0.0
    %421 = vmatprep.subr.mxu0 0.0
    %422 = vmatpush1.msra.mxu0 0.0
    %423 = vmatprep.subr.mxu0 0.0
    %424 = vmatpush1.msra.mxu0 0.0
    %425 = vmatprep.subr.mxu0 0.0
    %426 = vmatpush1.msra.mxu0 0.0
    %427 = vmatprep.subr.mxu0 0.0
    %428 = vmatpush1.msra.mxu0 0.0
    %429 = vmatprep.subr.mxu0 0.0
    %430 = vmatpush1.msra.mxu0 0.0
    %431 = vmatprep.subr.mxu0 0.0
    %432 = vmatpush1.msra.mxu0 0.0
    %433 = vmatprep.subr.mxu0 0.0
    %434 = vmatpush1.msra.mxu0 0.0
    %435 = vmatprep.subr.mxu0 0.0
    %436 = vmatpush1.msra.mxu0 0.0
    %437 = vmatprep.subr.mxu0 0.0
    %438 = vmatpush1.msra.mxu0 0.0
    %439 = vmatprep.subr.mxu0 0.0
    %440 = vmatpush1.msra.mxu0 0.0
    %441 = vmatprep.subr.mxu0 0.0
    %442 = vmatpush1.msra.mxu0 0.0
    %443 = vmatprep.subr.mxu0 0.0
    %444 = vmatpush1.msra.mxu0 0.0
    %445 = vmatprep.subr.mxu0 0.0
    %446 = vmatpush1.msra.mxu0 0.0
    %447 = vmatprep.subr.mxu0 0.0
    %448 = vmatpush1.msra.mxu0 0.0
    %449 = vmatprep.subr.mxu0 0.0
    %450 = vmatpush1.msra.mxu0 0.0
    %451 = vmatprep.subr.mxu0 0.0
    %452 = vmatpush1.msra.mxu0 0.0
    %453 = vmatprep.mubr.f32.mxu0 0.0
    %454 = vmatmul.mubr.f32.gmra.mrb[0].mxu0 %v387
    %v455 = vpop.f32.mrb[0].mxu0
    %v456 = vadd.f32 0.0, %v455
    %v457 = vpop.f32.mrb[0].mxu0
    %458 = vdwg.mxu0
    %459 = vrot.lane.b32.xlu0 %v280, 120
    %v460 = vpop.permute.xlu0 %459
    %461 = vrot.lane.b32.xlu0 %v280, 88
    %v462 = vpop.permute.xlu0 %461
    %v463 = vsel %vm291, %v460, 0
    %v465 = vsel %vm291, %v462, 0
    %467 = vmatprep.subr.mxu0 0.0
    %468 = vmatpush1.xpose.msra.mxu0 %v465
    %469 = vmatprep.subr.mxu0 0.0
    %470 = vmatpush1.xpose.msra.mxu0 0.0
    %471 = vmatprep.subr.mxu0 0.0
    %472 = vmatpush1.xpose.msra.mxu0 0.0
    %473 = vmatprep.subr.mxu0 0.0
    %474 = vmatpush1.xpose.msra.mxu0 0.0
    %475 = vmatprep.subr.mxu0 0.0
    %476 = vmatpush1.xpose.msra.mxu0 0.0
    %477 = vmatprep.subr.mxu0 0.0
    %478 = vmatpush1.xpose.msra.mxu0 0.0
    %479 = vmatprep.subr.mxu0 0.0
    %480 = vmatpush1.xpose.msra.mxu0 0.0
    %481 = vmatprep.subr.mxu0 0.0
    %482 = vmatpush1.xpose.msra.mxu0 0.0
    %483 = vmatprep.subr.mxu0 0.0
    %484 = vmatpush1.xpose.msra.mxu0 0.0
    %485 = vmatprep.subr.mxu0 0.0
    %486 = vmatpush1.xpose.msra.mxu0 0.0
    %487 = vmatprep.subr.mxu0 0.0
    %488 = vmatpush1.xpose.msra.mxu0 0.0
    %489 = vmatprep.subr.mxu0 0.0
    %490 = vmatpush1.xpose.msra.mxu0 0.0
    %491 = vmatprep.subr.mxu0 0.0
    %492 = vmatpush1.xpose.msra.mxu0 0.0
    %493 = vmatprep.subr.mxu0 0.0
    %494 = vmatpush1.xpose.msra.mxu0 0.0
    %495 = vmatprep.subr.mxu0 0.0
    %496 = vmatpush1.xpose.msra.mxu0 0.0
    %497 = vmatprep.subr.mxu0 0.0
    %498 = vmatpush1.xpose.msra.mxu0 0.0
    %499 = vmatprep.subr.mxu0 0.0
    %500 = vmatpush1.xpose.msra.mxu0 0.0
    %501 = vmatprep.subr.mxu0 0.0
    %502 = vmatpush1.xpose.msra.mxu0 0.0
    %503 = vmatprep.subr.mxu0 0.0
    %504 = vmatpush1.xpose.msra.mxu0 0.0
    %505 = vmatprep.subr.mxu0 0.0
    %506 = vmatpush1.xpose.msra.mxu0 0.0
    %507 = vmatprep.subr.mxu0 0.0
    %508 = vmatpush1.xpose.msra.mxu0 0.0
    %509 = vmatprep.subr.mxu0 0.0
    %510 = vmatpush1.xpose.msra.mxu0 0.0
    %511 = vmatprep.subr.mxu0 0.0
    %512 = vmatpush1.xpose.msra.mxu0 0.0
    %513 = vmatprep.subr.mxu0 0.0
    %514 = vmatpush1.xpose.msra.mxu0 0.0
    %515 = vmatprep.subr.mxu0 0.0
    %516 = vmatpush1.xpose.msra.mxu0 0.0
    %517 = vmatprep.subr.mxu0 0.0
    %518 = vmatpush1.xpose.msra.mxu0 0.0
    %519 = vmatprep.subr.mxu0 0.0
    %520 = vmatpush1.xpose.msra.mxu0 0.0
    %521 = vmatprep.subr.mxu0 0.0
    %522 = vmatpush1.xpose.msra.mxu0 0.0
    %523 = vmatprep.subr.mxu0 0.0
    %524 = vmatpush1.xpose.msra.mxu0 0.0
    %525 = vmatprep.subr.mxu0 0.0
    %526 = vmatpush1.xpose.msra.mxu0 0.0
    %527 = vmatprep.subr.mxu0 0.0
    %528 = vmatpush1.xpose.msra.mxu0 0.0
    %529 = vmatprep.subr.mxu0 0.0
    %530 = vmatpush1.xpose.msra.mxu0 0.0
    %531 = vmatprep.mubr.f32.mxu0 0.0
    %532 = vmatmul.mubr.f32.gmra.mrb[0].mxu0 %v463
    %v533 = vpop.f32.mrb[0].mxu0
    %v534 = vadd.f32 0.0, %v533
    %v535 = vpop.f32.mrb[0].mxu0
    %536 = vdwg.mxu0
    %v537 = vmul.f32 %v534, 0.35355338
    %v538 = vadd.f32 %v537, %v370
    %v539 = vsel %vm291, %v538, -inf
    %540 = vmax.xlane.f32.xlu0 %v539
    %v541 = vpop.xlane.xlu0 %540
    %v542 = vsub.f32 %v538, %v541
    %v543 = vmul.f32 %v542, 1.442695
    %v544 = vpow.pop %v543
    %v545 = vsel %vm291, %v544, 0.0
    %546 = vadd.xlane.f32.xlu0 %v545
    %v547 = vpop.xlane.xlu0 %546
    %v548 = vrcp.pop %v547
    %v549 = vmul.f32 %v544, %v548
    %550 = vrot.lane.b32.xlu0 %v280, 56
    %v551 = vpop.permute.xlu0 %550
    %v554 = vsel %vm291, %v549, 0
    %556 = vmatprep.subr.mxu0 0.0
    %557 = vmatpush1.msra.mxu0 %v551
    %558 = vmatprep.subr.mxu0 0.0
    %559 = vmatpush1.msra.mxu0 0.0
    %560 = vmatprep.subr.mxu0 0.0
    %561 = vmatpush1.msra.mxu0 0.0
    %562 = vmatprep.subr.mxu0 0.0
    %563 = vmatpush1.msra.mxu0 0.0
    %564 = vmatprep.subr.mxu0 0.0
    %565 = vmatpush1.msra.mxu0 0.0
    %566 = vmatprep.subr.mxu0 0.0
    %567 = vmatpush1.msra.mxu0 0.0
    %568 = vmatprep.subr.mxu0 0.0
    %569 = vmatpush1.msra.mxu0 0.0
    %570 = vmatprep.subr.mxu0 0.0
    %571 = vmatpush1.msra.mxu0 0.0
    %572 = vmatprep.subr.mxu0 0.0
    %573 = vmatpush1.msra.mxu0 0.0
    %574 = vmatprep.subr.mxu0 0.0
    %575 = vmatpush1.msra.mxu0 0.0
    %576 = vmatprep.subr.mxu0 0.0
    %577 = vmatpush1.msra.mxu0 0.0
    %578 = vmatprep.subr.mxu0 0.0
    %579 = vmatpush1.msra.mxu0 0.0
    %580 = vmatprep.subr.mxu0 0.0
    %581 = vmatpush1.msra.mxu0 0.0
    %582 = vmatprep.subr.mxu0 0.0
    %583 = vmatpush1.msra.mxu0 0.0
    %584 = vmatprep.subr.mxu0 0.0
    %585 = vmatpush1.msra.mxu0 0.0
    %586 = vmatprep.subr.mxu0 0.0
    %587 = vmatpush1.msra.mxu0 0.0
    %588 = vmatprep.subr.mxu0 0.0
    %589 = vmatpush1.msra.mxu0 0.0
    %590 = vmatprep.subr.mxu0 0.0
    %591 = vmatpush1.msra.mxu0 0.0
    %592 = vmatprep.subr.mxu0 0.0
    %593 = vmatpush1.msra.mxu0 0.0
    %594 = vmatprep.subr.mxu0 0.0
    %595 = vmatpush1.msra.mxu0 0.0
    %596 = vmatprep.subr.mxu0 0.0
    %597 = vmatpush1.msra.mxu0 0.0
    %598 = vmatprep.subr.mxu0 0.0
    %599 = vmatpush1.msra.mxu0 0.0
    %600 = vmatprep.subr.mxu0 0.0
    %601 = vmatpush1.msra.mxu0 0.0
    %602 = vmatprep.subr.mxu0 0.0
    %603 = vmatpush1.msra.mxu0 0.0
    %604 = vmatprep.subr.mxu0 0.0
    %605 = vmatpush1.msra.mxu0 0.0
    %606 = vmatprep.subr.mxu0 0.0
    %607 = vmatpush1.msra.mxu0 0.0
    %608 = vmatprep.subr.mxu0 0.0
    %609 = vmatpush1.msra.mxu0 0.0
    %610 = vmatprep.subr.mxu0 0.0
    %611 = vmatpush1.msra.mxu0 0.0
    %612 = vmatprep.subr.mxu0 0.0
    %613 = vmatpush1.msra.mxu0 0.0
    %614 = vmatprep.subr.mxu0 0.0
    %615 = vmatpush1.msra.mxu0 0.0
    %616 = vmatprep.subr.mxu0 0.0
    %617 = vmatpush1.msra.mxu0 0.0
    %618 = vmatprep.subr.mxu0 0.0
    %619 = vmatpush1.msra.mxu0 0.0
    %620 = vmatprep.mubr.f32.mxu0 0.0
    %621 = vmatmul.mubr.f32.gmra.mrb[0].mxu0 %v554
    %v622 = vpop.f32.mrb[0].mxu0
    %v623 = vadd.f32 0.0, %v622
    %v624 = vpop.f32.mrb[0].mxu0
    %625 = vdwg.mxu0
    %626 = vrot.lane.b32.xlu0 %v280, 112
    %v627 = vpop.permute.xlu0 %626
    %628 = vrot.lane.b32.xlu0 %v280, 80
    %v629 = vpop.permute.xlu0 %628
    %v630 = vsel %vm291, %v627, 0
    %v632 = vsel %vm291, %v629, 0
    %634 = vmatprep.subr.mxu0 0.0
    %635 = vmatpush1.xpose.msra.mxu0 %v632
    %636 = vmatprep.subr.mxu0 0.0
    %637 = vmatpush1.xpose.msra.mxu0 0.0
    %638 = vmatprep.subr.mxu0 0.0
    %639 = vmatpush1.xpose.msra.mxu0 0.0
    %640 = vmatprep.subr.mxu0 0.0
    %641 = vmatpush1.xpose.msra.mxu0 0.0
    %642 = vmatprep.subr.mxu0 0.0
    %643 = vmatpush1.xpose.msra.mxu0 0.0
    %644 = vmatprep.subr.mxu0 0.0
    %645 = vmatpush1.xpose.msra.mxu0 0.0
    %646 = vmatprep.subr.mxu0 0.0
    %647 = vmatpush1.xpose.msra.mxu0 0.0
    %648 = vmatprep.subr.mxu0 0.0
    %649 = vmatpush1.xpose.msra.mxu0 0.0
    %650 = vmatprep.subr.mxu0 0.0
    %651 = vmatpush1.xpose.msra.mxu0 0.0
    %652 = vmatprep.subr.mxu0 0.0
    %653 = vmatpush1.xpose.msra.mxu0 0.0
    %654 = vmatprep.subr.mxu0 0.0
    %655 = vmatpush1.xpose.msra.mxu0 0.0
    %656 = vmatprep.subr.mxu0 0.0
    %657 = vmatpush1.xpose.msra.mxu0 0.0
    %658 = vmatprep.subr.mxu0 0.0
    %659 = vmatpush1.xpose.msra.mxu0 0.0
    %660 = vmatprep.subr.mxu0 0.0
    %661 = vmatpush1.xpose.msra.mxu0 0.0
    %662 = vmatprep.subr.mxu0 0.0
    %663 = vmatpush1.xpose.msra.mxu0 0.0
    %664 = vmatprep.subr.mxu0 0.0
    %665 = vmatpush1.xpose.msra.mxu0 0.0
    %666 = vmatprep.subr.mxu0 0.0
    %667 = vmatpush1.xpose.msra.mxu0 0.0
    %668 = vmatprep.subr.mxu0 0.0
    %669 = vmatpush1.xpose.msra.mxu0 0.0
    %670 = vmatprep.subr.mxu0 0.0
    %671 = vmatpush1.xpose.msra.mxu0 0.0
    %672 = vmatprep.subr.mxu0 0.0
    %673 = vmatpush1.xpose.msra.mxu0 0.0
    %674 = vmatprep.subr.mxu0 0.0
    %675 = vmatpush1.xpose.msra.mxu0 0.0
    %676 = vmatprep.subr.mxu0 0.0
    %677 = vmatpush1.xpose.msra.mxu0 0.0
    %678 = vmatprep.subr.mxu0 0.0
    %679 = vmatpush1.xpose.msra.mxu0 0.0
    %680 = vmatprep.subr.mxu0 0.0
    %681 = vmatpush1.xpose.msra.mxu0 0.0
    %682 = vmatprep.subr.mxu0 0.0
    %683 = vmatpush1.xpose.msra.mxu0 0.0
    %684 = vmatprep.subr.mxu0 0.0
    %685 = vmatpush1.xpose.msra.mxu0 0.0
    %686 = vmatprep.subr.mxu0 0.0
    %687 = vmatpush1.xpose.msra.mxu0 0.0
    %688 = vmatprep.subr.mxu0 0.0
    %689 = vmatpush1.xpose.msra.mxu0 0.0
    %690 = vmatprep.subr.mxu0 0.0
    %691 = vmatpush1.xpose.msra.mxu0 0.0
    %692 = vmatprep.subr.mxu0 0.0
    %693 = vmatpush1.xpose.msra.mxu0 0.0
    %694 = vmatprep.subr.mxu0 0.0
    %695 = vmatpush1.xpose.msra.mxu0 0.0
    %696 = vmatprep.subr.mxu0 0.0
    %697 = vmatpush1.xpose.msra.mxu0 0.0
    %698 = vmatprep.mubr.f32.mxu0 0.0
    %699 = vmatmul.mubr.f32.gmra.mrb[0].mxu0 %v630
    %v700 = vpop.f32.mrb[0].mxu0
    %v701 = vadd.f32 0.0, %v700
    %v702 = vpop.f32.mrb[0].mxu0
    %703 = vdwg.mxu0
    %v704 = vmul.f32 %v701, 0.35355338
    %v705 = vadd.f32 %v704, %v370
    %v706 = vsel %vm291, %v705, -inf
    %707 = vmax.xlane.f32.xlu0 %v706
    %v708 = vpop.xlane.xlu0 %707
    %v709 = vsub.f32 %v705, %v708
    %v710 = vmul.f32 %v709, 1.442695
    %v711 = vpow.pop %v710
    %v712 = vsel %vm291, %v711, 0.0
    %713 = vadd.xlane.f32.xlu0 %v712
    %v714 = vpop.xlane.xlu0 %713
    %v715 = vrcp.pop %v714
    %v716 = vmul.f32 %v711, %v715
    %717 = vrot.lane.b32.xlu0 %v280, 48
    %v718 = vpop.permute.xlu0 %717
    %v721 = vsel %vm291, %v716, 0
    %723 = vmatprep.subr.mxu0 0.0
    %724 = vmatpush1.msra.mxu0 %v718
    %725 = vmatprep.subr.mxu0 0.0
    %726 = vmatpush1.msra.mxu0 0.0
    %727 = vmatprep.subr.mxu0 0.0
    %728 = vmatpush1.msra.mxu0 0.0
    %729 = vmatprep.subr.mxu0 0.0
    %730 = vmatpush1.msra.mxu0 0.0
    %731 = vmatprep.subr.mxu0 0.0
    %732 = vmatpush1.msra.mxu0 0.0
    %733 = vmatprep.subr.mxu0 0.0
    %734 = vmatpush1.msra.mxu0 0.0
    %735 = vmatprep.subr.mxu0 0.0
    %736 = vmatpush1.msra.mxu0 0.0
    %737 = vmatprep.subr.mxu0 0.0
    %738 = vmatpush1.msra.mxu0 0.0
    %739 = vmatprep.subr.mxu0 0.0
    %740 = vmatpush1.msra.mxu0 0.0
    %741 = vmatprep.subr.mxu0 0.0
    %742 = vmatpush1.msra.mxu0 0.0
    %743 = vmatprep.subr.mxu0 0.0
    %744 = vmatpush1.msra.mxu0 0.0
    %745 = vmatprep.subr.mxu0 0.0
    %746 = vmatpush1.msra.mxu0 0.0
    %747 = vmatprep.subr.mxu0 0.0
    %748 = vmatpush1.msra.mxu0 0.0
    %749 = vmatprep.subr.mxu0 0.0
    %750 = vmatpush1.msra.mxu0 0.0
    %751 = vmatprep.subr.mxu0 0.0
    %752 = vmatpush1.msra.mxu0 0.0
    %753 = vmatprep.subr.mxu0 0.0
    %754 = vmatpush1.msra.mxu0 0.0
    %755 = vmatprep.subr.mxu0 0.0
    %756 = vmatpush1.msra.mxu0 0.0
    %757 = vmatprep.subr.mxu0 0.0
    %758 = vmatpush1.msra.mxu0 0.0
    %759 = vmatprep.subr.mxu0 0.0
    %760 = vmatpush1.msra.mxu0 0.0
    %761 = vmatprep.subr.mxu0 0.0
    %762 = vmatpush1.msra.mxu0 0.0
    %763 = vmatprep.subr.mxu0 0.0
    %764 = vmatpush1.msra.mxu0 0.0
    %765 = vmatprep.subr.mxu0 0.0
    %766 = vmatpush1.msra.mxu0 0.0
    %767 = vmatprep.subr.mxu0 0.0
    %768 = vmatpush1.msra.mxu0 0.0
    %769 = vmatprep.subr.mxu0 0.0
    %770 = vmatpush1.msra.mxu0 0.0
    %771 = vmatprep.subr.mxu0 0.0
    %772 = vmatpush1.msra.mxu0 0.0
    %773 = vmatprep.subr.mxu0 0.0
    %774 = vmatpush1.msra.mxu0 0.0
    %775 = vmatprep.subr.mxu0 0.0
    %776 = vmatpush1.msra.mxu0 0.0
    %777 = vmatprep.subr.mxu0 0.0
    %778 = vmatpush1.msra.mxu0 0.0
    %779 = vmatprep.subr.mxu0 0.0
    %780 = vmatpush1.msra.mxu0 0.0
    %781 = vmatprep.subr.mxu0 0.0
    %782 = vmatpush1.msra.mxu0 0.0
    %783 = vmatprep.subr.mxu0 0.0
    %784 = vmatpush1.msra.mxu0 0.0
    %785 = vmatprep.subr.mxu0 0.0
    %786 = vmatpush1.msra.mxu0 0.0
    %787 = vmatprep.mubr.f32.mxu0 0.0
    %788 = vmatmul.mubr.f32.gmra.mrb[0].mxu0 %v721
    %v789 = vpop.f32.mrb[0].mxu0
    %v790 = vadd.f32 0.0, %v789
    %v791 = vpop.f32.mrb[0].mxu0
    %792 = vdwg.mxu0
    %793 = vrot.lane.b32.xlu0 %v280, 104
    %v794 = vpop.permute.xlu0 %793
    %795 = vrot.lane.b32.xlu0 %v280, 72
    %v796 = vpop.permute.xlu0 %795
    %v797 = vsel %vm291, %v794, 0
    %v799 = vsel %vm291, %v796, 0
    %801 = vmatprep.subr.mxu0 0.0
    %802 = vmatpush1.xpose.msra.mxu0 %v799
    %803 = vmatprep.subr.mxu0 0.0
    %804 = vmatpush1.xpose.msra.mxu0 0.0
    %805 = vmatprep.subr.mxu0 0.0
    %806 = vmatpush1.xpose.msra.mxu0 0.0
    %807 = vmatprep.subr.mxu0 0.0
    %808 = vmatpush1.xpose.msra.mxu0 0.0
    %809 = vmatprep.subr.mxu0 0.0
    %810 = vmatpush1.xpose.msra.mxu0 0.0
    %811 = vmatprep.subr.mxu0 0.0
    %812 = vmatpush1.xpose.msra.mxu0 0.0
    %813 = vmatprep.subr.mxu0 0.0
    %814 = vmatpush1.xpose.msra.mxu0 0.0
    %815 = vmatprep.subr.mxu0 0.0
    %816 = vmatpush1.xpose.msra.mxu0 0.0
    %817 = vmatprep.subr.mxu0 0.0
    %818 = vmatpush1.xpose.msra.mxu0 0.0
    %819 = vmatprep.subr.mxu0 0.0
    %820 = vmatpush1.xpose.msra.mxu0 0.0
    %821 = vmatprep.subr.mxu0 0.0
    %822 = vmatpush1.xpose.msra.mxu0 0.0
    %823 = vmatprep.subr.mxu0 0.0
    %824 = vmatpush1.xpose.msra.mxu0 0.0
    %825 = vmatprep.subr.mxu0 0.0
    %826 = vmatpush1.xpose.msra.mxu0 0.0
    %827 = vmatprep.subr.mxu0 0.0
    %828 = vmatpush1.xpose.msra.mxu0 0.0
    %829 = vmatprep.subr.mxu0 0.0
    %830 = vmatpush1.xpose.msra.mxu0 0.0
    %831 = vmatprep.subr.mxu0 0.0
    %832 = vmatpush1.xpose.msra.mxu0 0.0
    %833 = vmatprep.subr.mxu0 0.0
    %834 = vmatpush1.xpose.msra.mxu0 0.0
    %835 = vmatprep.subr.mxu0 0.0
    %836 = vmatpush1.xpose.msra.mxu0 0.0
    %837 = vmatprep.subr.mxu0 0.0
    %838 = vmatpush1.xpose.msra.mxu0 0.0
    %839 = vmatprep.subr.mxu0 0.0
    %840 = vmatpush1.xpose.msra.mxu0 0.0
    %841 = vmatprep.subr.mxu0 0.0
    %842 = vmatpush1.xpose.msra.mxu0 0.0
    %843 = vmatprep.subr.mxu0 0.0
    %844 = vmatpush1.xpose.msra.mxu0 0.0
    %845 = vmatprep.subr.mxu0 0.0
    %846 = vmatpush1.xpose.msra.mxu0 0.0
    %847 = vmatprep.subr.mxu0 0.0
    %848 = vmatpush1.xpose.msra.mxu0 0.0
    %849 = vmatprep.subr.mxu0 0.0
    %850 = vmatpush1.xpose.msra.mxu0 0.0
    %851 = vmatprep.subr.mxu0 0.0
    %852 = vmatpush1.xpose.msra.mxu0 0.0
    %853 = vmatprep.subr.mxu0 0.0
    %854 = vmatpush1.xpose.msra.mxu0 0.0
    %855 = vmatprep.subr.mxu0 0.0
    %856 = vmatpush1.xpose.msra.mxu0 0.0
    %857 = vmatprep.subr.mxu0 0.0
    %858 = vmatpush1.xpose.msra.mxu0 0.0
    %859 = vmatprep.subr.mxu0 0.0
    %860 = vmatpush1.xpose.msra.mxu0 0.0
    %861 = vmatprep.subr.mxu0 0.0
    %862 = vmatpush1.xpose.msra.mxu0 0.0
    %863 = vmatprep.subr.mxu0 0.0
    %864 = vmatpush1.xpose.msra.mxu0 0.0
    %865 = vmatprep.mubr.f32.mxu0 0.0
    %866 = vmatmul.mubr.f32.gmra.mrb[0].mxu0 %v797
    %v867 = vpop.f32.mrb[0].mxu0
    %v868 = vadd.f32 0.0, %v867
    %v869 = vpop.f32.mrb[0].mxu0
    %870 = vdwg.mxu0
    %v871 = vmul.f32 %v868, 0.35355338
    %v872 = vadd.f32 %v871, %v370
    %v873 = vsel %vm291, %v872, -inf
    %874 = vmax.xlane.f32.xlu0 %v873
    %v875 = vpop.xlane.xlu0 %874
    %v876 = vsub.f32 %v872, %v875
    %v877 = vmul.f32 %v876, 1.442695
    %v878 = vpow.pop %v877
    %v879 = vsel %vm291, %v878, 0.0
    %880 = vadd.xlane.f32.xlu0 %v879
    %v881 = vpop.xlane.xlu0 %880
    %v882 = vrcp.pop %v881
    %v883 = vmul.f32 %v878, %v882
    %884 = vrot.lane.b32.xlu0 %v280, 40
    %v885 = vpop.permute.xlu0 %884
    %v888 = vsel %vm291, %v883, 0
    %890 = vmatprep.subr.mxu0 0.0
    %891 = vmatpush1.msra.mxu0 %v885
    %892 = vmatprep.subr.mxu0 0.0
    %893 = vmatpush1.msra.mxu0 0.0
    %894 = vmatprep.subr.mxu0 0.0
    %895 = vmatpush1.msra.mxu0 0.0
    %896 = vmatprep.subr.mxu0 0.0
    %897 = vmatpush1.msra.mxu0 0.0
    %898 = vmatprep.subr.mxu0 0.0
    %899 = vmatpush1.msra.mxu0 0.0
    %900 = vmatprep.subr.mxu0 0.0
    %901 = vmatpush1.msra.mxu0 0.0
    %902 = vmatprep.subr.mxu0 0.0
    %903 = vmatpush1.msra.mxu0 0.0
    %904 = vmatprep.subr.mxu0 0.0
    %905 = vmatpush1.msra.mxu0 0.0
    %906 = vmatprep.subr.mxu0 0.0
    %907 = vmatpush1.msra.mxu0 0.0
    %908 = vmatprep.subr.mxu0 0.0
    %909 = vmatpush1.msra.mxu0 0.0
    %910 = vmatprep.subr.mxu0 0.0
    %911 = vmatpush1.msra.mxu0 0.0
    %912 = vmatprep.subr.mxu0 0.0
    %913 = vmatpush1.msra.mxu0 0.0
    %914 = vmatprep.subr.mxu0 0.0
    %915 = vmatpush1.msra.mxu0 0.0
    %916 = vmatprep.subr.mxu0 0.0
    %917 = vmatpush1.msra.mxu0 0.0
    %918 = vmatprep.subr.mxu0 0.0
    %919 = vmatpush1.msra.mxu0 0.0
    %920 = vmatprep.subr.mxu0 0.0
    %921 = vmatpush1.msra.mxu0 0.0
    %922 = vmatprep.subr.mxu0 0.0
    %923 = vmatpush1.msra.mxu0 0.0
    %924 = vmatprep.subr.mxu0 0.0
    %925 = vmatpush1.msra.mxu0 0.0
    %926 = vmatprep.subr.mxu0 0.0
    %927 = vmatpush1.msra.mxu0 0.0
    %928 = vmatprep.subr.mxu0 0.0
    %929 = vmatpush1.msra.mxu0 0.0
    %930 = vmatprep.subr.mxu0 0.0
    %931 = vmatpush1.msra.mxu0 0.0
    %932 = vmatprep.subr.mxu0 0.0
    %933 = vmatpush1.msra.mxu0 0.0
    %934 = vmatprep.subr.mxu0 0.0
    %935 = vmatpush1.msra.mxu0 0.0
    %936 = vmatprep.subr.mxu0 0.0
    %937 = vmatpush1.msra.mxu0 0.0
    %938 = vmatprep.subr.mxu0 0.0
    %939 = vmatpush1.msra.mxu0 0.0
    %940 = vmatprep.subr.mxu0 0.0
    %941 = vmatpush1.msra.mxu0 0.0
    %942 = vmatprep.subr.mxu0 0.0
    %943 = vmatpush1.msra.mxu0 0.0
    %944 = vmatprep.subr.mxu0 0.0
    %945 = vmatpush1.msra.mxu0 0.0
    %946 = vmatprep.subr.mxu0 0.0
    %947 = vmatpush1.msra.mxu0 0.0
    %948 = vmatprep.subr.mxu0 0.0
    %949 = vmatpush1.msra.mxu0 0.0
    %950 = vmatprep.subr.mxu0 0.0
    %951 = vmatpush1.msra.mxu0 0.0
    %952 = vmatprep.subr.mxu0 0.0
    %953 = vmatpush1.msra.mxu0 0.0
    %954 = vmatprep.mubr.f32.mxu0 0.0
    %955 = vmatmul.mubr.f32.gmra.mrb[0].mxu0 %v888
    %v956 = vpop.f32.mrb[0].mxu0
    %v957 = vadd.f32 0.0, %v956
    %v958 = vpop.f32.mrb[0].mxu0
    %959 = vdwg.mxu0
    %961 = vrot.lane.b32.xlu0 %v623, 8
    %v962 = vpop.permute.xlu0 %961
    %965 = vrot.lane.b32.xlu0 %v790, 16
    %v966 = vpop.permute.xlu0 %965
    %969 = vrot.lane.b32.xlu0 %v957, 24
    %v970 = vpop.permute.xlu0 %969
    %v972 = vsel %vm291, %v456, %v962
    %vm973 = vcmask 130048
    %v974 = vsel %vm973, %v972, %v966
    %vm975 = vcmask 195584
    %v976 = vsel %vm975, %v974, %v970
    %978 = vrot.lane.b32.xlu0 %v285, 96
    %v979 = vpop.permute.xlu0 %978
    %v980 = vsel %vm291, %v285, 0
    %v982 = vsel %vm291, %v979, 0
    %984 = vmatprep.subr.mxu0 0.0
    %985 = vmatpush1.xpose.msra.mxu0 %v982
    %986 = vmatprep.subr.mxu0 0.0
    %987 = vmatpush1.xpose.msra.mxu0 0.0
    %988 = vmatprep.subr.mxu0 0.0
    %989 = vmatpush1.xpose.msra.mxu0 0.0
    %990 = vmatprep.subr.mxu0 0.0
    %991 = vmatpush1.xpose.msra.mxu0 0.0
    %992 = vmatprep.subr.mxu0 0.0
    %993 = vmatpush1.xpose.msra.mxu0 0.0
    %994 = vmatprep.subr.mxu0 0.0
    %995 = vmatpush1.xpose.msra.mxu0 0.0
    %996 = vmatprep.subr.mxu0 0.0
    %997 = vmatpush1.xpose.msra.mxu0 0.0
    %998 = vmatprep.subr.mxu0 0.0
    %999 = vmatpush1.xpose.msra.mxu0 0.0
    %1000 = vmatprep.subr.mxu0 0.0
    %1001 = vmatpush1.xpose.msra.mxu0 0.0
    %1002 = vmatprep.subr.mxu0 0.0
    %1003 = vmatpush1.xpose.msra.mxu0 0.0
    %1004 = vmatprep.subr.mxu0 0.0
    %1005 = vmatpush1.xpose.msra.mxu0 0.0
    %1006 = vmatprep.subr.mxu0 0.0
    %1007 = vmatpush1.xpose.msra.mxu0 0.0
    %1008 = vmatprep.subr.mxu0 0.0
    %1009 = vmatpush1.xpose.msra.mxu0 0.0
    %1010 = vmatprep.subr.mxu0 0.0
    %1011 = vmatpush1.xpose.msra.mxu0 0.0
    %1012 = vmatprep.subr.mxu0 0.0
    %1013 = vmatpush1.xpose.msra.mxu0 0.0
    %1014 = vmatprep.subr.mxu0 0.0
    %1015 = vmatpush1.xpose.msra.mxu0 0.0
    %1016 = vmatprep.subr.mxu0 0.0
    %1017 = vmatpush1.xpose.msra.mxu0 0.0
    %1018 = vmatprep.subr.mxu0 0.0
    %1019 = vmatpush1.xpose.msra.mxu0 0.0
    %1020 = vmatprep.subr.mxu0 0.0
    %1021 = vmatpush1.xpose.msra.mxu0 0.0
    %1022 = vmatprep.subr.mxu0 0.0
    %1023 = vmatpush1.xpose.msra.mxu0 0.0
    %1024 = vmatprep.subr.mxu0 0.0
    %1025 = vmatpush1.xpose.msra.mxu0 0.0
    %1026 = vmatprep.subr.mxu0 0.0
    %1027 = vmatpush1.xpose.msra.mxu0 0.0
    %1028 = vmatprep.subr.mxu0 0.0
    %1029 = vmatpush1.xpose.msra.mxu0 0.0
    %1030 = vmatprep.subr.mxu0 0.0
    %1031 = vmatpush1.xpose.msra.mxu0 0.0
    %1032 = vmatprep.subr.mxu0 0.0
    %1033 = vmatpush1.xpose.msra.mxu0 0.0
    %1034 = vmatprep.subr.mxu0 0.0
    %1035 = vmatpush1.xpose.msra.mxu0 0.0
    %1036 = vmatprep.subr.mxu0 0.0
    %1037 = vmatpush1.xpose.msra.mxu0 0.0
    %1038 = vmatprep.subr.mxu0 0.0
    %1039 = vmatpush1.xpose.msra.mxu0 0.0
    %1040 = vmatprep.subr.mxu0 0.0
    %1041 = vmatpush1.xpose.msra.mxu0 0.0
    %1042 = vmatprep.subr.mxu0 0.0
    %1043 = vmatpush1.xpose.msra.mxu0 0.0
    %1044 = vmatprep.subr.mxu0 0.0
    %1045 = vmatpush1.xpose.msra.mxu0 0.0
    %1046 = vmatprep.subr.mxu0 0.0
    %1047 = vmatpush1.xpose.msra.mxu0 0.0
    %1048 = vmatprep.mubr.f32.mxu0 0.0
    %1049 = vmatmul.mubr.f32.gmra.mrb[0].mxu0 %v980
    %v1050 = vpop.f32.mrb[0].mxu0
    %v1051 = vadd.f32 0.0, %v1050
    %v1052 = vpop.f32.mrb[0].mxu0
    %1053 = vdwg.mxu0
    %v1054 = vmul.f32 %v1051, 0.35355338
    %v1055 = vlaneseq
    %v1056 = vshrl.u32 %v1055, 7
    %v1057 = vsub.s32 1, %v1056
    %v1058 = vrot.slane %v195, %v1057
    %v1059 = vadd.f32 %v1054, %v1058
    %v1060 = vsel %vm291, %v1059, -inf
    %1061 = vmax.xlane.f32.xlu0 %v1060
    %v1062 = vpop.xlane.xlu0 %1061
    %v1063 = vsub.f32 %v1059, %v1062
    %v1064 = vmul.f32 %v1063, 1.442695
    %v1065 = vpow.pop %v1064
    %v1066 = vsel %vm291, %v1065, 0.0
    %1067 = vadd.xlane.f32.xlu0 %v1066
    %v1068 = vpop.xlane.xlu0 %1067
    %v1069 = vrcp.pop %v1068
    %v1070 = vmul.f32 %v1065, %v1069
    %1071 = vrot.lane.b32.xlu0 %v285, 64
    %v1072 = vpop.permute.xlu0 %1071
    %v1075 = vsel %vm291, %v1070, 0
    %1077 = vmatprep.subr.mxu0 0.0
    %1078 = vmatpush1.msra.mxu0 %v1072
    %1079 = vmatprep.subr.mxu0 0.0
    %1080 = vmatpush1.msra.mxu0 0.0
    %1081 = vmatprep.subr.mxu0 0.0
    %1082 = vmatpush1.msra.mxu0 0.0
    %1083 = vmatprep.subr.mxu0 0.0
    %1084 = vmatpush1.msra.mxu0 0.0
    %1085 = vmatprep.subr.mxu0 0.0
    %1086 = vmatpush1.msra.mxu0 0.0
    %1087 = vmatprep.subr.mxu0 0.0
    %1088 = vmatpush1.msra.mxu0 0.0
    %1089 = vmatprep.subr.mxu0 0.0
    %1090 = vmatpush1.msra.mxu0 0.0
    %1091 = vmatprep.subr.mxu0 0.0
    %1092 = vmatpush1.msra.mxu0 0.0
    %1093 = vmatprep.subr.mxu0 0.0
    %1094 = vmatpush1.msra.mxu0 0.0
    %1095 = vmatprep.subr.mxu0 0.0
    %1096 = vmatpush1.msra.mxu0 0.0
    %1097 = vmatprep.subr.mxu0 0.0
    %1098 = vmatpush1.msra.mxu0 0.0
    %1099 = vmatprep.subr.mxu0 0.0
    %1100 = vmatpush1.msra.mxu0 0.0
    %1101 = vmatprep.subr.mxu0 0.0
    %1102 = vmatpush1.msra.mxu0 0.0
    %1103 = vmatprep.subr.mxu0 0.0
    %1104 = vmatpush1.msra.mxu0 0.0
    %1105 = vmatprep.subr.mxu0 0.0
    %1106 = vmatpush1.msra.mxu0 0.0
    %1107 = vmatprep.subr.mxu0 0.0
    %1108 = vmatpush1.msra.mxu0 0.0
    %1109 = vmatprep.subr.mxu0 0.0
    %1110 = vmatpush1.msra.mxu0 0.0
    %1111 = vmatprep.subr.mxu0 0.0
    %1112 = vmatpush1.msra.mxu0 0.0
    %1113 = vmatprep.subr.mxu0 0.0
    %1114 = vmatpush1.msra.mxu0 0.0
    %1115 = vmatprep.subr.mxu0 0.0
    %1116 = vmatpush1.msra.mxu0 0.0
    %1117 = vmatprep.subr.mxu0 0.0
    %1118 = vmatpush1.msra.mxu0 0.0
    %1119 = vmatprep.subr.mxu0 0.0
    %1120 = vmatpush1.msra.mxu0 0.0
    %1121 = vmatprep.subr.mxu0 0.0
    %1122 = vmatpush1.msra.mxu0 0.0
    %1123 = vmatprep.subr.mxu0 0.0
    %1124 = vmatpush1.msra.mxu0 0.0
    %1125 = vmatprep.subr.mxu0 0.0
    %1126 = vmatpush1.msra.mxu0 0.0
    %1127 = vmatprep.subr.mxu0 0.0
    %1128 = vmatpush1.msra.mxu0 0.0
    %1129 = vmatprep.subr.mxu0 0.0
    %1130 = vmatpush1.msra.mxu0 0.0
    %1131 = vmatprep.subr.mxu0 0.0
    %1132 = vmatpush1.msra.mxu0 0.0
    %1133 = vmatprep.subr.mxu0 0.0
    %1134 = vmatpush1.msra.mxu0 0.0
    %1135 = vmatprep.subr.mxu0 0.0
    %1136 = vmatpush1.msra.mxu0 0.0
    %1137 = vmatprep.subr.mxu0 0.0
    %1138 = vmatpush1.msra.mxu0 0.0
    %1139 = vmatprep.subr.mxu0 0.0
    %1140 = vmatpush1.msra.mxu0 0.0
    %1141 = vmatprep.mubr.f32.mxu0 0.0
    %1142 = vmatmul.mubr.f32.gmra.mrb[0].mxu0 %v1075
    %v1143 = vpop.f32.mrb[0].mxu0
    %v1144 = vadd.f32 0.0, %v1143
    %v1145 = vpop.f32.mrb[0].mxu0
    %1146 = vdwg.mxu0
    %1147 = vrot.lane.b32.xlu0 %v285, 120
    %v1148 = vpop.permute.xlu0 %1147
    %1149 = vrot.lane.b32.xlu0 %v285, 88
    %v1150 = vpop.permute.xlu0 %1149
    %v1151 = vsel %vm291, %v1148, 0
    %v1153 = vsel %vm291, %v1150, 0
    %1155 = vmatprep.subr.mxu0 0.0
    %1156 = vmatpush1.xpose.msra.mxu0 %v1153
    %1157 = vmatprep.subr.mxu0 0.0
    %1158 = vmatpush1.xpose.msra.mxu0 0.0
    %1159 = vmatprep.subr.mxu0 0.0
    %1160 = vmatpush1.xpose.msra.mxu0 0.0
    %1161 = vmatprep.subr.mxu0 0.0
    %1162 = vmatpush1.xpose.msra.mxu0 0.0
    %1163 = vmatprep.subr.mxu0 0.0
    %1164 = vmatpush1.xpose.msra.mxu0 0.0
    %1165 = vmatprep.subr.mxu0 0.0
    %1166 = vmatpush1.xpose.msra.mxu0 0.0
    %1167 = vmatprep.subr.mxu0 0.0
    %1168 = vmatpush1.xpose.msra.mxu0 0.0
    %1169 = vmatprep.subr.mxu0 0.0
    %1170 = vmatpush1.xpose.msra.mxu0 0.0
    %1171 = vmatprep.subr.mxu0 0.0
    %1172 = vmatpush1.xpose.msra.mxu0 0.0
    %1173 = vmatprep.subr.mxu0 0.0
    %1174 = vmatpush1.xpose.msra.mxu0 0.0
    %1175 = vmatprep.subr.mxu0 0.0
    %1176 = vmatpush1.xpose.msra.mxu0 0.0
    %1177 = vmatprep.subr.mxu0 0.0
    %1178 = vmatpush1.xpose.msra.mxu0 0.0
    %1179 = vmatprep.subr.mxu0 0.0
    %1180 = vmatpush1.xpose.msra.mxu0 0.0
    %1181 = vmatprep.subr.mxu0 0.0
    %1182 = vmatpush1.xpose.msra.mxu0 0.0
    %1183 = vmatprep.subr.mxu0 0.0
    %1184 = vmatpush1.xpose.msra.mxu0 0.0
    %1185 = vmatprep.subr.mxu0 0.0
    %1186 = vmatpush1.xpose.msra.mxu0 0.0
    %1187 = vmatprep.subr.mxu0 0.0
    %1188 = vmatpush1.xpose.msra.mxu0 0.0
    %1189 = vmatprep.subr.mxu0 0.0
    %1190 = vmatpush1.xpose.msra.mxu0 0.0
    %1191 = vmatprep.subr.mxu0 0.0
    %1192 = vmatpush1.xpose.msra.mxu0 0.0
    %1193 = vmatprep.subr.mxu0 0.0
    %1194 = vmatpush1.xpose.msra.mxu0 0.0
    %1195 = vmatprep.subr.mxu0 0.0
    %1196 = vmatpush1.xpose.msra.mxu0 0.0
    %1197 = vmatprep.subr.mxu0 0.0
    %1198 = vmatpush1.xpose.msra.mxu0 0.0
    %1199 = vmatprep.subr.mxu0 0.0
    %1200 = vmatpush1.xpose.msra.mxu0 0.0
    %1201 = vmatprep.subr.mxu0 0.0
    %1202 = vmatpush1.xpose.msra.mxu0 0.0
    %1203 = vmatprep.subr.mxu0 0.0
    %1204 = vmatpush1.xpose.msra.mxu0 0.0
    %1205 = vmatprep.subr.mxu0 0.0
    %1206 = vmatpush1.xpose.msra.mxu0 0.0
    %1207 = vmatprep.subr.mxu0 0.0
    %1208 = vmatpush1.xpose.msra.mxu0 0.0
    %1209 = vmatprep.subr.mxu0 0.0
    %1210 = vmatpush1.xpose.msra.mxu0 0.0
    %1211 = vmatprep.subr.mxu0 0.0
    %1212 = vmatpush1.xpose.msra.mxu0 0.0
    %1213 = vmatprep.subr.mxu0 0.0
    %1214 = vmatpush1.xpose.msra.mxu0 0.0
    %1215 = vmatprep.subr.mxu0 0.0
    %1216 = vmatpush1.xpose.msra.mxu0 0.0
    %1217 = vmatprep.subr.mxu0 0.0
    %1218 = vmatpush1.xpose.msra.mxu0 0.0
    %1219 = vmatprep.mubr.f32.mxu0 0.0
    %1220 = vmatmul.mubr.f32.gmra.mrb[0].mxu0 %v1151
    %v1221 = vpop.f32.mrb[0].mxu0
    %v1222 = vadd.f32 0.0, %v1221
    %v1223 = vpop.f32.mrb[0].mxu0
    %1224 = vdwg.mxu0
    %v1225 = vmul.f32 %v1222, 0.35355338
    %v1226 = vadd.f32 %v1225, %v1058
    %v1227 = vsel %vm291, %v1226, -inf
    %1228 = vmax.xlane.f32.xlu0 %v1227
    %v1229 = vpop.xlane.xlu0 %1228
    %v1230 = vsub.f32 %v1226, %v1229
    %v1231 = vmul.f32 %v1230, 1.442695
    %v1232 = vpow.pop %v1231
    %v1233 = vsel %vm291, %v1232, 0.0
    %1234 = vadd.xlane.f32.xlu0 %v1233
    %v1235 = vpop.xlane.xlu0 %1234
    %v1236 = vrcp.pop %v1235
    %v1237 = vmul.f32 %v1232, %v1236
    %1238 = vrot.lane.b32.xlu0 %v285, 56
    %v1239 = vpop.permute.xlu0 %1238
    %v1242 = vsel %vm291, %v1237, 0
    %1244 = vmatprep.subr.mxu0 0.0
    %1245 = vmatpush1.msra.mxu0 %v1239
    %1246 = vmatprep.subr.mxu0 0.0
    %1247 = vmatpush1.msra.mxu0 0.0
    %1248 = vmatprep.subr.mxu0 0.0
    %1249 = vmatpush1.msra.mxu0 0.0
    %1250 = vmatprep.subr.mxu0 0.0
    %1251 = vmatpush1.msra.mxu0 0.0
    %1252 = vmatprep.subr.mxu0 0.0
    %1253 = vmatpush1.msra.mxu0 0.0
    %1254 = vmatprep.subr.mxu0 0.0
    %1255 = vmatpush1.msra.mxu0 0.0
    %1256 = vmatprep.subr.mxu0 0.0
    %1257 = vmatpush1.msra.mxu0 0.0
    %1258 = vmatprep.subr.mxu0 0.0
    %1259 = vmatpush1.msra.mxu0 0.0
    %1260 = vmatprep.subr.mxu0 0.0
    %1261 = vmatpush1.msra.mxu0 0.0
    %1262 = vmatprep.subr.mxu0 0.0
    %1263 = vmatpush1.msra.mxu0 0.0
    %1264 = vmatprep.subr.mxu0 0.0
    %1265 = vmatpush1.msra.mxu0 0.0
    %1266 = vmatprep.subr.mxu0 0.0
    %1267 = vmatpush1.msra.mxu0 0.0
    %1268 = vmatprep.subr.mxu0 0.0
    %1269 = vmatpush1.msra.mxu0 0.0
    %1270 = vmatprep.subr.mxu0 0.0
    %1271 = vmatpush1.msra.mxu0 0.0
    %1272 = vmatprep.subr.mxu0 0.0
    %1273 = vmatpush1.msra.mxu0 0.0
    %1274 = vmatprep.subr.mxu0 0.0
    %1275 = vmatpush1.msra.mxu0 0.0
    %1276 = vmatprep.subr.mxu0 0.0
    %1277 = vmatpush1.msra.mxu0 0.0
    %1278 = vmatprep.subr.mxu0 0.0
    %1279 = vmatpush1.msra.mxu0 0.0
    %1280 = vmatprep.subr.mxu0 0.0
    %1281 = vmatpush1.msra.mxu0 0.0
    %1282 = vmatprep.subr.mxu0 0.0
    %1283 = vmatpush1.msra.mxu0 0.0
    %1284 = vmatprep.subr.mxu0 0.0
    %1285 = vmatpush1.msra.mxu0 0.0
    %1286 = vmatprep.subr.mxu0 0.0
    %1287 = vmatpush1.msra.mxu0 0.0
    %1288 = vmatprep.subr.mxu0 0.0
    %1289 = vmatpush1.msra.mxu0 0.0
    %1290 = vmatprep.subr.mxu0 0.0
    %1291 = vmatpush1.msra.mxu0 0.0
    %1292 = vmatprep.subr.mxu0 0.0
    %1293 = vmatpush1.msra.mxu0 0.0
    %1294 = vmatprep.subr.mxu0 0.0
    %1295 = vmatpush1.msra.mxu0 0.0
    %1296 = vmatprep.subr.mxu0 0.0
    %1297 = vmatpush1.msra.mxu0 0.0
    %1298 = vmatprep.subr.mxu0 0.0
    %1299 = vmatpush1.msra.mxu0 0.0
    %1300 = vmatprep.subr.mxu0 0.0
    %1301 = vmatpush1.msra.mxu0 0.0
    %1302 = vmatprep.subr.mxu0 0.0
    %1303 = vmatpush1.msra.mxu0 0.0
    %1304 = vmatprep.subr.mxu0 0.0
    %1305 = vmatpush1.msra.mxu0 0.0
    %1306 = vmatprep.subr.mxu0 0.0
    %1307 = vmatpush1.msra.mxu0 0.0
    %1308 = vmatprep.mubr.f32.mxu0 0.0
    %1309 = vmatmul.mubr.f32.gmra.mrb[0].mxu0 %v1242
    %v1310 = vpop.f32.mrb[0].mxu0
    %v1311 = vadd.f32 0.0, %v1310
    %v1312 = vpop.f32.mrb[0].mxu0
    %1313 = vdwg.mxu0
    %1314 = vrot.lane.b32.xlu0 %v285, 112
    %v1315 = vpop.permute.xlu0 %1314
    %1316 = vrot.lane.b32.xlu0 %v285, 80
    %v1317 = vpop.permute.xlu0 %1316
    %v1318 = vsel %vm291, %v1315, 0
    %v1320 = vsel %vm291, %v1317, 0
    %1322 = vmatprep.subr.mxu0 0.0
    %1323 = vmatpush1.xpose.msra.mxu0 %v1320
    %1324 = vmatprep.subr.mxu0 0.0
    %1325 = vmatpush1.xpose.msra.mxu0 0.0
    %1326 = vmatprep.subr.mxu0 0.0
    %1327 = vmatpush1.xpose.msra.mxu0 0.0
    %1328 = vmatprep.subr.mxu0 0.0
    %1329 = vmatpush1.xpose.msra.mxu0 0.0
    %1330 = vmatprep.subr.mxu0 0.0
    %1331 = vmatpush1.xpose.msra.mxu0 0.0
    %1332 = vmatprep.subr.mxu0 0.0
    %1333 = vmatpush1.xpose.msra.mxu0 0.0
    %1334 = vmatprep.subr.mxu0 0.0
    %1335 = vmatpush1.xpose.msra.mxu0 0.0
    %1336 = vmatprep.subr.mxu0 0.0
    %1337 = vmatpush1.xpose.msra.mxu0 0.0
    %1338 = vmatprep.subr.mxu0 0.0
    %1339 = vmatpush1.xpose.msra.mxu0 0.0
    %1340 = vmatprep.subr.mxu0 0.0
    %1341 = vmatpush1.xpose.msra.mxu0 0.0
    %1342 = vmatprep.subr.mxu0 0.0
    %1343 = vmatpush1.xpose.msra.mxu0 0.0
    %1344 = vmatprep.subr.mxu0 0.0
    %1345 = vmatpush1.xpose.msra.mxu0 0.0
    %1346 = vmatprep.subr.mxu0 0.0
    %1347 = vmatpush1.xpose.msra.mxu0 0.0
    %1348 = vmatprep.subr.mxu0 0.0
    %1349 = vmatpush1.xpose.msra.mxu0 0.0
    %1350 = vmatprep.subr.mxu0 0.0
    %1351 = vmatpush1.xpose.msra.mxu0 0.0
    %1352 = vmatprep.subr.mxu0 0.0
    %1353 = vmatpush1.xpose.msra.mxu0 0.0
    %1354 = vmatprep.subr.mxu0 0.0
    %1355 = vmatpush1.xpose.msra.mxu0 0.0
    %1356 = vmatprep.subr.mxu0 0.0
    %1357 = vmatpush1.xpose.msra.mxu0 0.0
    %1358 = vmatprep.subr.mxu0 0.0
    %1359 = vmatpush1.xpose.msra.mxu0 0.0
    %1360 = vmatprep.subr.mxu0 0.0
    %1361 = vmatpush1.xpose.msra.mxu0 0.0
    %1362 = vmatprep.subr.mxu0 0.0
    %1363 = vmatpush1.xpose.msra.mxu0 0.0
    %1364 = vmatprep.subr.mxu0 0.0
    %1365 = vmatpush1.xpose.msra.mxu0 0.0
    %1366 = vmatprep.subr.mxu0 0.0
    %1367 = vmatpush1.xpose.msra.mxu0 0.0
    %1368 = vmatprep.subr.mxu0 0.0
    %1369 = vmatpush1.xpose.msra.mxu0 0.0
    %1370 = vmatprep.subr.mxu0 0.0
    %1371 = vmatpush1.xpose.msra.mxu0 0.0
    %1372 = vmatprep.subr.mxu0 0.0
    %1373 = vmatpush1.xpose.msra.mxu0 0.0
    %1374 = vmatprep.subr.mxu0 0.0
    %1375 = vmatpush1.xpose.msra.mxu0 0.0
    %1376 = vmatprep.subr.mxu0 0.0
    %1377 = vmatpush1.xpose.msra.mxu0 0.0
    %1378 = vmatprep.subr.mxu0 0.0
    %1379 = vmatpush1.xpose.msra.mxu0 0.0
    %1380 = vmatprep.subr.mxu0 0.0
    %1381 = vmatpush1.xpose.msra.mxu0 0.0
    %1382 = vmatprep.subr.mxu0 0.0
    %1383 = vmatpush1.xpose.msra.mxu0 0.0
    %1384 = vmatprep.subr.mxu0 0.0
    %1385 = vmatpush1.xpose.msra.mxu0 0.0
    %1386 = vmatprep.mubr.f32.mxu0 0.0
    %1387 = vmatmul.mubr.f32.gmra.mrb[0].mxu0 %v1318
    %v1388 = vpop.f32.mrb[0].mxu0
    %v1389 = vadd.f32 0.0, %v1388
    %v1390 = vpop.f32.mrb[0].mxu0
    %1391 = vdwg.mxu0
    %v1392 = vmul.f32 %v1389, 0.35355338
    %v1393 = vadd.f32 %v1392, %v1058
    %v1394 = vsel %vm291, %v1393, -inf
    %1395 = vmax.xlane.f32.xlu0 %v1394
    %v1396 = vpop.xlane.xlu0 %1395
    %v1397 = vsub.f32 %v1393, %v1396
    %v1398 = vmul.f32 %v1397, 1.442695
    %v1399 = vpow.pop %v1398
    %v1400 = vsel %vm291, %v1399, 0.0
    %1401 = vadd.xlane.f32.xlu0 %v1400
    %v1402 = vpop.xlane.xlu0 %1401
    %v1403 = vrcp.pop %v1402
    %v1404 = vmul.f32 %v1399, %v1403
    %1405 = vrot.lane.b32.xlu0 %v285, 48
    %v1406 = vpop.permute.xlu0 %1405
    %v1409 = vsel %vm291, %v1404, 0
    %1411 = vmatprep.subr.mxu0 0.0
    %1412 = vmatpush1.msra.mxu0 %v1406
    %1413 = vmatprep.subr.mxu0 0.0
    %1414 = vmatpush1.msra.mxu0 0.0
    %1415 = vmatprep.subr.mxu0 0.0
    %1416 = vmatpush1.msra.mxu0 0.0
    %1417 = vmatprep.subr.mxu0 0.0
    %1418 = vmatpush1.msra.mxu0 0.0
    %1419 = vmatprep.subr.mxu0 0.0
    %1420 = vmatpush1.msra.mxu0 0.0
    %1421 = vmatprep.subr.mxu0 0.0
    %1422 = vmatpush1.msra.mxu0 0.0
    %1423 = vmatprep.subr.mxu0 0.0
    %1424 = vmatpush1.msra.mxu0 0.0
    %1425 = vmatprep.subr.mxu0 0.0
    %1426 = vmatpush1.msra.mxu0 0.0
    %1427 = vmatprep.subr.mxu0 0.0
    %1428 = vmatpush1.msra.mxu0 0.0
    %1429 = vmatprep.subr.mxu0 0.0
    %1430 = vmatpush1.msra.mxu0 0.0
    %1431 = vmatprep.subr.mxu0 0.0
    %1432 = vmatpush1.msra.mxu0 0.0
    %1433 = vmatprep.subr.mxu0 0.0
    %1434 = vmatpush1.msra.mxu0 0.0
    %1435 = vmatprep.subr.mxu0 0.0
    %1436 = vmatpush1.msra.mxu0 0.0
    %1437 = vmatprep.subr.mxu0 0.0
    %1438 = vmatpush1.msra.mxu0 0.0
    %1439 = vmatprep.subr.mxu0 0.0
    %1440 = vmatpush1.msra.mxu0 0.0
    %1441 = vmatprep.subr.mxu0 0.0
    %1442 = vmatpush1.msra.mxu0 0.0
    %1443 = vmatprep.subr.mxu0 0.0
    %1444 = vmatpush1.msra.mxu0 0.0
    %1445 = vmatprep.subr.mxu0 0.0
    %1446 = vmatpush1.msra.mxu0 0.0
    %1447 = vmatprep.subr.mxu0 0.0
    %1448 = vmatpush1.msra.mxu0 0.0
    %1449 = vmatprep.subr.mxu0 0.0
    %1450 = vmatpush1.msra.mxu0 0.0
    %1451 = vmatprep.subr.mxu0 0.0
    %1452 = vmatpush1.msra.mxu0 0.0
    %1453 = vmatprep.subr.mxu0 0.0
    %1454 = vmatpush1.msra.mxu0 0.0
    %1455 = vmatprep.subr.mxu0 0.0
    %1456 = vmatpush1.msra.mxu0 0.0
    %1457 = vmatprep.subr.mxu0 0.0
    %1458 = vmatpush1.msra.mxu0 0.0
    %1459 = vmatprep.subr.mxu0 0.0
    %1460 = vmatpush1.msra.mxu0 0.0
    %1461 = vmatprep.subr.mxu0 0.0
    %1462 = vmatpush1.msra.mxu0 0.0
    %1463 = vmatprep.subr.mxu0 0.0
    %1464 = vmatpush1.msra.mxu0 0.0
    %1465 = vmatprep.subr.mxu0 0.0
    %1466 = vmatpush1.msra.mxu0 0.0
    %1467 = vmatprep.subr.mxu0 0.0
    %1468 = vmatpush1.msra.mxu0 0.0
    %1469 = vmatprep.subr.mxu0 0.0
    %1470 = vmatpush1.msra.mxu0 0.0
    %1471 = vmatprep.subr.mxu0 0.0
    %1472 = vmatpush1.msra.mxu0 0.0
    %1473 = vmatprep.subr.mxu0 0.0
    %1474 = vmatpush1.msra.mxu0 0.0
    %1475 = vmatprep.mubr.f32.mxu0 0.0
    %1476 = vmatmul.mubr.f32.gmra.mrb[0].mxu0 %v1409
    %v1477 = vpop.f32.mrb[0].mxu0
    %v1478 = vadd.f32 0.0, %v1477
    %v1479 = vpop.f32.mrb[0].mxu0
    %1480 = vdwg.mxu0
    %1481 = vrot.lane.b32.xlu0 %v285, 104
    %v1482 = vpop.permute.xlu0 %1481
    %1483 = vrot.lane.b32.xlu0 %v285, 72
    %v1484 = vpop.permute.xlu0 %1483
    %v1485 = vsel %vm291, %v1482, 0
    %v1487 = vsel %vm291, %v1484, 0
    %1489 = vmatprep.subr.mxu0 0.0
    %1490 = vmatpush1.xpose.msra.mxu0 %v1487
    %1491 = vmatprep.subr.mxu0 0.0
    %1492 = vmatpush1.xpose.msra.mxu0 0.0
    %1493 = vmatprep.subr.mxu0 0.0
    %1494 = vmatpush1.xpose.msra.mxu0 0.0
    %1495 = vmatprep.subr.mxu0 0.0
    %1496 = vmatpush1.xpose.msra.mxu0 0.0
    %1497 = vmatprep.subr.mxu0 0.0
    %1498 = vmatpush1.xpose.msra.mxu0 0.0
    %1499 = vmatprep.subr.mxu0 0.0
    %1500 = vmatpush1.xpose.msra.mxu0 0.0
    %1501 = vmatprep.subr.mxu0 0.0
    %1502 = vmatpush1.xpose.msra.mxu0 0.0
    %1503 = vmatprep.subr.mxu0 0.0
    %1504 = vmatpush1.xpose.msra.mxu0 0.0
    %1505 = vmatprep.subr.mxu0 0.0
    %1506 = vmatpush1.xpose.msra.mxu0 0.0
    %1507 = vmatprep.subr.mxu0 0.0
    %1508 = vmatpush1.xpose.msra.mxu0 0.0
    %1509 = vmatprep.subr.mxu0 0.0
    %1510 = vmatpush1.xpose.msra.mxu0 0.0
    %1511 = vmatprep.subr.mxu0 0.0
    %1512 = vmatpush1.xpose.msra.mxu0 0.0
    %1513 = vmatprep.subr.mxu0 0.0
    %1514 = vmatpush1.xpose.msra.mxu0 0.0
    %1515 = vmatprep.subr.mxu0 0.0
    %1516 = vmatpush1.xpose.msra.mxu0 0.0
    %1517 = vmatprep.subr.mxu0 0.0
    %1518 = vmatpush1.xpose.msra.mxu0 0.0
    %1519 = vmatprep.subr.mxu0 0.0
    %1520 = vmatpush1.xpose.msra.mxu0 0.0
    %1521 = vmatprep.subr.mxu0 0.0
    %1522 = vmatpush1.xpose.msra.mxu0 0.0
    %1523 = vmatprep.subr.mxu0 0.0
    %1524 = vmatpush1.xpose.msra.mxu0 0.0
    %1525 = vmatprep.subr.mxu0 0.0
    %1526 = vmatpush1.xpose.msra.mxu0 0.0
    %1527 = vmatprep.subr.mxu0 0.0
    %1528 = vmatpush1.xpose.msra.mxu0 0.0
    %1529 = vmatprep.subr.mxu0 0.0
    %1530 = vmatpush1.xpose.msra.mxu0 0.0
    %1531 = vmatprep.subr.mxu0 0.0
    %1532 = vmatpush1.xpose.msra.mxu0 0.0
    %1533 = vmatprep.subr.mxu0 0.0
    %1534 = vmatpush1.xpose.msra.mxu0 0.0
    %1535 = vmatprep.subr.mxu0 0.0
    %1536 = vmatpush1.xpose.msra.mxu0 0.0
    %1537 = vmatprep.subr.mxu0 0.0
    %1538 = vmatpush1.xpose.msra.mxu0 0.0
    %1539 = vmatprep.subr.mxu0 0.0
    %1540 = vmatpush1.xpose.msra.mxu0 0.0
    %1541 = vmatprep.subr.mxu0 0.0
    %1542 = vmatpush1.xpose.msra.mxu0 0.0
    %1543 = vmatprep.subr.mxu0 0.0
    %1544 = vmatpush1.xpose.msra.mxu0 0.0
    %1545 = vmatprep.subr.mxu0 0.0
    %1546 = vmatpush1.xpose.msra.mxu0 0.0
    %1547 = vmatprep.subr.mxu0 0.0
    %1548 = vmatpush1.xpose.msra.mxu0 0.0
    %1549 = vmatprep.subr.mxu0 0.0
    %1550 = vmatpush1.xpose.msra.mxu0 0.0
    %1551 = vmatprep.subr.mxu0 0.0
    %1552 = vmatpush1.xpose.msra.mxu0 0.0
    %1553 = vmatprep.mubr.f32.mxu0 0.0
    %1554 = vmatmul.mubr.f32.gmra.mrb[0].mxu0 %v1485
    %v1555 = vpop.f32.mrb[0].mxu0
    %v1556 = vadd.f32 0.0, %v1555
    %v1557 = vpop.f32.mrb[0].mxu0
    %1558 = vdwg.mxu0
    %v1559 = vmul.f32 %v1556, 0.35355338
    %v1560 = vadd.f32 %v1559, %v1058
    %v1561 = vsel %vm291, %v1560, -inf
    %1562 = vmax.xlane.f32.xlu0 %v1561
    %v1563 = vpop.xlane.xlu0 %1562
    %v1564 = vsub.f32 %v1560, %v1563
    %v1565 = vmul.f32 %v1564, 1.442695
    %v1566 = vpow.pop %v1565
    %v1567 = vsel %vm291, %v1566, 0.0
    %1568 = vadd.xlane.f32.xlu0 %v1567
    %v1569 = vpop.xlane.xlu0 %1568
    %v1570 = vrcp.pop %v1569
    %v1571 = vmul.f32 %v1566, %v1570
    %1572 = vrot.lane.b32.xlu0 %v285, 40
    %v1573 = vpop.permute.xlu0 %1572
    %v1576 = vsel %vm291, %v1571, 0
    %1578 = vmatprep.subr.mxu0 0.0
    %1579 = vmatpush1.msra.mxu0 %v1573
    %1580 = vmatprep.subr.mxu0 0.0
    %1581 = vmatpush1.msra.mxu0 0.0
    %1582 = vmatprep.subr.mxu0 0.0
    %1583 = vmatpush1.msra.mxu0 0.0
    %1584 = vmatprep.subr.mxu0 0.0
    %1585 = vmatpush1.msra.mxu0 0.0
    %1586 = vmatprep.subr.mxu0 0.0
    %1587 = vmatpush1.msra.mxu0 0.0
    %1588 = vmatprep.subr.mxu0 0.0
    %1589 = vmatpush1.msra.mxu0 0.0
    %1590 = vmatprep.subr.mxu0 0.0
    %1591 = vmatpush1.msra.mxu0 0.0
    %1592 = vmatprep.subr.mxu0 0.0
    %1593 = vmatpush1.msra.mxu0 0.0
    %1594 = vmatprep.subr.mxu0 0.0
    %1595 = vmatpush1.msra.mxu0 0.0
    %1596 = vmatprep.subr.mxu0 0.0
    %1597 = vmatpush1.msra.mxu0 0.0
    %1598 = vmatprep.subr.mxu0 0.0
    %1599 = vmatpush1.msra.mxu0 0.0
    %1600 = vmatprep.subr.mxu0 0.0
    %1601 = vmatpush1.msra.mxu0 0.0
    %1602 = vmatprep.subr.mxu0 0.0
    %1603 = vmatpush1.msra.mxu0 0.0
    %1604 = vmatprep.subr.mxu0 0.0
    %1605 = vmatpush1.msra.mxu0 0.0
    %1606 = vmatprep.subr.mxu0 0.0
    %1607 = vmatpush1.msra.mxu0 0.0
    %1608 = vmatprep.subr.mxu0 0.0
    %1609 = vmatpush1.msra.mxu0 0.0
    %1610 = vmatprep.subr.mxu0 0.0
    %1611 = vmatpush1.msra.mxu0 0.0
    %1612 = vmatprep.subr.mxu0 0.0
    %1613 = vmatpush1.msra.mxu0 0.0
    %1614 = vmatprep.subr.mxu0 0.0
    %1615 = vmatpush1.msra.mxu0 0.0
    %1616 = vmatprep.subr.mxu0 0.0
    %1617 = vmatpush1.msra.mxu0 0.0
    %1618 = vmatprep.subr.mxu0 0.0
    %1619 = vmatpush1.msra.mxu0 0.0
    %1620 = vmatprep.subr.mxu0 0.0
    %1621 = vmatpush1.msra.mxu0 0.0
    %1622 = vmatprep.subr.mxu0 0.0
    %1623 = vmatpush1.msra.mxu0 0.0
    %1624 = vmatprep.subr.mxu0 0.0
    %1625 = vmatpush1.msra.mxu0 0.0
    %1626 = vmatprep.subr.mxu0 0.0
    %1627 = vmatpush1.msra.mxu0 0.0
    %1628 = vmatprep.subr.mxu0 0.0
    %1629 = vmatpush1.msra.mxu0 0.0
    %1630 = vmatprep.subr.mxu0 0.0
    %1631 = vmatpush1.msra.mxu0 0.0
    %1632 = vmatprep.subr.mxu0 0.0
    %1633 = vmatpush1.msra.mxu0 0.0
    %1634 = vmatprep.subr.mxu0 0.0
    %1635 = vmatpush1.msra.mxu0 0.0
    %1636 = vmatprep.subr.mxu0 0.0
    %1637 = vmatpush1.msra.mxu0 0.0
    %1638 = vmatprep.subr.mxu0 0.0
    %1639 = vmatpush1.msra.mxu0 0.0
    %1640 = vmatprep.subr.mxu0 0.0
    %1641 = vmatpush1.msra.mxu0 0.0
    %1642 = vmatprep.mubr.f32.mxu0 0.0
    %1643 = vmatmul.mubr.f32.gmra.mrb[0].mxu0 %v1576
    %v1644 = vpop.f32.mrb[0].mxu0
    %v1645 = vadd.f32 0.0, %v1644
    %v1646 = vpop.f32.mrb[0].mxu0
    %1647 = vdwg.mxu0
    %1649 = vrot.lane.b32.xlu0 %v1311, 8
    %v1650 = vpop.permute.xlu0 %1649
    %1653 = vrot.lane.b32.xlu0 %v1478, 16
    %v1654 = vpop.permute.xlu0 %1653
    %1657 = vrot.lane.b32.xlu0 %v1645, 24
    %v1658 = vpop.permute.xlu0 %1657
    %v1660 = vsel %vm291, %v1144, %v1650
    %v1661 = vsel %vm973, %v1660, %v1654
    %v1662 = vsel %vm975, %v1661, %v1658
    %v1663 = vld [vmem:[%s15] sm:$0xff]
    %v1664 = vld [vmem:[%s15 + $0x8] sm:$0xff]
    %v1665 = vld [vmem:[%s15 + $0x10] sm:$0xff]
    %v1666 = vld [vmem:[%s15 + $0x18] sm:$0xff]
    %v1667 = vld [vmem:[%s17] sm:$0x1]
    %v1669 = vlaneseq
    %v1670 = vshrl.u32 %v1669, 7
    %v1671 = vsub.s32 0, %v1670
    %v1672 = vrot.slane %v1667, %v1671
    %v1675 = vsel %vm151, %v976, 0
    %v1678 = vsel %vm151, %v1662, 0
    %1680 = vmatprep.subr.mxu0 0.0
    %1681 = vmatpush1.msra.mxu0 %v1663
    %1682 = vmatprep.subr.mxu0 0.0
    %1683 = vmatpush1.msra.mxu0 %v1664
    %1684 = vmatprep.subr.mxu0 0.0
    %1685 = vmatpush1.msra.mxu0 %v1665
    %1686 = vmatprep.subr.mxu0 0.0
    %1687 = vmatpush1.msra.mxu0 %v1666
    %1688 = vmatprep.subr.mxu0 0.0
    %1689 = vmatpush1.msra.mxu0 0.0
    %1690 = vmatprep.subr.mxu0 0.0
    %1691 = vmatpush1.msra.mxu0 0.0
    %1692 = vmatprep.subr.mxu0 0.0
    %1693 = vmatpush1.msra.mxu0 0.0
    %1694 = vmatprep.subr.mxu0 0.0
    %1695 = vmatpush1.msra.mxu0 0.0
    %1696 = vmatprep.subr.mxu0 0.0
    %1697 = vmatpush1.msra.mxu0 0.0
    %1698 = vmatprep.subr.mxu0 0.0
    %1699 = vmatpush1.msra.mxu0 0.0
    %1700 = vmatprep.subr.mxu0 0.0
    %1701 = vmatpush1.msra.mxu0 0.0
    %1702 = vmatprep.subr.mxu0 0.0
    %1703 = vmatpush1.msra.mxu0 0.0
    %1704 = vmatprep.subr.mxu0 0.0
    %1705 = vmatpush1.msra.mxu0 0.0
    %1706 = vmatprep.subr.mxu0 0.0
    %1707 = vmatpush1.msra.mxu0 0.0
    %1708 = vmatprep.subr.mxu0 0.0
    %1709 = vmatpush1.msra.mxu0 0.0
    %1710 = vmatprep.subr.mxu0 0.0
    %1711 = vmatpush1.msra.mxu0 0.0
    %1712 = vmatprep.subr.mxu0 0.0
    %1713 = vmatpush1.msra.mxu0 0.0
    %1714 = vmatprep.subr.mxu0 0.0
    %1715 = vmatpush1.msra.mxu0 0.0
    %1716 = vmatprep.subr.mxu0 0.0
    %1717 = vmatpush1.msra.mxu0 0.0
    %1718 = vmatprep.subr.mxu0 0.0
    %1719 = vmatpush1.msra.mxu0 0.0
    %1720 = vmatprep.subr.mxu0 0.0
    %1721 = vmatpush1.msra.mxu0 0.0
    %1722 = vmatprep.subr.mxu0 0.0
    %1723 = vmatpush1.msra.mxu0 0.0
    %1724 = vmatprep.subr.mxu0 0.0
    %1725 = vmatpush1.msra.mxu0 0.0
    %1726 = vmatprep.subr.mxu0 0.0
    %1727 = vmatpush1.msra.mxu0 0.0
    %1728 = vmatprep.subr.mxu0 0.0
    %1729 = vmatpush1.msra.mxu0 0.0
    %1730 = vmatprep.subr.mxu0 0.0
    %1731 = vmatpush1.msra.mxu0 0.0
    %1732 = vmatprep.subr.mxu0 0.0
    %1733 = vmatpush1.msra.mxu0 0.0
    %1734 = vmatprep.subr.mxu0 0.0
    %1735 = vmatpush1.msra.mxu0 0.0
    %1736 = vmatprep.subr.mxu0 0.0
    %1737 = vmatpush1.msra.mxu0 0.0
    %1738 = vmatprep.subr.mxu0 0.0
    %1739 = vmatpush1.msra.mxu0 0.0
    %1740 = vmatprep.subr.mxu0 0.0
    %1741 = vmatpush1.msra.mxu0 0.0
    %1742 = vmatprep.subr.mxu0 0.0
    %1743 = vmatpush1.msra.mxu0 0.0
    %1744 = vmatprep.mubr.f32.mxu0 0.0
    %1745 = vmatmul.mubr.f32.gmra.mrb[0].mxu0 %v1675
    %v1746 = vpop.f32.mrb[0].mxu0
    %v1747 = vadd.f32 %v1672, %v1746
    %v1748 = vpop.f32.mrb[0].mxu0
    %1749 = vmatprep.mubr.f32.mxu0 0.0
    %1750 = vmatmul.mubr.f32.gmra.mrb[0].mxu0 %v1678
    %v1751 = vpop.f32.mrb[0].mxu0
    %v1752 = vadd.f32 %v1672, %v1751
    %v1753 = vpop.f32.mrb[0].mxu0
    %1754 = vdwg.mxu0
    %v1755 = vadd.f32 %v1747, %v193
    %v1756 = vadd.f32 %v1752, %v194
    %v1757 = vld [vmem:[%s19] sm:$0x1]
    %v1758 = vld [vmem:[%s21] sm:$0x1]
    %v1759 = vsel %vm151, %v1755, 0.0
    %1760 = vadd.xlane.f32.xlu0 %v1759
    %v1761 = vpop.xlane.xlu0 %1760
    %v1762 = vsel %vm151, %v1756, 0.0
    %1763 = vadd.xlane.f32.xlu0 %v1762
    %v1764 = vpop.xlane.xlu0 %1763
    %v1765 = vmul.f32 %v1761, %v158
    %v1766 = vmul.f32 %v1764, %v158
    %v1767 = vsub.f32 %v1755, %v1765
    %v1768 = vsub.f32 %v1756, %v1766
    %v1769 = vmul.f32 %v1767, %v1767
    %v1770 = vmul.f32 %v1768, %v1768
    %v1771 = vsel %vm151, %v1769, 0.0
    %1772 = vadd.xlane.f32.xlu0 %v1771
    %v1773 = vpop.xlane.xlu0 %1772
    %v1774 = vsel %vm151, %v1770, 0.0
    %1775 = vadd.xlane.f32.xlu0 %v1774
    %v1776 = vpop.xlane.xlu0 %1775
    %v1777 = vmul.f32 %v1773, %v158
    %v1778 = vmul.f32 %v1776, %v158
    %v1779 = vadd.f32 %v1777, 1e-05
    %v1780 = vadd.f32 %v1778, 1e-05
    %v1781 = vrsqrt.pop %v1779
    %v1782 = vrsqrt.pop %v1780
    %v1783 = vmul.f32 %v1767, %v1781
    %v1784 = vmul.f32 %v1768, %v1782
    %v1786 = vlaneseq
    %v1787 = vshrl.u32 %v1786, 7
    %v1788 = vsub.s32 0, %v1787
    %v1789 = vrot.slane %v1757, %v1788
    %v1791 = vmul.f32 %v1783, %v1789
    %v1792 = vmul.f32 %v1784, %v1789
    %v1794 = vlaneseq
    %v1795 = vshrl.u32 %v1794, 7
    %v1796 = vsub.s32 0, %v1795
    %v1797 = vrot.slane %v1758, %v1796
    %v1799 = vadd.f32 %v1791, %v1797
    %v1800 = vadd.f32 %v1792, %v1797
    %v1801 = vld [vmem:[%s23] sm:$0xff]
    %v1802 = vld [vmem:[%s23 + $0x8] sm:$0xff]
    %v1803 = vld [vmem:[%s23 + $0x10] sm:$0xff]
    %v1804 = vld [vmem:[%s23 + $0x18] sm:$0xff]
    %v1805 = vld [vmem:[%s25] sm:$0x1]
    %v1807 = vlaneseq
    %v1808 = vshrl.u32 %v1807, 7
    %v1809 = vsub.s32 0, %v1808
    %v1810 = vrot.slane %v1805, %v1809
    %v1813 = vsel %vm151, %v1799, 0
    %v1816 = vsel %vm151, %v1800, 0
    %1818 = vmatprep.subr.mxu0 0.0
    %1819 = vmatpush1.msra.mxu0 %v1801
    %1820 = vmatprep.subr.mxu0 0.0
    %1821 = vmatpush1.msra.mxu0 %v1802
    %1822 = vmatprep.subr.mxu0 0.0
    %1823 = vmatpush1.msra.mxu0 %v1803
    %1824 = vmatprep.subr.mxu0 0.0
    %1825 = vmatpush1.msra.mxu0 %v1804
    %1826 = vmatprep.subr.mxu0 0.0
    %1827 = vmatpush1.msra.mxu0 0.0
    %1828 = vmatprep.subr.mxu0 0.0
    %1829 = vmatpush1.msra.mxu0 0.0
    %1830 = vmatprep.subr.mxu0 0.0
    %1831 = vmatpush1.msra.mxu0 0.0
    %1832 = vmatprep.subr.mxu0 0.0
    %1833 = vmatpush1.msra.mxu0 0.0
    %1834 = vmatprep.subr.mxu0 0.0
    %1835 = vmatpush1.msra.mxu0 0.0
    %1836 = vmatprep.subr.mxu0 0.0
    %1837 = vmatpush1.msra.mxu0 0.0
    %1838 = vmatprep.subr.mxu0 0.0
    %1839 = vmatpush1.msra.mxu0 0.0
    %1840 = vmatprep.subr.mxu0 0.0
    %1841 = vmatpush1.msra.mxu0 0.0
    %1842 = vmatprep.subr.mxu0 0.0
    %1843 = vmatpush1.msra.mxu0 0.0
    %1844 = vmatprep.subr.mxu0 0.0
    %1845 = vmatpush1.msra.mxu0 0.0
    %1846 = vmatprep.subr.mxu0 0.0
    %1847 = vmatpush1.msra.mxu0 0.0
    %1848 = vmatprep.subr.mxu0 0.0
    %1849 = vmatpush1.msra.mxu0 0.0
    %1850 = vmatprep.subr.mxu0 0.0
    %1851 = vmatpush1.msra.mxu0 0.0
    %1852 = vmatprep.subr.mxu0 0.0
    %1853 = vmatpush1.msra.mxu0 0.0
    %1854 = vmatprep.subr.mxu0 0.0
    %1855 = vmatpush1.msra.mxu0 0.0
    %1856 = vmatprep.subr.mxu0 0.0
    %1857 = vmatpush1.msra.mxu0 0.0
    %1858 = vmatprep.subr.mxu0 0.0
    %1859 = vmatpush1.msra.mxu0 0.0
    %1860 = vmatprep.subr.mxu0 0.0
    %1861 = vmatpush1.msra.mxu0 0.0
    %1862 = vmatprep.subr.mxu0 0.0
    %1863 = vmatpush1.msra.mxu0 0.0
    %1864 = vmatprep.subr.mxu0 0.0
    %1865 = vmatpush1.msra.mxu0 0.0
    %1866 = vmatprep.subr.mxu0 0.0
    %1867 = vmatpush1.msra.mxu0 0.0
    %1868 = vmatprep.subr.mxu0 0.0
    %1869 = vmatpush1.msra.mxu0 0.0
    %1870 = vmatprep.subr.mxu0 0.0
    %1871 = vmatpush1.msra.mxu0 0.0
    %1872 = vmatprep.subr.mxu0 0.0
    %1873 = vmatpush1.msra.mxu0 0.0
    %1874 = vmatprep.subr.mxu0 0.0
    %1875 = vmatpush1.msra.mxu0 0.0
    %1876 = vmatprep.subr.mxu0 0.0
    %1877 = vmatpush1.msra.mxu0 0.0
    %1878 = vmatprep.subr.mxu0 0.0
    %1879 = vmatpush1.msra.mxu0 0.0
    %1880 = vmatprep.subr.mxu0 0.0
    %1881 = vmatpush1.msra.mxu0 0.0
    %1882 = vmatprep.mubr.f32.mxu0 0.0
    %1883 = vmatmul.mubr.f32.gmra.mrb[0].mxu0 %v1813
    %v1884 = vpop.f32.mrb[0].mxu0
    %v1885 = vadd.f32 %v1810, %v1884
    %v1886 = vpop.f32.mrb[0].mxu0
    %1887 = vmatprep.mubr.f32.mxu0 0.0
    %1888 = vmatmul.mubr.f32.gmra.mrb[0].mxu0 %v1816
    %v1889 = vpop.f32.mrb[0].mxu0
    %v1890 = vadd.f32 %v1810, %v1889
    %v1891 = vpop.f32.mrb[0].mxu0
    %1892 = vdwg.mxu0
    %v1893 = vmax.f32 %v1885, 0.0
    %v1894 = vmax.f32 %v1890, 0.0
    %v1895 = vld [vmem:[%s27] sm:$0xff]
    %v1896 = vld [vmem:[%s27 + $0x8] sm:$0xff]
    %v1897 = vld [vmem:[%s27 + $0x10] sm:$0xff]
    %v1898 = vld [vmem:[%s27 + $0x18] sm:$0xff]
    %v1899 = vld [vmem:[%s27 + $0x20] sm:$0xff]
    %v1900 = vld [vmem:[%s27 + $0x28] sm:$0xff]
    %v1901 = vld [vmem:[%s27 + $0x30] sm:$0xff]
    %v1902 = vld [vmem:[%s27 + $0x38] sm:$0xff]
    %v1903 = vld [vmem:[%s27 + $0x40] sm:$0xff]
    %v1904 = vld [vmem:[%s27 + $0x48] sm:$0xff]
    %v1905 = vld [vmem:[%s27 + $0x50] sm:$0xff]
    %v1906 = vld [vmem:[%s27 + $0x58] sm:$0xff]
    %v1907 = vld [vmem:[%s27 + $0x60] sm:$0xff]
    %v1908 = vld [vmem:[%s27 + $0x68] sm:$0xff]
    %v1909 = vld [vmem:[%s27 + $0x70] sm:$0xff]
    %v1910 = vld [vmem:[%s27 + $0x78] sm:$0xff]
    %v1911 = vld [vmem:[%s29] sm:$0x1]
    %v1913 = vlaneseq
    %v1914 = vshrl.u32 %v1913, 7
    %v1915 = vsub.s32 0, %v1914
    %v1916 = vrot.slane %v1911, %v1915
    %1918 = vmatprep.subr.mxu0 0.0
    %1919 = vmatpush1.msra.mxu0 %v1895
    %1920 = vmatprep.subr.mxu0 0.0
    %1921 = vmatpush1.msra.mxu0 %v1896
    %1922 = vmatprep.subr.mxu0 0.0
    %1923 = vmatpush1.msra.mxu0 %v1897
    %1924 = vmatprep.subr.mxu0 0.0
    %1925 = vmatpush1.msra.mxu0 %v1898
    %1926 = vmatprep.subr.mxu0 0.0
    %1927 = vmatpush1.msra.mxu0 %v1899
    %1928 = vmatprep.subr.mxu0 0.0
    %1929 = vmatpush1.msra.mxu0 %v1900
    %1930 = vmatprep.subr.mxu0 0.0
    %1931 = vmatpush1.msra.mxu0 %v1901
    %1932 = vmatprep.subr.mxu0 0.0
    %1933 = vmatpush1.msra.mxu0 %v1902
    %1934 = vmatprep.subr.mxu0 0.0
    %1935 = vmatpush1.msra.mxu0 %v1903
    %1936 = vmatprep.subr.mxu0 0.0
    %1937 = vmatpush1.msra.mxu0 %v1904
    %1938 = vmatprep.subr.mxu0 0.0
    %1939 = vmatpush1.msra.mxu0 %v1905
    %1940 = vmatprep.subr.mxu0 0.0
    %1941 = vmatpush1.msra.mxu0 %v1906
    %1942 = vmatprep.subr.mxu0 0.0
    %1943 = vmatpush1.msra.mxu0 %v1907
    %1944 = vmatprep.subr.mxu0 0.0
    %1945 = vmatpush1.msra.mxu0 %v1908
    %1946 = vmatprep.subr.mxu0 0.0
    %1947 = vmatpush1.msra.mxu0 %v1909
    %1948 = vmatprep.subr.mxu0 0.0
    %1949 = vmatpush1.msra.mxu0 %v1910
    %1950 = vmatprep.subr.mxu0 0.0
    %1951 = vmatpush1.msra.mxu0 0.0
    %1952 = vmatprep.subr.mxu0 0.0
    %1953 = vmatpush1.msra.mxu0 0.0
    %1954 = vmatprep.subr.mxu0 0.0
    %1955 = vmatpush1.msra.mxu0 0.0
    %1956 = vmatprep.subr.mxu0 0.0
    %1957 = vmatpush1.msra.mxu0 0.0
    %1958 = vmatprep.subr.mxu0 0.0
    %1959 = vmatpush1.msra.mxu0 0.0
    %1960 = vmatprep.subr.mxu0 0.0
    %1961 = vmatpush1.msra.mxu0 0.0
    %1962 = vmatprep.subr.mxu0 0.0
    %1963 = vmatpush1.msra.mxu0 0.0
    %1964 = vmatprep.subr.mxu0 0.0
    %1965 = vmatpush1.msra.mxu0 0.0
    %1966 = vmatprep.subr.mxu0 0.0
    %1967 = vmatpush1.msra.mxu0 0.0
    %1968 = vmatprep.subr.mxu0 0.0
    %1969 = vmatpush1.msra.mxu0 0.0
    %1970 = vmatprep.subr.mxu0 0.0
    %1971 = vmatpush1.msra.mxu0 0.0
    %1972 = vmatprep.subr.mxu0 0.0
    %1973 = vmatpush1.msra.mxu0 0.0
    %1974 = vmatprep.subr.mxu0 0.0
    %1975 = vmatpush1.msra.mxu0 0.0
    %1976 = vmatprep.subr.mxu0 0.0
    %1977 = vmatpush1.msra.mxu0 0.0
    %1978 = vmatprep.subr.mxu0 0.0
    %1979 = vmatpush1.msra.mxu0 0.0
    %1980 = vmatprep.subr.mxu0 0.0
    %1981 = vmatpush1.msra.mxu0 0.0
    %1982 = vmatprep.mubr.f32.mxu0 0.0
    %1983 = vmatmul.mubr.f32.gmra.mrb[0].mxu0 %v1893
    %v1984 = vpop.f32.mrb[0].mxu0
    %v1985 = vadd.f32 %v1916, %v1984
    %v1986 = vpop.f32.mrb[0].mxu0
    %1987 = vmatprep.mubr.f32.mxu0 0.0
    %1988 = vmatmul.mubr.f32.gmra.mrb[0].mxu0 %v1894
    %v1989 = vpop.f32.mrb[0].mxu0
    %v1990 = vadd.f32 %v1916, %v1989
    %v1991 = vpop.f32.mrb[0].mxu0
    %1992 = vdwg.mxu0
    %v1993 = vadd.f32 %v1985, %v1799
    %v1994 = vadd.f32 %v1990, %v1800
    %v1995 = vld [vmem:[%s31] sm:$0x1]
    %v1996 = vld [vmem:[%s33] sm:$0x1]
    %v1997 = vsel %vm151, %v1993, 0.0
    %1998 = vadd.xlane.f32.xlu0 %v1997
    %v1999 = vpop.xlane.xlu0 %1998
    %v2000 = vsel %vm151, %v1994, 0.0
    %2001 = vadd.xlane.f32.xlu0 %v2000
    %v2002 = vpop.xlane.xlu0 %2001
    %v2003 = vmul.f32 %v1999, %v158
    %v2004 = vmul.f32 %v2002, %v158
    %v2005 = vsub.f32 %v1993, %v2003
    %v2006 = vsub.f32 %v1994, %v2004
    %v2007 = vmul.f32 %v2005, %v2005
    %v2008 = vmul.f32 %v2006, %v2006
    %v2009 = vsel %vm151, %v2007, 0.0
    %2010 = vadd.xlane.f32.xlu0 %v2009
    %v2011 = vpop.xlane.xlu0 %2010
    %v2012 = vsel %vm151, %v2008, 0.0
    %2013 = vadd.xlane.f32.xlu0 %v2012
    %v2014 = vpop.xlane.xlu0 %2013
    %v2015 = vmul.f32 %v2011, %v158
    %v2016 = vmul.f32 %v2014, %v158
    %v2017 = vadd.f32 %v2015, 1e-05
    %v2018 = vadd.f32 %v2016, 1e-05
    %v2019 = vrsqrt.pop %v2017
    %v2020 = vrsqrt.pop %v2018
    %v2021 = vmul.f32 %v2005, %v2019
    %v2022 = vmul.f32 %v2006, %v2020
    %v2024 = vlaneseq
    %v2025 = vshrl.u32 %v2024, 7
    %v2026 = vsub.s32 0, %v2025
    %v2027 = vrot.slane %v1995, %v2026
    %v2029 = vmul.f32 %v2021, %v2027
    %v2030 = vmul.f32 %v2022, %v2027
    %v2032 = vlaneseq
    %v2033 = vshrl.u32 %v2032, 7
    %v2034 = vsub.s32 0, %v2033
    %v2035 = vrot.slane %v1996, %v2034
    %v2037 = vadd.f32 %v2029, %v2035
    %v2038 = vadd.f32 %v2030, %v2035
    %v2039 = vld [vmem:[%s35] sm:$0xff]
    %v2040 = vld [vmem:[%s35 + $0x8] sm:$0xff]
    %v2041 = vld [vmem:[%s35 + $0x10] sm:$0xff]
    %v2042 = vld [vmem:[%s35 + $0x18] sm:$0xff]
    %v2043 = vld [vmem:[%s37] sm:$0x1]
    %v2045 = vlaneseq
    %v2046 = vshrl.u32 %v2045, 7
    %v2047 = vsub.s32 0, %v2046
    %v2048 = vrot.slane %v2043, %v2047
    %v2051 = vsel %vm151, %v2037, 0
    %v2054 = vsel %vm151, %v2038, 0
    %2056 = vmatprep.subr.mxu0 0.0
    %2057 = vmatpush1.msra.mxu0 %v2039
    %2058 = vmatprep.subr.mxu0 0.0
    %2059 = vmatpush1.msra.mxu0 %v2040
    %2060 = vmatprep.subr.mxu0 0.0
    %2061 = vmatpush1.msra.mxu0 %v2041
    %2062 = vmatprep.subr.mxu0 0.0
    %2063 = vmatpush1.msra.mxu0 %v2042
    %2064 = vmatprep.subr.mxu0 0.0
    %2065 = vmatpush1.msra.mxu0 0.0
    %2066 = vmatprep.subr.mxu0 0.0
    %2067 = vmatpush1.msra.mxu0 0.0
    %2068 = vmatprep.subr.mxu0 0.0
    %2069 = vmatpush1.msra.mxu0 0.0
    %2070 = vmatprep.subr.mxu0 0.0
    %2071 = vmatpush1.msra.mxu0 0.0
    %2072 = vmatprep.subr.mxu0 0.0
    %2073 = vmatpush1.msra.mxu0 0.0
    %2074 = vmatprep.subr.mxu0 0.0
    %2075 = vmatpush1.msra.mxu0 0.0
    %2076 = vmatprep.subr.mxu0 0.0
    %2077 = vmatpush1.msra.mxu0 0.0
    %2078 = vmatprep.subr.mxu0 0.0
    %2079 = vmatpush1.msra.mxu0 0.0
    %2080 = vmatprep.subr.mxu0 0.0
    %2081 = vmatpush1.msra.mxu0 0.0
    %2082 = vmatprep.subr.mxu0 0.0
    %2083 = vmatpush1.msra.mxu0 0.0
    %2084 = vmatprep.subr.mxu0 0.0
    %2085 = vmatpush1.msra.mxu0 0.0
    %2086 = vmatprep.subr.mxu0 0.0
    %2087 = vmatpush1.msra.mxu0 0.0
    %2088 = vmatprep.subr.mxu0 0.0
    %2089 = vmatpush1.msra.mxu0 0.0
    %2090 = vmatprep.subr.mxu0 0.0
    %2091 = vmatpush1.msra.mxu0 0.0
    %2092 = vmatprep.subr.mxu0 0.0
    %2093 = vmatpush1.msra.mxu0 0.0
    %2094 = vmatprep.subr.mxu0 0.0
    %2095 = vmatpush1.msra.mxu0 0.0
    %2096 = vmatprep.subr.mxu0 0.0
    %2097 = vmatpush1.msra.mxu0 0.0
    %2098 = vmatprep.subr.mxu0 0.0
    %2099 = vmatpush1.msra.mxu0 0.0
    %2100 = vmatprep.subr.mxu0 0.0
    %2101 = vmatpush1.msra.mxu0 0.0
    %2102 = vmatprep.subr.mxu0 0.0
    %2103 = vmatpush1.msra.mxu0 0.0
    %2104 = vmatprep.subr.mxu0 0.0
    %2105 = vmatpush1.msra.mxu0 0.0
    %2106 = vmatprep.subr.mxu0 0.0
    %2107 = vmatpush1.msra.mxu0 0.0
    %2108 = vmatprep.subr.mxu0 0.0
    %2109 = vmatpush1.msra.mxu0 0.0
    %2110 = vmatprep.subr.mxu0 0.0
    %2111 = vmatpush1.msra.mxu0 0.0
    %2112 = vmatprep.subr.mxu0 0.0
    %2113 = vmatpush1.msra.mxu0 0.0
    %2114 = vmatprep.subr.mxu0 0.0
    %2115 = vmatpush1.msra.mxu0 0.0
    %2116 = vmatprep.subr.mxu0 0.0
    %2117 = vmatpush1.msra.mxu0 0.0
    %2118 = vmatprep.subr.mxu0 0.0
    %2119 = vmatpush1.msra.mxu0 0.0
    %2120 = vmatprep.mubr.f32.mxu0 0.0
    %2121 = vmatmul.mubr.f32.gmra.mrb[0].mxu0 %v2051
    %v2122 = vpop.f32.mrb[0].mxu0
    %v2123 = vadd.f32 %v2048, %v2122
    %v2124 = vpop.f32.mrb[0].mxu0
    %2125 = vmatprep.mubr.f32.mxu0 0.0
    %2126 = vmatmul.mubr.f32.gmra.mrb[0].mxu0 %v2054
    %v2127 = vpop.f32.mrb[0].mxu0
    %v2128 = vadd.f32 %v2048, %v2127
    %v2129 = vpop.f32.mrb[0].mxu0
    %2130 = vdwg.mxu0
    %2132 = vrot.lane.b32.xlu0 %v2123, 96
    %v2133 = vpop.permute.xlu0 %2132
    %v2134 = vsel %vm291, %v2123, 0
    %v2136 = vsel %vm291, %v2133, 0
    %2138 = vmatprep.subr.mxu0 0.0
    %2139 = vmatpush1.xpose.msra.mxu0 %v2136
    %2140 = vmatprep.subr.mxu0 0.0
    %2141 = vmatpush1.xpose.msra.mxu0 0.0
    %2142 = vmatprep.subr.mxu0 0.0
    %2143 = vmatpush1.xpose.msra.mxu0 0.0
    %2144 = vmatprep.subr.mxu0 0.0
    %2145 = vmatpush1.xpose.msra.mxu0 0.0
    %2146 = vmatprep.subr.mxu0 0.0
    %2147 = vmatpush1.xpose.msra.mxu0 0.0
    %2148 = vmatprep.subr.mxu0 0.0
    %2149 = vmatpush1.xpose.msra.mxu0 0.0
    %2150 = vmatprep.subr.mxu0 0.0
    %2151 = vmatpush1.xpose.msra.mxu0 0.0
    %2152 = vmatprep.subr.mxu0 0.0
    %2153 = vmatpush1.xpose.msra.mxu0 0.0
    %2154 = vmatprep.subr.mxu0 0.0
    %2155 = vmatpush1.xpose.msra.mxu0 0.0
    %2156 = vmatprep.subr.mxu0 0.0
    %2157 = vmatpush1.xpose.msra.mxu0 0.0
    %2158 = vmatprep.subr.mxu0 0.0
    %2159 = vmatpush1.xpose.msra.mxu0 0.0
    %2160 = vmatprep.subr.mxu0 0.0
    %2161 = vmatpush1.xpose.msra.mxu0 0.0
    %2162 = vmatprep.subr.mxu0 0.0
    %2163 = vmatpush1.xpose.msra.mxu0 0.0
    %2164 = vmatprep.subr.mxu0 0.0
    %2165 = vmatpush1.xpose.msra.mxu0 0.0
    %2166 = vmatprep.subr.mxu0 0.0
    %2167 = vmatpush1.xpose.msra.mxu0 0.0
    %2168 = vmatprep.subr.mxu0 0.0
    %2169 = vmatpush1.xpose.msra.mxu0 0.0
    %2170 = vmatprep.subr.mxu0 0.0
    %2171 = vmatpush1.xpose.msra.mxu0 0.0
    %2172 = vmatprep.subr.mxu0 0.0
    %2173 = vmatpush1.xpose.msra.mxu0 0.0
    %2174 = vmatprep.subr.mxu0 0.0
    %2175 = vmatpush1.xpose.msra.mxu0 0.0
    %2176 = vmatprep.subr.mxu0 0.0
    %2177 = vmatpush1.xpose.msra.mxu0 0.0
    %2178 = vmatprep.subr.mxu0 0.0
    %2179 = vmatpush1.xpose.msra.mxu0 0.0
    %2180 = vmatprep.subr.mxu0 0.0
    %2181 = vmatpush1.xpose.msra.mxu0 0.0
    %2182 = vmatprep.subr.mxu0 0.0
    %2183 = vmatpush1.xpose.msra.mxu0 0.0
    %2184 = vmatprep.subr.mxu0 0.0
    %2185 = vmatpush1.xpose.msra.mxu0 0.0
    %2186 = vmatprep.subr.mxu0 0.0
    %2187 = vmatpush1.xpose.msra.mxu0 0.0
    %2188 = vmatprep.subr.mxu0 0.0
    %2189 = vmatpush1.xpose.msra.mxu0 0.0
    %2190 = vmatprep.subr.mxu0 0.0
    %2191 = vmatpush1.xpose.msra.mxu0 0.0
    %2192 = vmatprep.subr.mxu0 0.0
    %2193 = vmatpush1.xpose.msra.mxu0 0.0
    %2194 = vmatprep.subr.mxu0 0.0
    %2195 = vmatpush1.xpose.msra.mxu0 0.0
    %2196 = vmatprep.subr.mxu0 0.0
    %2197 = vmatpush1.xpose.msra.mxu0 0.0
    %2198 = vmatprep.subr.mxu0 0.0
    %2199 = vmatpush1.xpose.msra.mxu0 0.0
    %2200 = vmatprep.subr.mxu0 0.0
    %2201 = vmatpush1.xpose.msra.mxu0 0.0
    %2202 = vmatprep.mubr.f32.mxu0 0.0
    %2203 = vmatmul.mubr.f32.gmra.mrb[0].mxu0 %v2134
    %v2204 = vpop.f32.mrb[0].mxu0
    %v2205 = vadd.f32 0.0, %v2204
    %v2206 = vpop.f32.mrb[0].mxu0
    %2207 = vdwg.mxu0
    %v2208 = vmul.f32 %v2205, 0.35355338
    %v2209 = vadd.f32 %v2208, %v370
    %v2210 = vsel %vm291, %v2209, -inf
    %2211 = vmax.xlane.f32.xlu0 %v2210
    %v2212 = vpop.xlane.xlu0 %2211
    %v2213 = vsub.f32 %v2209, %v2212
    %v2214 = vmul.f32 %v2213, 1.442695
    %v2215 = vpow.pop %v2214
    %v2216 = vsel %vm291, %v2215, 0.0
    %2217 = vadd.xlane.f32.xlu0 %v2216
    %v2218 = vpop.xlane.xlu0 %2217
    %v2219 = vrcp.pop %v2218
    %v2220 = vmul.f32 %v2215, %v2219
    %2221 = vrot.lane.b32.xlu0 %v2123, 64
    %v2222 = vpop.permute.xlu0 %2221
    %v2225 = vsel %vm291, %v2220, 0
    %2227 = vmatprep.subr.mxu0 0.0
    %2228 = vmatpush1.msra.mxu0 %v2222
    %2229 = vmatprep.subr.mxu0 0.0
    %2230 = vmatpush1.msra.mxu0 0.0
    %2231 = vmatprep.subr.mxu0 0.0
    %2232 = vmatpush1.msra.mxu0 0.0
    %2233 = vmatprep.subr.mxu0 0.0
    %2234 = vmatpush1.msra.mxu0 0.0
    %2235 = vmatprep.subr.mxu0 0.0
    %2236 = vmatpush1.msra.mxu0 0.0
    %2237 = vmatprep.subr.mxu0 0.0
    %2238 = vmatpush1.msra.mxu0 0.0
    %2239 = vmatprep.subr.mxu0 0.0
    %2240 = vmatpush1.msra.mxu0 0.0
    %2241 = vmatprep.subr.mxu0 0.0
    %2242 = vmatpush1.msra.mxu0 0.0
    %2243 = vmatprep.subr.mxu0 0.0
    %2244 = vmatpush1.msra.mxu0 0.0
    %2245 = vmatprep.subr.mxu0 0.0
    %2246 = vmatpush1.msra.mxu0 0.0
    %2247 = vmatprep.subr.mxu0 0.0
    %2248 = vmatpush1.msra.mxu0 0.0
    %2249 = vmatprep.subr.mxu0 0.0
    %2250 = vmatpush1.msra.mxu0 0.0
    %2251 = vmatprep.subr.mxu0 0.0
    %2252 = vmatpush1.msra.mxu0 0.0
    %2253 = vmatprep.subr.mxu0 0.0
    %2254 = vmatpush1.msra.mxu0 0.0
    %2255 = vmatprep.subr.mxu0 0.0
    %2256 = vmatpush1.msra.mxu0 0.0
    %2257 = vmatprep.subr.mxu0 0.0
    %2258 = vmatpush1.msra.mxu0 0.0
    %2259 = vmatprep.subr.mxu0 0.0
    %2260 = vmatpush1.msra.mxu0 0.0
    %2261 = vmatprep.subr.mxu0 0.0
    %2262 = vmatpush1.msra.mxu0 0.0
    %2263 = vmatprep.subr.mxu0 0.0
    %2264 = vmatpush1.msra.mxu0 0.0
    %2265 = vmatprep.subr.mxu0 0.0
    %2266 = vmatpush1.msra.mxu0 0.0
    %2267 = vmatprep.subr.mxu0 0.0
    %2268 = vmatpush1.msra.mxu0 0.0
    %2269 = vmatprep.subr.mxu0 0.0
    %2270 = vmatpush1.msra.mxu0 0.0
    %2271 = vmatprep.subr.mxu0 0.0
    %2272 = vmatpush1.msra.mxu0 0.0
    %2273 = vmatprep.subr.mxu0 0.0
    %2274 = vmatpush1.msra.mxu0 0.0
    %2275 = vmatprep.subr.mxu0 0.0
    %2276 = vmatpush1.msra.mxu0 0.0
    %2277 = vmatprep.subr.mxu0 0.0
    %2278 = vmatpush1.msra.mxu0 0.0
    %2279 = vmatprep.subr.mxu0 0.0
    %2280 = vmatpush1.msra.mxu0 0.0
    %2281 = vmatprep.subr.mxu0 0.0
    %2282 = vmatpush1.msra.mxu0 0.0
    %2283 = vmatprep.subr.mxu0 0.0
    %2284 = vmatpush1.msra.mxu0 0.0
    %2285 = vmatprep.subr.mxu0 0.0
    %2286 = vmatpush1.msra.mxu0 0.0
    %2287 = vmatprep.subr.mxu0 0.0
    %2288 = vmatpush1.msra.mxu0 0.0
    %2289 = vmatprep.subr.mxu0 0.0
    %2290 = vmatpush1.msra.mxu0 0.0
    %2291 = vmatprep.mubr.f32.mxu0 0.0
    %2292 = vmatmul.mubr.f32.gmra.mrb[0].mxu0 %v2225
    %v2293 = vpop.f32.mrb[0].mxu0
    %v2294 = vadd.f32 0.0, %v2293
    %v2295 = vpop.f32.mrb[0].mxu0
    %2296 = vdwg.mxu0
    %2297 = vrot.lane.b32.xlu0 %v2123, 120
    %v2298 = vpop.permute.xlu0 %2297
    %2299 = vrot.lane.b32.xlu0 %v2123, 88
    %v2300 = vpop.permute.xlu0 %2299
    %v2301 = vsel %vm291, %v2298, 0
    %v2303 = vsel %vm291, %v2300, 0
    %2305 = vmatprep.subr.mxu0 0.0
    %2306 = vmatpush1.xpose.msra.mxu0 %v2303
    %2307 = vmatprep.subr.mxu0 0.0
    %2308 = vmatpush1.xpose.msra.mxu0 0.0
    %2309 = vmatprep.subr.mxu0 0.0
    %2310 = vmatpush1.xpose.msra.mxu0 0.0
    %2311 = vmatprep.subr.mxu0 0.0
    %2312 = vmatpush1.xpose.msra.mxu0 0.0
    %2313 = vmatprep.subr.mxu0 0.0
    %2314 = vmatpush1.xpose.msra.mxu0 0.0
    %2315 = vmatprep.subr.mxu0 0.0
    %2316 = vmatpush1.xpose.msra.mxu0 0.0
    %2317 = vmatprep.subr.mxu0 0.0
    %2318 = vmatpush1.xpose.msra.mxu0 0.0
    %2319 = vmatprep.subr.mxu0 0.0
    %2320 = vmatpush1.xpose.msra.mxu0 0.0
    %2321 = vmatprep.subr.mxu0 0.0
    %2322 = vmatpush1.xpose.msra.mxu0 0.0
    %2323 = vmatprep.subr.mxu0 0.0
    %2324 = vmatpush1.xpose.msra.mxu0 0.0
    %2325 = vmatprep.subr.mxu0 0.0
    %2326 = vmatpush1.xpose.msra.mxu0 0.0
    %2327 = vmatprep.subr.mxu0 0.0
    %2328 = vmatpush1.xpose.msra.mxu0 0.0
    %2329 = vmatprep.subr.mxu0 0.0
    %2330 = vmatpush1.xpose.msra.mxu0 0.0
    %2331 = vmatprep.subr.mxu0 0.0
    %2332 = vmatpush1.xpose.msra.mxu0 0.0
    %2333 = vmatprep.subr.mxu0 0.0
    %2334 = vmatpush1.xpose.msra.mxu0 0.0
    %2335 = vmatprep.subr.mxu0 0.0
    %2336 = vmatpush1.xpose.msra.mxu0 0.0
    %2337 = vmatprep.subr.mxu0 0.0
    %2338 = vmatpush1.xpose.msra.mxu0 0.0
    %2339 = vmatprep.subr.mxu0 0.0
    %2340 = vmatpush1.xpose.msra.mxu0 0.0
    %2341 = vmatprep.subr.mxu0 0.0
    %2342 = vmatpush1.xpose.msra.mxu0 0.0
    %2343 = vmatprep.subr.mxu0 0.0
    %2344 = vmatpush1.xpose.msra.mxu0 0.0
    %2345 = vmatprep.subr.mxu0 0.0
    %2346 = vmatpush1.xpose.msra.mxu0 0.0
    %2347 = vmatprep.subr.mxu0 0.0
    %2348 = vmatpush1.xpose.msra.mxu0 0.0
    %2349 = vmatprep.subr.mxu0 0.0
    %2350 = vmatpush1.xpose.msra.mxu0 0.0
    %2351 = vmatprep.subr.mxu0 0.0
    %2352 = vmatpush1.xpose.msra.mxu0 0.0
    %2353 = vmatprep.subr.mxu0 0.0
    %2354 = vmatpush1.xpose.msra.mxu0 0.0
    %2355 = vmatprep.subr.mxu0 0.0
    %2356 = vmatpush1.xpose.msra.mxu0 0.0
    %2357 = vmatprep.subr.mxu0 0.0
    %2358 = vmatpush1.xpose.msra.mxu0 0.0
    %2359 = vmatprep.subr.mxu0 0.0
    %2360 = vmatpush1.xpose.msra.mxu0 0.0
    %2361 = vmatprep.subr.mxu0 0.0
    %2362 = vmatpush1.xpose.msra.mxu0 0.0
    %2363 = vmatprep.subr.mxu0 0.0
    %2364 = vmatpush1.xpose.msra.mxu0 0.0
    %2365 = vmatprep.subr.mxu0 0.0
    %2366 = vmatpush1.xpose.msra.mxu0 0.0
    %2367 = vmatprep.subr.mxu0 0.0
    %2368 = vmatpush1.xpose.msra.mxu0 0.0
    %2369 = vmatprep.mubr.f32.mxu0 0.0
    %2370 = vmatmul.mubr.f32.gmra.mrb[0].mxu0 %v2301
    %v2371 = vpop.f32.mrb[0].mxu0
    %v2372 = vadd.f32 0.0, %v2371
    %v2373 = vpop.f32.mrb[0].mxu0
    %2374 = vdwg.mxu0
    %v2375 = vmul.f32 %v2372, 0.35355338
    %v2376 = vadd.f32 %v2375, %v370
    %v2377 = vsel %vm291, %v2376, -inf
    %2378 = vmax.xlane.f32.xlu0 %v2377
    %v2379 = vpop.xlane.xlu0 %2378
    %v2380 = vsub.f32 %v2376, %v2379
    %v2381 = vmul.f32 %v2380, 1.442695
    %v2382 = vpow.pop %v2381
    %v2383 = vsel %vm291, %v2382, 0.0
    %2384 = vadd.xlane.f32.xlu0 %v2383
    %v2385 = vpop.xlane.xlu0 %2384
    %v2386 = vrcp.pop %v2385
    %v2387 = vmul.f32 %v2382, %v2386
    %2388 = vrot.lane.b32.xlu0 %v2123, 56
    %v2389 = vpop.permute.xlu0 %2388
    %v2392 = vsel %vm291, %v2387, 0
    %2394 = vmatprep.subr.mxu0 0.0
    %2395 = vmatpush1.msra.mxu0 %v2389
    %2396 = vmatprep.subr.mxu0 0.0
    %2397 = vmatpush1.msra.mxu0 0.0
    %2398 = vmatprep.subr.mxu0 0.0
    %2399 = vmatpush1.msra.mxu0 0.0
    %2400 = vmatprep.subr.mxu0 0.0
    %2401 = vmatpush1.msra.mxu0 0.0
    %2402 = vmatprep.subr.mxu0 0.0
    %2403 = vmatpush1.msra.mxu0 0.0
    %2404 = vmatprep.subr.mxu0 0.0
    %2405 = vmatpush1.msra.mxu0 0.0
    %2406 = vmatprep.subr.mxu0 0.0
    %2407 = vmatpush1.msra.mxu0 0.0
    %2408 = vmatprep.subr.mxu0 0.0
    %2409 = vmatpush1.msra.mxu0 0.0
    %2410 = vmatprep.subr.mxu0 0.0
    %2411 = vmatpush1.msra.mxu0 0.0
    %2412 = vmatprep.subr.mxu0 0.0
    %2413 = vmatpush1.msra.mxu0 0.0
    %2414 = vmatprep.subr.mxu0 0.0
    %2415 = vmatpush1.msra.mxu0 0.0
    %2416 = vmatprep.subr.mxu0 0.0
    %2417 = vmatpush1.msra.mxu0 0.0
    %2418 = vmatprep.subr.mxu0 0.0
    %2419 = vmatpush1.msra.mxu0 0.0
    %2420 = vmatprep.subr.mxu0 0.0
    %2421 = vmatpush1.msra.mxu0 0.0
    %2422 = vmatprep.subr.mxu0 0.0
    %2423 = vmatpush1.msra.mxu0 0.0
    %2424 = vmatprep.subr.mxu0 0.0
    %2425 = vmatpush1.msra.mxu0 0.0
    %2426 = vmatprep.subr.mxu0 0.0
    %2427 = vmatpush1.msra.mxu0 0.0
    %2428 = vmatprep.subr.mxu0 0.0
    %2429 = vmatpush1.msra.mxu0 0.0
    %2430 = vmatprep.subr.mxu0 0.0
    %2431 = vmatpush1.msra.mxu0 0.0
    %2432 = vmatprep.subr.mxu0 0.0
    %2433 = vmatpush1.msra.mxu0 0.0
    %2434 = vmatprep.subr.mxu0 0.0
    %2435 = vmatpush1.msra.mxu0 0.0
    %2436 = vmatprep.subr.mxu0 0.0
    %2437 = vmatpush1.msra.mxu0 0.0
    %2438 = vmatprep.subr.mxu0 0.0
    %2439 = vmatpush1.msra.mxu0 0.0
    %2440 = vmatprep.subr.mxu0 0.0
    %2441 = vmatpush1.msra.mxu0 0.0
    %2442 = vmatprep.subr.mxu0 0.0
    %2443 = vmatpush1.msra.mxu0 0.0
    %2444 = vmatprep.subr.mxu0 0.0
    %2445 = vmatpush1.msra.mxu0 0.0
    %2446 = vmatprep.subr.mxu0 0.0
    %2447 = vmatpush1.msra.mxu0 0.0
    %2448 = vmatprep.subr.mxu0 0.0
    %2449 = vmatpush1.msra.mxu0 0.0
    %2450 = vmatprep.subr.mxu0 0.0
    %2451 = vmatpush1.msra.mxu0 0.0
    %2452 = vmatprep.subr.mxu0 0.0
    %2453 = vmatpush1.msra.mxu0 0.0
    %2454 = vmatprep.subr.mxu0 0.0
    %2455 = vmatpush1.msra.mxu0 0.0
    %2456 = vmatprep.subr.mxu0 0.0
    %2457 = vmatpush1.msra.mxu0 0.0
    %2458 = vmatprep.mubr.f32.mxu0 0.0
    %2459 = vmatmul.mubr.f32.gmra.mrb[0].mxu0 %v2392
    %v2460 = vpop.f32.mrb[0].mxu0
    %v2461 = vadd.f32 0.0, %v2460
    %v2462 = vpop.f32.mrb[0].mxu0
    %2463 = vdwg.mxu0
    %2464 = vrot.lane.b32.xlu0 %v2123, 112
    %v2465 = vpop.permute.xlu0 %2464
    %2466 = vrot.lane.b32.xlu0 %v2123, 80
    %v2467 = vpop.permute.xlu0 %2466
    %v2468 = vsel %vm291, %v2465, 0
    %v2470 = vsel %vm291, %v2467, 0
    %2472 = vmatprep.subr.mxu0 0.0
    %2473 = vmatpush1.xpose.msra.mxu0 %v2470
    %2474 = vmatprep.subr.mxu0 0.0
    %2475 = vmatpush1.xpose.msra.mxu0 0.0
    %2476 = vmatprep.subr.mxu0 0.0
    %2477 = vmatpush1.xpose.msra.mxu0 0.0
    %2478 = vmatprep.subr.mxu0 0.0
    %2479 = vmatpush1.xpose.msra.mxu0 0.0
    %2480 = vmatprep.subr.mxu0 0.0
    %2481 = vmatpush1.xpose.msra.mxu0 0.0
    %2482 = vmatprep.subr.mxu0 0.0
    %2483 = vmatpush1.xpose.msra.mxu0 0.0
    %2484 = vmatprep.subr.mxu0 0.0
    %2485 = vmatpush1.xpose.msra.mxu0 0.0
    %2486 = vmatprep.subr.mxu0 0.0
    %2487 = vmatpush1.xpose.msra.mxu0 0.0
    %2488 = vmatprep.subr.mxu0 0.0
    %2489 = vmatpush1.xpose.msra.mxu0 0.0
    %2490 = vmatprep.subr.mxu0 0.0
    %2491 = vmatpush1.xpose.msra.mxu0 0.0
    %2492 = vmatprep.subr.mxu0 0.0
    %2493 = vmatpush1.xpose.msra.mxu0 0.0
    %2494 = vmatprep.subr.mxu0 0.0
    %2495 = vmatpush1.xpose.msra.mxu0 0.0
    %2496 = vmatprep.subr.mxu0 0.0
    %2497 = vmatpush1.xpose.msra.mxu0 0.0
    %2498 = vmatprep.subr.mxu0 0.0
    %2499 = vmatpush1.xpose.msra.mxu0 0.0
    %2500 = vmatprep.subr.mxu0 0.0
    %2501 = vmatpush1.xpose.msra.mxu0 0.0
    %2502 = vmatprep.subr.mxu0 0.0
    %2503 = vmatpush1.xpose.msra.mxu0 0.0
    %2504 = vmatprep.subr.mxu0 0.0
    %2505 = vmatpush1.xpose.msra.mxu0 0.0
    %2506 = vmatprep.subr.mxu0 0.0
    %2507 = vmatpush1.xpose.msra.mxu0 0.0
    %2508 = vmatprep.subr.mxu0 0.0
    %2509 = vmatpush1.xpose.msra.mxu0 0.0
    %2510 = vmatprep.subr.mxu0 0.0
    %2511 = vmatpush1.xpose.msra.mxu0 0.0
    %2512 = vmatprep.subr.mxu0 0.0
    %2513 = vmatpush1.xpose.msra.mxu0 0.0
    %2514 = vmatprep.subr.mxu0 0.0
    %2515 = vmatpush1.xpose.msra.mxu0 0.0
    %2516 = vmatprep.subr.mxu0 0.0
    %2517 = vmatpush1.xpose.msra.mxu0 0.0
    %2518 = vmatprep.subr.mxu0 0.0
    %2519 = vmatpush1.xpose.msra.mxu0 0.0
    %2520 = vmatprep.subr.mxu0 0.0
    %2521 = vmatpush1.xpose.msra.mxu0 0.0
    %2522 = vmatprep.subr.mxu0 0.0
    %2523 = vmatpush1.xpose.msra.mxu0 0.0
    %2524 = vmatprep.subr.mxu0 0.0
    %2525 = vmatpush1.xpose.msra.mxu0 0.0
    %2526 = vmatprep.subr.mxu0 0.0
    %2527 = vmatpush1.xpose.msra.mxu0 0.0
    %2528 = vmatprep.subr.mxu0 0.0
    %2529 = vmatpush1.xpose.msra.mxu0 0.0
    %2530 = vmatprep.subr.mxu0 0.0
    %2531 = vmatpush1.xpose.msra.mxu0 0.0
    %2532 = vmatprep.subr.mxu0 0.0
    %2533 = vmatpush1.xpose.msra.mxu0 0.0
    %2534 = vmatprep.subr.mxu0 0.0
    %2535 = vmatpush1.xpose.msra.mxu0 0.0
    %2536 = vmatprep.mubr.f32.mxu0 0.0
    %2537 = vmatmul.mubr.f32.gmra.mrb[0].mxu0 %v2468
    %v2538 = vpop.f32.mrb[0].mxu0
    %v2539 = vadd.f32 0.0, %v2538
    %v2540 = vpop.f32.mrb[0].mxu0
    %2541 = vdwg.mxu0
    %v2542 = vmul.f32 %v2539, 0.35355338
    %v2543 = vadd.f32 %v2542, %v370
    %v2544 = vsel %vm291, %v2543, -inf
    %2545 = vmax.xlane.f32.xlu0 %v2544
    %v2546 = vpop.xlane.xlu0 %2545
    %v2547 = vsub.f32 %v2543, %v2546
    %v2548 = vmul.f32 %v2547, 1.442695
    %v2549 = vpow.pop %v2548
    %v2550 = vsel %vm291, %v2549, 0.0
    %2551 = vadd.xlane.f32.xlu0 %v2550
    %v2552 = vpop.xlane.xlu0 %2551
    %v2553 = vrcp.pop %v2552
    %v2554 = vmul.f32 %v2549, %v2553
    %2555 = vrot.lane.b32.xlu0 %v2123, 48
    %v2556 = vpop.permute.xlu0 %2555
    %v2559 = vsel %vm291, %v2554, 0
    %2561 = vmatprep.subr.mxu0 0.0
    %2562 = vmatpush1.msra.mxu0 %v2556
    %2563 = vmatprep.subr.mxu0 0.0
    %2564 = vmatpush1.msra.mxu0 0.0
    %2565 = vmatprep.subr.mxu0 0.0
    %2566 = vmatpush1.msra.mxu0 0.0
    %2567 = vmatprep.subr.mxu0 0.0
    %2568 = vmatpush1.msra.mxu0 0.0
    %2569 = vmatprep.subr.mxu0 0.0
    %2570 = vmatpush1.msra.mxu0 0.0
    %2571 = vmatprep.subr.mxu0 0.0
    %2572 = vmatpush1.msra.mxu0 0.0
    %2573 = vmatprep.subr.mxu0 0.0
    %2574 = vmatpush1.msra.mxu0 0.0
    %2575 = vmatprep.subr.mxu0 0.0
    %2576 = vmatpush1.msra.mxu0 0.0
    %2577 = vmatprep.subr.mxu0 0.0
    %2578 = vmatpush1.msra.mxu0 0.0
    %2579 = vmatprep.subr.mxu0 0.0
    %2580 = vmatpush1.msra.mxu0 0.0
    %2581 = vmatprep.subr.mxu0 0.0
    %2582 = vmatpush1.msra.mxu0 0.0
    %2583 = vmatprep.subr.mxu0 0.0
    %2584 = vmatpush1.msra.mxu0 0.0
    %2585 = vmatprep.subr.mxu0 0.0
    %2586 = vmatpush1.msra.mxu0 0.0
    %2587 = vmatprep.subr.mxu0 0.0
    %2588 = vmatpush1.msra.mxu0 0.0
    %2589 = vmatprep.subr.mxu0 0.0
    %2590 = vmatpush1.msra.mxu0 0.0
    %2591 = vmatprep.subr.mxu0 0.0
    %2592 = vmatpush1.msra.mxu0 0.0
    %2593 = vmatprep.subr.mxu0 0.0
    %2594 = vmatpush1.msra.mxu0 0.0
    %2595 = vmatprep.subr.mxu0 0.0
    %2596 = vmatpush1.msra.mxu0 0.0
    %2597 = vmatprep.subr.mxu0 0.0
    %2598 = vmatpush1.msra.mxu0 0.0
    %2599 = vmatprep.subr.mxu0 0.0
    %2600 = vmatpush1.msra.mxu0 0.0
    %2601 = vmatprep.subr.mxu0 0.0
    %2602 = vmatpush1.msra.mxu0 0.0
    %2603 = vmatprep.subr.mxu0 0.0
    %2604 = vmatpush1.msra.mxu0 0.0
    %2605 = vmatprep.subr.mxu0 0.0
    %2606 = vmatpush1.msra.mxu0 0.0
    %2607 = vmatprep.subr.mxu0 0.0
    %2608 = vmatpush1.msra.mxu0 0.0
    %2609 = vmatprep.subr.mxu0 0.0
    %2610 = vmatpush1.msra.mxu0 0.0
    %2611 = vmatprep.subr.mxu0 0.0
    %2612 = vmatpush1.msra.mxu0 0.0
    %2613 = vmatprep.subr.mxu0 0.0
    %2614 = vmatpush1.msra.mxu0 0.0
    %2615 = vmatprep.subr.mxu0 0.0
    %2616 = vmatpush1.msra.mxu0 0.0
    %2617 = vmatprep.subr.mxu0 0.0
    %2618 = vmatpush1.msra.mxu0 0.0
    %2619 = vmatprep.subr.mxu0 0.0
    %2620 = vmatpush1.msra.mxu0 0.0
    %2621 = vmatprep.subr.mxu0 0.0
    %2622 = vmatpush1.msra.mxu0 0.0
    %2623 = vmatprep.subr.mxu0 0.0
    %2624 = vmatpush1.msra.mxu0 0.0
    %2625 = vmatprep.mubr.f32.mxu0 0.0
    %2626 = vmatmul.mubr.f32.gmra.mrb[0].mxu0 %v2559
    %v2627 = vpop.f32.mrb[0].mxu0
    %v2628 = vadd.f32 0.0, %v2627
    %v2629 = vpop.f32.mrb[0].mxu0
    %2630 = vdwg.mxu0
    %2631 = vrot.lane.b32.xlu0 %v2123, 104
    %v2632 = vpop.permute.xlu0 %2631
    %2633 = vrot.lane.b32.xlu0 %v2123, 72
    %v2634 = vpop.permute.xlu0 %2633
    %v2635 = vsel %vm291, %v2632, 0
    %v2637 = vsel %vm291, %v2634, 0
    %2639 = vmatprep.subr.mxu0 0.0
    %2640 = vmatpush1.xpose.msra.mxu0 %v2637
    %2641 = vmatprep.subr.mxu0 0.0
    %2642 = vmatpush1.xpose.msra.mxu0 0.0
    %2643 = vmatprep.subr.mxu0 0.0
    %2644 = vmatpush1.xpose.msra.mxu0 0.0
    %2645 = vmatprep.subr.mxu0 0.0
    %2646 = vmatpush1.xpose.msra.mxu0 0.0
    %2647 = vmatprep.subr.mxu0 0.0
    %2648 = vmatpush1.xpose.msra.mxu0 0.0
    %2649 = vmatprep.subr.mxu0 0.0
    %2650 = vmatpush1.xpose.msra.mxu0 0.0
    %2651 = vmatprep.subr.mxu0 0.0
    %2652 = vmatpush1.xpose.msra.mxu0 0.0
    %2653 = vmatprep.subr.mxu0 0.0
    %2654 = vmatpush1.xpose.msra.mxu0 0.0
    %2655 = vmatprep.subr.mxu0 0.0
    %2656 = vmatpush1.xpose.msra.mxu0 0.0
    %2657 = vmatprep.subr.mxu0 0.0
    %2658 = vmatpush1.xpose.msra.mxu0 0.0
    %2659 = vmatprep.subr.mxu0 0.0
    %2660 = vmatpush1.xpose.msra.mxu0 0.0
    %2661 = vmatprep.subr.mxu0 0.0
    %2662 = vmatpush1.xpose.msra.mxu0 0.0
    %2663 = vmatprep.subr.mxu0 0.0
    %2664 = vmatpush1.xpose.msra.mxu0 0.0
    %2665 = vmatprep.subr.mxu0 0.0
    %2666 = vmatpush1.xpose.msra.mxu0 0.0
    %2667 = vmatprep.subr.mxu0 0.0
    %2668 = vmatpush1.xpose.msra.mxu0 0.0
    %2669 = vmatprep.subr.mxu0 0.0
    %2670 = vmatpush1.xpose.msra.mxu0 0.0
    %2671 = vmatprep.subr.mxu0 0.0
    %2672 = vmatpush1.xpose.msra.mxu0 0.0
    %2673 = vmatprep.subr.mxu0 0.0
    %2674 = vmatpush1.xpose.msra.mxu0 0.0
    %2675 = vmatprep.subr.mxu0 0.0
    %2676 = vmatpush1.xpose.msra.mxu0 0.0
    %2677 = vmatprep.subr.mxu0 0.0
    %2678 = vmatpush1.xpose.msra.mxu0 0.0
    %2679 = vmatprep.subr.mxu0 0.0
    %2680 = vmatpush1.xpose.msra.mxu0 0.0
    %2681 = vmatprep.subr.mxu0 0.0
    %2682 = vmatpush1.xpose.msra.mxu0 0.0
    %2683 = vmatprep.subr.mxu0 0.0
    %2684 = vmatpush1.xpose.msra.mxu0 0.0
    %2685 = vmatprep.subr.mxu0 0.0
    %2686 = vmatpush1.xpose.msra.mxu0 0.0
    %2687 = vmatprep.subr.mxu0 0.0
    %2688 = vmatpush1.xpose.msra.mxu0 0.0
    %2689 = vmatprep.subr.mxu0 0.0
    %2690 = vmatpush1.xpose.msra.mxu0 0.0
    %2691 = vmatprep.subr.mxu0 0.0
    %2692 = vmatpush1.xpose.msra.mxu0 0.0
    %2693 = vmatprep.subr.mxu0 0.0
    %2694 = vmatpush1.xpose.msra.mxu0 0.0
    %2695 = vmatprep.subr.mxu0 0.0
    %2696 = vmatpush1.xpose.msra.mxu0 0.0
    %2697 = vmatprep.subr.mxu0 0.0
    %2698 = vmatpush1.xpose.msra.mxu0 0.0
    %2699 = vmatprep.subr.mxu0 0.0
    %2700 = vmatpush1.xpose.msra.mxu0 0.0
    %2701 = vmatprep.subr.mxu0 0.0
    %2702 = vmatpush1.xpose.msra.mxu0 0.0
    %2703 = vmatprep.mubr.f32.mxu0 0.0
    %2704 = vmatmul.mubr.f32.gmra.mrb[0].mxu0 %v2635
    %v2705 = vpop.f32.mrb[0].mxu0
    %v2706 = vadd.f32 0.0, %v2705
    %v2707 = vpop.f32.mrb[0].mxu0
    %2708 = vdwg.mxu0
    %v2709 = vmul.f32 %v2706, 0.35355338
    %v2710 = vadd.f32 %v2709, %v370
    %v2711 = vsel %vm291, %v2710, -inf
    %2712 = vmax.xlane.f32.xlu0 %v2711
    %v2713 = vpop.xlane.xlu0 %2712
    %v2714 = vsub.f32 %v2710, %v2713
    %v2715 = vmul.f32 %v2714, 1.442695
    %v2716 = vpow.pop %v2715
    %v2717 = vsel %vm291, %v2716, 0.0
    %2718 = vadd.xlane.f32.xlu0 %v2717
    %v2719 = vpop.xlane.xlu0 %2718
    %v2720 = vrcp.pop %v2719
    %v2721 = vmul.f32 %v2716, %v2720
    %2722 = vrot.lane.b32.xlu0 %v2123, 40
    %v2723 = vpop.permute.xlu0 %2722
    %v2726 = vsel %vm291, %v2721, 0
    %2728 = vmatprep.subr.mxu0 0.0
    %2729 = vmatpush1.msra.mxu0 %v2723
    %2730 = vmatprep.subr.mxu0 0.0
    %2731 = vmatpush1.msra.mxu0 0.0
    %2732 = vmatprep.subr.mxu0 0.0
    %2733 = vmatpush1.msra.mxu0 0.0
    %2734 = vmatprep.subr.mxu0 0.0
    %2735 = vmatpush1.msra.mxu0 0.0
    %2736 = vmatprep.subr.mxu0 0.0
    %2737 = vmatpush1.msra.mxu0 0.0
    %2738 = vmatprep.subr.mxu0 0.0
    %2739 = vmatpush1.msra.mxu0 0.0
    %2740 = vmatprep.subr.mxu0 0.0
    %2741 = vmatpush1.msra.mxu0 0.0
    %2742 = vmatprep.subr.mxu0 0.0
    %2743 = vmatpush1.msra.mxu0 0.0
    %2744 = vmatprep.subr.mxu0 0.0
    %2745 = vmatpush1.msra.mxu0 0.0
    %2746 = vmatprep.subr.mxu0 0.0
    %2747 = vmatpush1.msra.mxu0 0.0
    %2748 = vmatprep.subr.mxu0 0.0
    %2749 = vmatpush1.msra.mxu0 0.0
    %2750 = vmatprep.subr.mxu0 0.0
    %2751 = vmatpush1.msra.mxu0 0.0
    %2752 = vmatprep.subr.mxu0 0.0
    %2753 = vmatpush1.msra.mxu0 0.0
    %2754 = vmatprep.subr.mxu0 0.0
    %2755 = vmatpush1.msra.mxu0 0.0
    %2756 = vmatprep.subr.mxu0 0.0
    %2757 = vmatpush1.msra.mxu0 0.0
    %2758 = vmatprep.subr.mxu0 0.0
    %2759 = vmatpush1.msra.mxu0 0.0
    %2760 = vmatprep.subr.mxu0 0.0
    %2761 = vmatpush1.msra.mxu0 0.0
    %2762 = vmatprep.subr.mxu0 0.0
    %2763 = vmatpush1.msra.mxu0 0.0
    %2764 = vmatprep.subr.mxu0 0.0
    %2765 = vmatpush1.msra.mxu0 0.0
    %2766 = vmatprep.subr.mxu0 0.0
    %2767 = vmatpush1.msra.mxu0 0.0
    %2768 = vmatprep.subr.mxu0 0.0
    %2769 = vmatpush1.msra.mxu0 0.0
    %2770 = vmatprep.subr.mxu0 0.0
    %2771 = vmatpush1.msra.mxu0 0.0
    %2772 = vmatprep.subr.mxu0 0.0
    %2773 = vmatpush1.msra.mxu0 0.0
    %2774 = vmatprep.subr.mxu0 0.0
    %2775 = vmatpush1.msra.mxu0 0.0
    %2776 = vmatprep.subr.mxu0 0.0
    %2777 = vmatpush1.msra.mxu0 0.0
    %2778 = vmatprep.subr.mxu0 0.0
    %2779 = vmatpush1.msra.mxu0 0.0
    %2780 = vmatprep.subr.mxu0 0.0
    %2781 = vmatpush1.msra.mxu0 0.0
    %2782 = vmatprep.subr.mxu0 0.0
    %2783 = vmatpush1.msra.mxu0 0.0
    %2784 = vmatprep.subr.mxu0 0.0
    %2785 = vmatpush1.msra.mxu0 0.0
    %2786 = vmatprep.subr.mxu0 0.0
    %2787 = vmatpush1.msra.mxu0 0.0
    %2788 = vmatprep.subr.mxu0 0.0
    %2789 = vmatpush1.msra.mxu0 0.0
    %2790 = vmatprep.subr.mxu0 0.0
    %2791 = vmatpush1.msra.mxu0 0.0
    %2792 = vmatprep.mubr.f32.mxu0 0.0
    %2793 = vmatmul.mubr.f32.gmra.mrb[0].mxu0 %v2726
    %v2794 = vpop.f32.mrb[0].mxu0
    %v2795 = vadd.f32 0.0, %v2794
    %v2796 = vpop.f32.mrb[0].mxu0
    %2797 = vdwg.mxu0
    %2799 = vrot.lane.b32.xlu0 %v2461, 8
    %v2800 = vpop.permute.xlu0 %2799
    %2803 = vrot.lane.b32.xlu0 %v2628, 16
    %v2804 = vpop.permute.xlu0 %2803
    %2807 = vrot.lane.b32.xlu0 %v2795, 24
    %v2808 = vpop.permute.xlu0 %2807
    %v2810 = vsel %vm291, %v2294, %v2800
    %v2811 = vsel %vm973, %v2810, %v2804
    %v2812 = vsel %vm975, %v2811, %v2808
    %2814 = vrot.lane.b32.xlu0 %v2128, 96
    %v2815 = vpop.permute.xlu0 %2814
    %v2816 = vsel %vm291, %v2128, 0
    %v2818 = vsel %vm291, %v2815, 0
    %2820 = vmatprep.subr.mxu0 0.0
    %2821 = vmatpush1.xpose.msra.mxu0 %v2818
    %2822 = vmatprep.subr.mxu0 0.0
    %2823 = vmatpush1.xpose.msra.mxu0 0.0
    %2824 = vmatprep.subr.mxu0 0.0
    %2825 = vmatpush1.xpose.msra.mxu0 0.0
    %2826 = vmatprep.subr.mxu0 0.0
    %2827 = vmatpush1.xpose.msra.mxu0 0.0
    %2828 = vmatprep.subr.mxu0 0.0
    %2829 = vmatpush1.xpose.msra.mxu0 0.0
    %2830 = vmatprep.subr.mxu0 0.0
    %2831 = vmatpush1.xpose.msra.mxu0 0.0
    %2832 = vmatprep.subr.mxu0 0.0
    %2833 = vmatpush1.xpose.msra.mxu0 0.0
    %2834 = vmatprep.subr.mxu0 0.0
    %2835 = vmatpush1.xpose.msra.mxu0 0.0
    %2836 = vmatprep.subr.mxu0 0.0
    %2837 = vmatpush1.xpose.msra.mxu0 0.0
    %2838 = vmatprep.subr.mxu0 0.0
    %2839 = vmatpush1.xpose.msra.mxu0 0.0
    %2840 = vmatprep.subr.mxu0 0.0
    %2841 = vmatpush1.xpose.msra.mxu0 0.0
    %2842 = vmatprep.subr.mxu0 0.0
    %2843 = vmatpush1.xpose.msra.mxu0 0.0
    %2844 = vmatprep.subr.mxu0 0.0
    %2845 = vmatpush1.xpose.msra.mxu0 0.0
    %2846 = vmatprep.subr.mxu0 0.0
    %2847 = vmatpush1.xpose.msra.mxu0 0.0
    %2848 = vmatprep.subr.mxu0 0.0
    %2849 = vmatpush1.xpose.msra.mxu0 0.0
    %2850 = vmatprep.subr.mxu0 0.0
    %2851 = vmatpush1.xpose.msra.mxu0 0.0
    %2852 = vmatprep.subr.mxu0 0.0
    %2853 = vmatpush1.xpose.msra.mxu0 0.0
    %2854 = vmatprep.subr.mxu0 0.0
    %2855 = vmatpush1.xpose.msra.mxu0 0.0
    %2856 = vmatprep.subr.mxu0 0.0
    %2857 = vmatpush1.xpose.msra.mxu0 0.0
    %2858 = vmatprep.subr.mxu0 0.0
    %2859 = vmatpush1.xpose.msra.mxu0 0.0
    %2860 = vmatprep.subr.mxu0 0.0
    %2861 = vmatpush1.xpose.msra.mxu0 0.0
    %2862 = vmatprep.subr.mxu0 0.0
    %2863 = vmatpush1.xpose.msra.mxu0 0.0
    %2864 = vmatprep.subr.mxu0 0.0
    %2865 = vmatpush1.xpose.msra.mxu0 0.0
    %2866 = vmatprep.subr.mxu0 0.0
    %2867 = vmatpush1.xpose.msra.mxu0 0.0
    %2868 = vmatprep.subr.mxu0 0.0
    %2869 = vmatpush1.xpose.msra.mxu0 0.0
    %2870 = vmatprep.subr.mxu0 0.0
    %2871 = vmatpush1.xpose.msra.mxu0 0.0
    %2872 = vmatprep.subr.mxu0 0.0
    %2873 = vmatpush1.xpose.msra.mxu0 0.0
    %2874 = vmatprep.subr.mxu0 0.0
    %2875 = vmatpush1.xpose.msra.mxu0 0.0
    %2876 = vmatprep.subr.mxu0 0.0
    %2877 = vmatpush1.xpose.msra.mxu0 0.0
    %2878 = vmatprep.subr.mxu0 0.0
    %2879 = vmatpush1.xpose.msra.mxu0 0.0
    %2880 = vmatprep.subr.mxu0 0.0
    %2881 = vmatpush1.xpose.msra.mxu0 0.0
    %2882 = vmatprep.subr.mxu0 0.0
    %2883 = vmatpush1.xpose.msra.mxu0 0.0
    %2884 = vmatprep.mubr.f32.mxu0 0.0
    %2885 = vmatmul.mubr.f32.gmra.mrb[0].mxu0 %v2816
    %v2886 = vpop.f32.mrb[0].mxu0
    %v2887 = vadd.f32 0.0, %v2886
    %v2888 = vpop.f32.mrb[0].mxu0
    %2889 = vdwg.mxu0
    %v2890 = vmul.f32 %v2887, 0.35355338
    %v2891 = vadd.f32 %v2890, %v1058
    %v2892 = vsel %vm291, %v2891, -inf
    %2893 = vmax.xlane.f32.xlu0 %v2892
    %v2894 = vpop.xlane.xlu0 %2893
    %v2895 = vsub.f32 %v2891, %v2894
    %v2896 = vmul.f32 %v2895, 1.442695
    %v2897 = vpow.pop %v2896
    %v2898 = vsel %vm291, %v2897, 0.0
    %2899 = vadd.xlane.f32.xlu0 %v2898
    %v2900 = vpop.xlane.xlu0 %2899
    %v2901 = vrcp.pop %v2900
    %v2902 = vmul.f32 %v2897, %v2901
    %2903 = vrot.lane.b32.xlu0 %v2128, 64
    %v2904 = vpop.permute.xlu0 %2903
    %v2907 = vsel %vm291, %v2902, 0
    %2909 = vmatprep.subr.mxu0 0.0
    %2910 = vmatpush1.msra.mxu0 %v2904
    %2911 = vmatprep.subr.mxu0 0.0
    %2912 = vmatpush1.msra.mxu0 0.0
    %2913 = vmatprep.subr.mxu0 0.0
    %2914 = vmatpush1.msra.mxu0 0.0
    %2915 = vmatprep.subr.mxu0 0.0
    %2916 = vmatpush1.msra.mxu0 0.0
    %2917 = vmatprep.subr.mxu0 0.0
    %2918 = vmatpush1.msra.mxu0 0.0
    %2919 = vmatprep.subr.mxu0 0.0
    %2920 = vmatpush1.msra.mxu0 0.0
    %2921 = vmatprep.subr.mxu0 0.0
    %2922 = vmatpush1.msra.mxu0 0.0
    %2923 = vmatprep.subr.mxu0 0.0
    %2924 = vmatpush1.msra.mxu0 0.0
    %2925 = vmatprep.subr.mxu0 0.0
    %2926 = vmatpush1.msra.mxu0 0.0
    %2927 = vmatprep.subr.mxu0 0.0
    %2928 = vmatpush1.msra.mxu0 0.0
    %2929 = vmatprep.subr.mxu0 0.0
    %2930 = vmatpush1.msra.mxu0 0.0
    %2931 = vmatprep.subr.mxu0 0.0
    %2932 = vmatpush1.msra.mxu0 0.0
    %2933 = vmatprep.subr.mxu0 0.0
    %2934 = vmatpush1.msra.mxu0 0.0
    %2935 = vmatprep.subr.mxu0 0.0
    %2936 = vmatpush1.msra.mxu0 0.0
    %2937 = vmatprep.subr.mxu0 0.0
    %2938 = vmatpush1.msra.mxu0 0.0
    %2939 = vmatprep.subr.mxu0 0.0
    %2940 = vmatpush1.msra.mxu0 0.0
    %2941 = vmatprep.subr.mxu0 0.0
    %2942 = vmatpush1.msra.mxu0 0.0
    %2943 = vmatprep.subr.mxu0 0.0
    %2944 = vmatpush1.msra.mxu0 0.0
    %2945 = vmatprep.subr.mxu0 0.0
    %2946 = vmatpush1.msra.mxu0 0.0
    %2947 = vmatprep.subr.mxu0 0.0
    %2948 = vmatpush1.msra.mxu0 0.0
    %2949 = vmatprep.subr.mxu0 0.0
    %2950 = vmatpush1.msra.mxu0 0.0
    %2951 = vmatprep.subr.mxu0 0.0
    %2952 = vmatpush1.msra.mxu0 0.0
    %2953 = vmatprep.subr.mxu0 0.0
    %2954 = vmatpush1.msra.mxu0 0.0
    %2955 = vmatprep.subr.mxu0 0.0
    %2956 = vmatpush1.msra.mxu0 0.0
    %2957 = vmatprep.subr.mxu0 0.0
    %2958 = vmatpush1.msra.mxu0 0.0
    %2959 = vmatprep.subr.mxu0 0.0
    %2960 = vmatpush1.msra.mxu0 0.0
    %2961 = vmatprep.subr.mxu0 0.0
    %2962 = vmatpush1.msra.mxu0 0.0
    %2963 = vmatprep.subr.mxu0 0.0
    %2964 = vmatpush1.msra.mxu0 0.0
    %2965 = vmatprep.subr.mxu0 0.0
    %2966 = vmatpush1.msra.mxu0 0.0
    %2967 = vmatprep.subr.mxu0 0.0
    %2968 = vmatpush1.msra.mxu0 0.0
    %2969 = vmatprep.subr.mxu0 0.0
    %2970 = vmatpush1.msra.mxu0 0.0
    %2971 = vmatprep.subr.mxu0 0.0
    %2972 = vmatpush1.msra.mxu0 0.0
    %2973 = vmatprep.mubr.f32.mxu0 0.0
    %2974 = vmatmul.mubr.f32.gmra.mrb[0].mxu0 %v2907
    %v2975 = vpop.f32.mrb[0].mxu0
    %v2976 = vadd.f32 0.0, %v2975
    %v2977 = vpop.f32.mrb[0].mxu0
    %2978 = vdwg.mxu0
    %2979 = vrot.lane.b32.xlu0 %v2128, 120
    %v2980 = vpop.permute.xlu0 %2979
    %2981 = vrot.lane.b32.xlu0 %v2128, 88
    %v2982 = vpop.permute.xlu0 %2981
    %v2983 = vsel %vm291, %v2980, 0
    %v2985 = vsel %vm291, %v2982, 0
    %2987 = vmatprep.subr.mxu0 0.0
    %2988 = vmatpush1.xpose.msra.mxu0 %v2985
    %2989 = vmatprep.subr.mxu0 0.0
    %2990 = vmatpush1.xpose.msra.mxu0 0.0
    %2991 = vmatprep.subr.mxu0 0.0
    %2992 = vmatpush1.xpose.msra.mxu0 0.0
    %2993 = vmatprep.subr.mxu0 0.0
    %2994 = vmatpush1.xpose.msra.mxu0 0.0
    %2995 = vmatprep.subr.mxu0 0.0
    %2996 = vmatpush1.xpose.msra.mxu0 0.0
    %2997 = vmatprep.subr.mxu0 0.0
    %2998 = vmatpush1.xpose.msra.mxu0 0.0
    %2999 = vmatprep.subr.mxu0 0.0
    %3000 = vmatpush1.xpose.msra.mxu0 0.0
    %3001 = vmatprep.subr.mxu0 0.0
    %3002 = vmatpush1.xpose.msra.mxu0 0.0
    %3003 = vmatprep.subr.mxu0 0.0
    %3004 = vmatpush1.xpose.msra.mxu0 0.0
    %3005 = vmatprep.subr.mxu0 0.0
    %3006 = vmatpush1.xpose.msra.mxu0 0.0
    %3007 = vmatprep.subr.mxu0 0.0
    %3008 = vmatpush1.xpose.msra.mxu0 0.0
    %3009 = vmatprep.subr.mxu0 0.0
    %3010 = vmatpush1.xpose.msra.mxu0 0.0
    %3011 = vmatprep.subr.mxu0 0.0
    %3012 = vmatpush1.xpose.msra.mxu0 0.0
    %3013 = vmatprep.subr.mxu0 0.0
    %3014 = vmatpush1.xpose.msra.mxu0 0.0
    %3015 = vmatprep.subr.mxu0 0.0
    %3016 = vmatpush1.xpose.msra.mxu0 0.0
    %3017 = vmatprep.subr.mxu0 0.0
    %3018 = vmatpush1.xpose.msra.mxu0 0.0
    %3019 = vmatprep.subr.mxu0 0.0
    %3020 = vmatpush1.xpose.msra.mxu0 0.0
    %3021 = vmatprep.subr.mxu0 0.0
    %3022 = vmatpush1.xpose.msra.mxu0 0.0
    %3023 = vmatprep.subr.mxu0 0.0
    %3024 = vmatpush1.xpose.msra.mxu0 0.0
    %3025 = vmatprep.subr.mxu0 0.0
    %3026 = vmatpush1.xpose.msra.mxu0 0.0
    %3027 = vmatprep.subr.mxu0 0.0
    %3028 = vmatpush1.xpose.msra.mxu0 0.0
    %3029 = vmatprep.subr.mxu0 0.0
    %3030 = vmatpush1.xpose.msra.mxu0 0.0
    %3031 = vmatprep.subr.mxu0 0.0
    %3032 = vmatpush1.xpose.msra.mxu0 0.0
    %3033 = vmatprep.subr.mxu0 0.0
    %3034 = vmatpush1.xpose.msra.mxu0 0.0
    %3035 = vmatprep.subr.mxu0 0.0
    %3036 = vmatpush1.xpose.msra.mxu0 0.0
    %3037 = vmatprep.subr.mxu0 0.0
    %3038 = vmatpush1.xpose.msra.mxu0 0.0
    %3039 = vmatprep.subr.mxu0 0.0
    %3040 = vmatpush1.xpose.msra.mxu0 0.0
    %3041 = vmatprep.subr.mxu0 0.0
    %3042 = vmatpush1.xpose.msra.mxu0 0.0
    %3043 = vmatprep.subr.mxu0 0.0
    %3044 = vmatpush1.xpose.msra.mxu0 0.0
    %3045 = vmatprep.subr.mxu0 0.0
    %3046 = vmatpush1.xpose.msra.mxu0 0.0
    %3047 = vmatprep.subr.mxu0 0.0
    %3048 = vmatpush1.xpose.msra.mxu0 0.0
    %3049 = vmatprep.subr.mxu0 0.0
    %3050 = vmatpush1.xpose.msra.mxu0 0.0
    %3051 = vmatprep.mubr.f32.mxu0 0.0
    %3052 = vmatmul.mubr.f32.gmra.mrb[0].mxu0 %v2983
    %v3053 = vpop.f32.mrb[0].mxu0
    %v3054 = vadd.f32 0.0, %v3053
    %v3055 = vpop.f32.mrb[0].mxu0
    %3056 = vdwg.mxu0
    %v3057 = vmul.f32 %v3054, 0.35355338
    %v3058 = vadd.f32 %v3057, %v1058
    %v3059 = vsel %vm291, %v3058, -inf
    %3060 = vmax.xlane.f32.xlu0 %v3059
    %v3061 = vpop.xlane.xlu0 %3060
    %v3062 = vsub.f32 %v3058, %v3061
    %v3063 = vmul.f32 %v3062, 1.442695
    %v3064 = vpow.pop %v3063
    %v3065 = vsel %vm291, %v3064, 0.0
    %3066 = vadd.xlane.f32.xlu0 %v3065
    %v3067 = vpop.xlane.xlu0 %3066
    %v3068 = vrcp.pop %v3067
    %v3069 = vmul.f32 %v3064, %v3068
    %3070 = vrot.lane.b32.xlu0 %v2128, 56
    %v3071 = vpop.permute.xlu0 %3070
    %v3074 = vsel %vm291, %v3069, 0
    %3076 = vmatprep.subr.mxu0 0.0
    %3077 = vmatpush1.msra.mxu0 %v3071
    %3078 = vmatprep.subr.mxu0 0.0
    %3079 = vmatpush1.msra.mxu0 0.0
    %3080 = vmatprep.subr.mxu0 0.0
    %3081 = vmatpush1.msra.mxu0 0.0
    %3082 = vmatprep.subr.mxu0 0.0
    %3083 = vmatpush1.msra.mxu0 0.0
    %3084 = vmatprep.subr.mxu0 0.0
    %3085 = vmatpush1.msra.mxu0 0.0
    %3086 = vmatprep.subr.mxu0 0.0
    %3087 = vmatpush1.msra.mxu0 0.0
    %3088 = vmatprep.subr.mxu0 0.0
    %3089 = vmatpush1.msra.mxu0 0.0
    %3090 = vmatprep.subr.mxu0 0.0
    %3091 = vmatpush1.msra.mxu0 0.0
    %3092 = vmatprep.subr.mxu0 0.0
    %3093 = vmatpush1.msra.mxu0 0.0
    %3094 = vmatprep.subr.mxu0 0.0
    %3095 = vmatpush1.msra.mxu0 0.0
    %3096 = vmatprep.subr.mxu0 0.0
    %3097 = vmatpush1.msra.mxu0 0.0
    %3098 = vmatprep.subr.mxu0 0.0
    %3099 = vmatpush1.msra.mxu0 0.0
    %3100 = vmatprep.subr.mxu0 0.0
    %3101 = vmatpush1.msra.mxu0 0.0
    %3102 = vmatprep.subr.mxu0 0.0
    %3103 = vmatpush1.msra.mxu0 0.0
    %3104 = vmatprep.subr.mxu0 0.0
    %3105 = vmatpush1.msra.mxu0 0.0
    %3106 = vmatprep.subr.mxu0 0.0
    %3107 = vmatpush1.msra.mxu0 0.0
    %3108 = vmatprep.subr.mxu0 0.0
    %3109 = vmatpush1.msra.mxu0 0.0
    %3110 = vmatprep.subr.mxu0 0.0
    %3111 = vmatpush1.msra.mxu0 0.0
    %3112 = vmatprep.subr.mxu0 0.0
    %3113 = vmatpush1.msra.mxu0 0.0
    %3114 = vmatprep.subr.mxu0 0.0
    %3115 = vmatpush1.msra.mxu0 0.0
    %3116 = vmatprep.subr.mxu0 0.0
    %3117 = vmatpush1.msra.mxu0 0.0
    %3118 = vmatprep.subr.mxu0 0.0
    %3119 = vmatpush1.msra.mxu0 0.0
    %3120 = vmatprep.subr.mxu0 0.0
    %3121 = vmatpush1.msra.mxu0 0.0
    %3122 = vmatprep.subr.mxu0 0.0
    %3123 = vmatpush1.msra.mxu0 0.0
    %3124 = vmatprep.subr.mxu0 0.0
    %3125 = vmatpush1.msra.mxu0 0.0
    %3126 = vmatprep.subr.mxu0 0.0
    %3127 = vmatpush1.msra.mxu0 0.0
    %3128 = vmatprep.subr.mxu0 0.0
    %3129 = vmatpush1.msra.mxu0 0.0
    %3130 = vmatprep.subr.mxu0 0.0
    %3131 = vmatpush1.msra.mxu0 0.0
    %3132 = vmatprep.subr.mxu0 0.0
    %3133 = vmatpush1.msra.mxu0 0.0
    %3134 = vmatprep.subr.mxu0 0.0
    %3135 = vmatpush1.msra.mxu0 0.0
    %3136 = vmatprep.subr.mxu0 0.0
    %3137 = vmatpush1.msra.mxu0 0.0
    %3138 = vmatprep.subr.mxu0 0.0
    %3139 = vmatpush1.msra.mxu0 0.0
    %3140 = vmatprep.mubr.f32.mxu0 0.0
    %3141 = vmatmul.mubr.f32.gmra.mrb[0].mxu0 %v3074
    %v3142 = vpop.f32.mrb[0].mxu0
    %v3143 = vadd.f32 0.0, %v3142
    %v3144 = vpop.f32.mrb[0].mxu0
    %3145 = vdwg.mxu0
    %3146 = vrot.lane.b32.xlu0 %v2128, 112
    %v3147 = vpop.permute.xlu0 %3146
    %3148 = vrot.lane.b32.xlu0 %v2128, 80
    %v3149 = vpop.permute.xlu0 %3148
    %v3150 = vsel %vm291, %v3147, 0
    %v3152 = vsel %vm291, %v3149, 0
    %3154 = vmatprep.subr.mxu0 0.0
    %3155 = vmatpush1.xpose.msra.mxu0 %v3152
    %3156 = vmatprep.subr.mxu0 0.0
    %3157 = vmatpush1.xpose.msra.mxu0 0.0
    %3158 = vmatprep.subr.mxu0 0.0
    %3159 = vmatpush1.xpose.msra.mxu0 0.0
    %3160 = vmatprep.subr.mxu0 0.0
    %3161 = vmatpush1.xpose.msra.mxu0 0.0
    %3162 = vmatprep.subr.mxu0 0.0
    %3163 = vmatpush1.xpose.msra.mxu0 0.0
    %3164 = vmatprep.subr.mxu0 0.0
    %3165 = vmatpush1.xpose.msra.mxu0 0.0
    %3166 = vmatprep.subr.mxu0 0.0
    %3167 = vmatpush1.xpose.msra.mxu0 0.0
    %3168 = vmatprep.subr.mxu0 0.0
    %3169 = vmatpush1.xpose.msra.mxu0 0.0
    %3170 = vmatprep.subr.mxu0 0.0
    %3171 = vmatpush1.xpose.msra.mxu0 0.0
    %3172 = vmatprep.subr.mxu0 0.0
    %3173 = vmatpush1.xpose.msra.mxu0 0.0
    %3174 = vmatprep.subr.mxu0 0.0
    %3175 = vmatpush1.xpose.msra.mxu0 0.0
    %3176 = vmatprep.subr.mxu0 0.0
    %3177 = vmatpush1.xpose.msra.mxu0 0.0
    %3178 = vmatprep.subr.mxu0 0.0
    %3179 = vmatpush1.xpose.msra.mxu0 0.0
    %3180 = vmatprep.subr.mxu0 0.0
    %3181 = vmatpush1.xpose.msra.mxu0 0.0
    %3182 = vmatprep.subr.mxu0 0.0
    %3183 = vmatpush1.xpose.msra.mxu0 0.0
    %3184 = vmatprep.subr.mxu0 0.0
    %3185 = vmatpush1.xpose.msra.mxu0 0.0
    %3186 = vmatprep.subr.mxu0 0.0
    %3187 = vmatpush1.xpose.msra.mxu0 0.0
    %3188 = vmatprep.subr.mxu0 0.0
    %3189 = vmatpush1.xpose.msra.mxu0 0.0
    %3190 = vmatprep.subr.mxu0 0.0
    %3191 = vmatpush1.xpose.msra.mxu0 0.0
    %3192 = vmatprep.subr.mxu0 0.0
    %3193 = vmatpush1.xpose.msra.mxu0 0.0
    %3194 = vmatprep.subr.mxu0 0.0
    %3195 = vmatpush1.xpose.msra.mxu0 0.0
    %3196 = vmatprep.subr.mxu0 0.0
    %3197 = vmatpush1.xpose.msra.mxu0 0.0
    %3198 = vmatprep.subr.mxu0 0.0
    %3199 = vmatpush1.xpose.msra.mxu0 0.0
    %3200 = vmatprep.subr.mxu0 0.0
    %3201 = vmatpush1.xpose.msra.mxu0 0.0
    %3202 = vmatprep.subr.mxu0 0.0
    %3203 = vmatpush1.xpose.msra.mxu0 0.0
    %3204 = vmatprep.subr.mxu0 0.0
    %3205 = vmatpush1.xpose.msra.mxu0 0.0
    %3206 = vmatprep.subr.mxu0 0.0
    %3207 = vmatpush1.xpose.msra.mxu0 0.0
    %3208 = vmatprep.subr.mxu0 0.0
    %3209 = vmatpush1.xpose.msra.mxu0 0.0
    %3210 = vmatprep.subr.mxu0 0.0
    %3211 = vmatpush1.xpose.msra.mxu0 0.0
    %3212 = vmatprep.subr.mxu0 0.0
    %3213 = vmatpush1.xpose.msra.mxu0 0.0
    %3214 = vmatprep.subr.mxu0 0.0
    %3215 = vmatpush1.xpose.msra.mxu0 0.0
    %3216 = vmatprep.subr.mxu0 0.0
    %3217 = vmatpush1.xpose.msra.mxu0 0.0
    %3218 = vmatprep.mubr.f32.mxu0 0.0
    %3219 = vmatmul.mubr.f32.gmra.mrb[0].mxu0 %v3150
    %v3220 = vpop.f32.mrb[0].mxu0
    %v3221 = vadd.f32 0.0, %v3220
    %v3222 = vpop.f32.mrb[0].mxu0
    %3223 = vdwg.mxu0
    %v3224 = vmul.f32 %v3221, 0.35355338
    %v3225 = vadd.f32 %v3224, %v1058
    %v3226 = vsel %vm291, %v3225, -inf
    %3227 = vmax.xlane.f32.xlu0 %v3226
    %v3228 = vpop.xlane.xlu0 %3227
    %v3229 = vsub.f32 %v3225, %v3228
    %v3230 = vmul.f32 %v3229, 1.442695
    %v3231 = vpow.pop %v3230
    %v3232 = vsel %vm291, %v3231, 0.0
    %3233 = vadd.xlane.f32.xlu0 %v3232
    %v3234 = vpop.xlane.xlu0 %3233
    %v3235 = vrcp.pop %v3234
    %v3236 = vmul.f32 %v3231, %v3235
    %3237 = vrot.lane.b32.xlu0 %v2128, 48
    %v3238 = vpop.permute.xlu0 %3237
    %v3241 = vsel %vm291, %v3236, 0
    %3243 = vmatprep.subr.mxu0 0.0
    %3244 = vmatpush1.msra.mxu0 %v3238
    %3245 = vmatprep.subr.mxu0 0.0
    %3246 = vmatpush1.msra.mxu0 0.0
    %3247 = vmatprep.subr.mxu0 0.0
    %3248 = vmatpush1.msra.mxu0 0.0
    %3249 = vmatprep.subr.mxu0 0.0
    %3250 = vmatpush1.msra.mxu0 0.0
    %3251 = vmatprep.subr.mxu0 0.0
    %3252 = vmatpush1.msra.mxu0 0.0
    %3253 = vmatprep.subr.mxu0 0.0
    %3254 = vmatpush1.msra.mxu0 0.0
    %3255 = vmatprep.subr.mxu0 0.0
    %3256 = vmatpush1.msra.mxu0 0.0
    %3257 = vmatprep.subr.mxu0 0.0
    %3258 = vmatpush1.msra.mxu0 0.0
    %3259 = vmatprep.subr.mxu0 0.0
    %3260 = vmatpush1.msra.mxu0 0.0
    %3261 = vmatprep.subr.mxu0 0.0
    %3262 = vmatpush1.msra.mxu0 0.0
    %3263 = vmatprep.subr.mxu0 0.0
    %3264 = vmatpush1.msra.mxu0 0.0
    %3265 = vmatprep.subr.mxu0 0.0
    %3266 = vmatpush1.msra.mxu0 0.0
    %3267 = vmatprep.subr.mxu0 0.0
    %3268 = vmatpush1.msra.mxu0 0.0
    %3269 = vmatprep.subr.mxu0 0.0
    %3270 = vmatpush1.msra.mxu0 0.0
    %3271 = vmatprep.subr.mxu0 0.0
    %3272 = vmatpush1.msra.mxu0 0.0
    %3273 = vmatprep.subr.mxu0 0.0
    %3274 = vmatpush1.msra.mxu0 0.0
    %3275 = vmatprep.subr.mxu0 0.0
    %3276 = vmatpush1.msra.mxu0 0.0
    %3277 = vmatprep.subr.mxu0 0.0
    %3278 = vmatpush1.msra.mxu0 0.0
    %3279 = vmatprep.subr.mxu0 0.0
    %3280 = vmatpush1.msra.mxu0 0.0
    %3281 = vmatprep.subr.mxu0 0.0
    %3282 = vmatpush1.msra.mxu0 0.0
    %3283 = vmatprep.subr.mxu0 0.0
    %3284 = vmatpush1.msra.mxu0 0.0
    %3285 = vmatprep.subr.mxu0 0.0
    %3286 = vmatpush1.msra.mxu0 0.0
    %3287 = vmatprep.subr.mxu0 0.0
    %3288 = vmatpush1.msra.mxu0 0.0
    %3289 = vmatprep.subr.mxu0 0.0
    %3290 = vmatpush1.msra.mxu0 0.0
    %3291 = vmatprep.subr.mxu0 0.0
    %3292 = vmatpush1.msra.mxu0 0.0
    %3293 = vmatprep.subr.mxu0 0.0
    %3294 = vmatpush1.msra.mxu0 0.0
    %3295 = vmatprep.subr.mxu0 0.0
    %3296 = vmatpush1.msra.mxu0 0.0
    %3297 = vmatprep.subr.mxu0 0.0
    %3298 = vmatpush1.msra.mxu0 0.0
    %3299 = vmatprep.subr.mxu0 0.0
    %3300 = vmatpush1.msra.mxu0 0.0
    %3301 = vmatprep.subr.mxu0 0.0
    %3302 = vmatpush1.msra.mxu0 0.0
    %3303 = vmatprep.subr.mxu0 0.0
    %3304 = vmatpush1.msra.mxu0 0.0
    %3305 = vmatprep.subr.mxu0 0.0
    %3306 = vmatpush1.msra.mxu0 0.0
    %3307 = vmatprep.mubr.f32.mxu0 0.0
    %3308 = vmatmul.mubr.f32.gmra.mrb[0].mxu0 %v3241
    %v3309 = vpop.f32.mrb[0].mxu0
    %v3310 = vadd.f32 0.0, %v3309
    %v3311 = vpop.f32.mrb[0].mxu0
    %3312 = vdwg.mxu0
    %3313 = vrot.lane.b32.xlu0 %v2128, 104
    %v3314 = vpop.permute.xlu0 %3313
    %3315 = vrot.lane.b32.xlu0 %v2128, 72
    %v3316 = vpop.permute.xlu0 %3315
    %v3317 = vsel %vm291, %v3314, 0
    %v3319 = vsel %vm291, %v3316, 0
    %3321 = vmatprep.subr.mxu0 0.0
    %3322 = vmatpush1.xpose.msra.mxu0 %v3319
    %3323 = vmatprep.subr.mxu0 0.0
    %3324 = vmatpush1.xpose.msra.mxu0 0.0
    %3325 = vmatprep.subr.mxu0 0.0
    %3326 = vmatpush1.xpose.msra.mxu0 0.0
    %3327 = vmatprep.subr.mxu0 0.0
    %3328 = vmatpush1.xpose.msra.mxu0 0.0
    %3329 = vmatprep.subr.mxu0 0.0
    %3330 = vmatpush1.xpose.msra.mxu0 0.0
    %3331 = vmatprep.subr.mxu0 0.0
    %3332 = vmatpush1.xpose.msra.mxu0 0.0
    %3333 = vmatprep.subr.mxu0 0.0
    %3334 = vmatpush1.xpose.msra.mxu0 0.0
    %3335 = vmatprep.subr.mxu0 0.0
    %3336 = vmatpush1.xpose.msra.mxu0 0.0
    %3337 = vmatprep.subr.mxu0 0.0
    %3338 = vmatpush1.xpose.msra.mxu0 0.0
    %3339 = vmatprep.subr.mxu0 0.0
    %3340 = vmatpush1.xpose.msra.mxu0 0.0
    %3341 = vmatprep.subr.mxu0 0.0
    %3342 = vmatpush1.xpose.msra.mxu0 0.0
    %3343 = vmatprep.subr.mxu0 0.0
    %3344 = vmatpush1.xpose.msra.mxu0 0.0
    %3345 = vmatprep.subr.mxu0 0.0
    %3346 = vmatpush1.xpose.msra.mxu0 0.0
    %3347 = vmatprep.subr.mxu0 0.0
    %3348 = vmatpush1.xpose.msra.mxu0 0.0
    %3349 = vmatprep.subr.mxu0 0.0
    %3350 = vmatpush1.xpose.msra.mxu0 0.0
    %3351 = vmatprep.subr.mxu0 0.0
    %3352 = vmatpush1.xpose.msra.mxu0 0.0
    %3353 = vmatprep.subr.mxu0 0.0
    %3354 = vmatpush1.xpose.msra.mxu0 0.0
    %3355 = vmatprep.subr.mxu0 0.0
    %3356 = vmatpush1.xpose.msra.mxu0 0.0
    %3357 = vmatprep.subr.mxu0 0.0
    %3358 = vmatpush1.xpose.msra.mxu0 0.0
    %3359 = vmatprep.subr.mxu0 0.0
    %3360 = vmatpush1.xpose.msra.mxu0 0.0
    %3361 = vmatprep.subr.mxu0 0.0
    %3362 = vmatpush1.xpose.msra.mxu0 0.0
    %3363 = vmatprep.subr.mxu0 0.0
    %3364 = vmatpush1.xpose.msra.mxu0 0.0
    %3365 = vmatprep.subr.mxu0 0.0
    %3366 = vmatpush1.xpose.msra.mxu0 0.0
    %3367 = vmatprep.subr.mxu0 0.0
    %3368 = vmatpush1.xpose.msra.mxu0 0.0
    %3369 = vmatprep.subr.mxu0 0.0
    %3370 = vmatpush1.xpose.msra.mxu0 0.0
    %3371 = vmatprep.subr.mxu0 0.0
    %3372 = vmatpush1.xpose.msra.mxu0 0.0
    %3373 = vmatprep.subr.mxu0 0.0
    %3374 = vmatpush1.xpose.msra.mxu0 0.0
    %3375 = vmatprep.subr.mxu0 0.0
    %3376 = vmatpush1.xpose.msra.mxu0 0.0
    %3377 = vmatprep.subr.mxu0 0.0
    %3378 = vmatpush1.xpose.msra.mxu0 0.0
    %3379 = vmatprep.subr.mxu0 0.0
    %3380 = vmatpush1.xpose.msra.mxu0 0.0
    %3381 = vmatprep.subr.mxu0 0.0
    %3382 = vmatpush1.xpose.msra.mxu0 0.0
    %3383 = vmatprep.subr.mxu0 0.0
    %3384 = vmatpush1.xpose.msra.mxu0 0.0
    %3385 = vmatprep.mubr.f32.mxu0 0.0
    %3386 = vmatmul.mubr.f32.gmra.mrb[0].mxu0 %v3317
    %v3387 = vpop.f32.mrb[0].mxu0
    %v3388 = vadd.f32 0.0, %v3387
    %v3389 = vpop.f32.mrb[0].mxu0
    %3390 = vdwg.mxu0
    %v3391 = vmul.f32 %v3388, 0.35355338
    %v3392 = vadd.f32 %v3391, %v1058
    %v3393 = vsel %vm291, %v3392, -inf
    %3394 = vmax.xlane.f32.xlu0 %v3393
    %v3395 = vpop.xlane.xlu0 %3394
    %v3396 = vsub.f32 %v3392, %v3395
    %v3397 = vmul.f32 %v3396, 1.442695
    %v3398 = vpow.pop %v3397
    %v3399 = vsel %vm291, %v3398, 0.0
    %3400 = vadd.xlane.f32.xlu0 %v3399
    %v3401 = vpop.xlane.xlu0 %3400
    %v3402 = vrcp.pop %v3401
    %v3403 = vmul.f32 %v3398, %v3402
    %3404 = vrot.lane.b32.xlu0 %v2128, 40
    %v3405 = vpop.permute.xlu0 %3404
    %v3408 = vsel %vm291, %v3403, 0
    %3410 = vmatprep.subr.mxu0 0.0
    %3411 = vmatpush1.msra.mxu0 %v3405
    %3412 = vmatprep.subr.mxu0 0.0
    %3413 = vmatpush1.msra.mxu0 0.0
    %3414 = vmatprep.subr.mxu0 0.0
    %3415 = vmatpush1.msra.mxu0 0.0
    %3416 = vmatprep.subr.mxu0 0.0
    %3417 = vmatpush1.msra.mxu0 0.0
    %3418 = vmatprep.subr.mxu0 0.0
    %3419 = vmatpush1.msra.mxu0 0.0
    %3420 = vmatprep.subr.mxu0 0.0
    %3421 = vmatpush1.msra.mxu0 0.0
    %3422 = vmatprep.subr.mxu0 0.0
    %3423 = vmatpush1.msra.mxu0 0.0
    %3424 = vmatprep.subr.mxu0 0.0
    %3425 = vmatpush1.msra.mxu0 0.0
    %3426 = vmatprep.subr.mxu0 0.0
    %3427 = vmatpush1.msra.mxu0 0.0
    %3428 = vmatprep.subr.mxu0 0.0
    %3429 = vmatpush1.msra.mxu0 0.0
    %3430 = vmatprep.subr.mxu0 0.0
    %3431 = vmatpush1.msra.mxu0 0.0
    %3432 = vmatprep.subr.mxu0 0.0
    %3433 = vmatpush1.msra.mxu0 0.0
    %3434 = vmatprep.subr.mxu0 0.0
    %3435 = vmatpush1.msra.mxu0 0.0
    %3436 = vmatprep.subr.mxu0 0.0
    %3437 = vmatpush1.msra.mxu0 0.0
    %3438 = vmatprep.subr.mxu0 0.0
    %3439 = vmatpush1.msra.mxu0 0.0
    %3440 = vmatprep.subr.mxu0 0.0
    %3441 = vmatpush1.msra.mxu0 0.0
    %3442 = vmatprep.subr.mxu0 0.0
    %3443 = vmatpush1.msra.mxu0 0.0
    %3444 = vmatprep.subr.mxu0 0.0
    %3445 = vmatpush1.msra.mxu0 0.0
    %3446 = vmatprep.subr.mxu0 0.0
    %3447 = vmatpush1.msra.mxu0 0.0
    %3448 = vmatprep.subr.mxu0 0.0
    %3449 = vmatpush1.msra.mxu0 0.0
    %3450 = vmatprep.subr.mxu0 0.0
    %3451 = vmatpush1.msra.mxu0 0.0
    %3452 = vmatprep.subr.mxu0 0.0
    %3453 = vmatpush1.msra.mxu0 0.0
    %3454 = vmatprep.subr.mxu0 0.0
    %3455 = vmatpush1.msra.mxu0 0.0
    %3456 = vmatprep.subr.mxu0 0.0
    %3457 = vmatpush1.msra.mxu0 0.0
    %3458 = vmatprep.subr.mxu0 0.0
    %3459 = vmatpush1.msra.mxu0 0.0
    %3460 = vmatprep.subr.mxu0 0.0
    %3461 = vmatpush1.msra.mxu0 0.0
    %3462 = vmatprep.subr.mxu0 0.0
    %3463 = vmatpush1.msra.mxu0 0.0
    %3464 = vmatprep.subr.mxu0 0.0
    %3465 = vmatpush1.msra.mxu0 0.0
    %3466 = vmatprep.subr.mxu0 0.0
    %3467 = vmatpush1.msra.mxu0 0.0
    %3468 = vmatprep.subr.mxu0 0.0
    %3469 = vmatpush1.msra.mxu0 0.0
    %3470 = vmatprep.subr.mxu0 0.0
    %3471 = vmatpush1.msra.mxu0 0.0
    %3472 = vmatprep.subr.mxu0 0.0
    %3473 = vmatpush1.msra.mxu0 0.0
    %3474 = vmatprep.mubr.f32.mxu0 0.0
    %3475 = vmatmul.mubr.f32.gmra.mrb[0].mxu0 %v3408
    %v3476 = vpop.f32.mrb[0].mxu0
    %v3477 = vadd.f32 0.0, %v3476
    %v3478 = vpop.f32.mrb[0].mxu0
    %3479 = vdwg.mxu0
    %3481 = vrot.lane.b32.xlu0 %v3143, 8
    %v3482 = vpop.permute.xlu0 %3481
    %3485 = vrot.lane.b32.xlu0 %v3310, 16
    %v3486 = vpop.permute.xlu0 %3485
    %3489 = vrot.lane.b32.xlu0 %v3477, 24
    %v3490 = vpop.permute.xlu0 %3489
    %v3492 = vsel %vm291, %v2976, %v3482
    %v3493 = vsel %vm973, %v3492, %v3486
    %v3494 = vsel %vm975, %v3493, %v3490
    %v3495 = vld [vmem:[%s39] sm:$0xff]
    %v3496 = vld [vmem:[%s39 + $0x8] sm:$0xff]
    %v3497 = vld [vmem:[%s39 + $0x10] sm:$0xff]
    %v3498 = vld [vmem:[%s39 + $0x18] sm:$0xff]
    %v3499 = vld [vmem:[%s41] sm:$0x1]
    %v3501 = vlaneseq
    %v3502 = vshrl.u32 %v3501, 7
    %v3503 = vsub.s32 0, %v3502
    %v3504 = vrot.slane %v3499, %v3503
    %v3507 = vsel %vm151, %v2812, 0
    %v3510 = vsel %vm151, %v3494, 0
    %3512 = vmatprep.subr.mxu0 0.0
    %3513 = vmatpush1.msra.mxu0 %v3495
    %3514 = vmatprep.subr.mxu0 0.0
    %3515 = vmatpush1.msra.mxu0 %v3496
    %3516 = vmatprep.subr.mxu0 0.0
    %3517 = vmatpush1.msra.mxu0 %v3497
    %3518 = vmatprep.subr.mxu0 0.0
    %3519 = vmatpush1.msra.mxu0 %v3498
    %3520 = vmatprep.subr.mxu0 0.0
    %3521 = vmatpush1.msra.mxu0 0.0
    %3522 = vmatprep.subr.mxu0 0.0
    %3523 = vmatpush1.msra.mxu0 0.0
    %3524 = vmatprep.subr.mxu0 0.0
    %3525 = vmatpush1.msra.mxu0 0.0
    %3526 = vmatprep.subr.mxu0 0.0
    %3527 = vmatpush1.msra.mxu0 0.0
    %3528 = vmatprep.subr.mxu0 0.0
    %3529 = vmatpush1.msra.mxu0 0.0
    %3530 = vmatprep.subr.mxu0 0.0
    %3531 = vmatpush1.msra.mxu0 0.0
    %3532 = vmatprep.subr.mxu0 0.0
    %3533 = vmatpush1.msra.mxu0 0.0
    %3534 = vmatprep.subr.mxu0 0.0
    %3535 = vmatpush1.msra.mxu0 0.0
    %3536 = vmatprep.subr.mxu0 0.0
    %3537 = vmatpush1.msra.mxu0 0.0
    %3538 = vmatprep.subr.mxu0 0.0
    %3539 = vmatpush1.msra.mxu0 0.0
    %3540 = vmatprep.subr.mxu0 0.0
    %3541 = vmatpush1.msra.mxu0 0.0
    %3542 = vmatprep.subr.mxu0 0.0
    %3543 = vmatpush1.msra.mxu0 0.0
    %3544 = vmatprep.subr.mxu0 0.0
    %3545 = vmatpush1.msra.mxu0 0.0
    %3546 = vmatprep.subr.mxu0 0.0
    %3547 = vmatpush1.msra.mxu0 0.0
    %3548 = vmatprep.subr.mxu0 0.0
    %3549 = vmatpush1.msra.mxu0 0.0
    %3550 = vmatprep.subr.mxu0 0.0
    %3551 = vmatpush1.msra.mxu0 0.0
    %3552 = vmatprep.subr.mxu0 0.0
    %3553 = vmatpush1.msra.mxu0 0.0
    %3554 = vmatprep.subr.mxu0 0.0
    %3555 = vmatpush1.msra.mxu0 0.0
    %3556 = vmatprep.subr.mxu0 0.0
    %3557 = vmatpush1.msra.mxu0 0.0
    %3558 = vmatprep.subr.mxu0 0.0
    %3559 = vmatpush1.msra.mxu0 0.0
    %3560 = vmatprep.subr.mxu0 0.0
    %3561 = vmatpush1.msra.mxu0 0.0
    %3562 = vmatprep.subr.mxu0 0.0
    %3563 = vmatpush1.msra.mxu0 0.0
    %3564 = vmatprep.subr.mxu0 0.0
    %3565 = vmatpush1.msra.mxu0 0.0
    %3566 = vmatprep.subr.mxu0 0.0
    %3567 = vmatpush1.msra.mxu0 0.0
    %3568 = vmatprep.subr.mxu0 0.0
    %3569 = vmatpush1.msra.mxu0 0.0
    %3570 = vmatprep.subr.mxu0 0.0
    %3571 = vmatpush1.msra.mxu0 0.0
    %3572 = vmatprep.subr.mxu0 0.0
    %3573 = vmatpush1.msra.mxu0 0.0
    %3574 = vmatprep.subr.mxu0 0.0
    %3575 = vmatpush1.msra.mxu0 0.0
    %3576 = vmatprep.mubr.f32.mxu0 0.0
    %3577 = vmatmul.mubr.f32.gmra.mrb[0].mxu0 %v3507
    %v3578 = vpop.f32.mrb[0].mxu0
    %v3579 = vadd.f32 %v3504, %v3578
    %v3580 = vpop.f32.mrb[0].mxu0
    %3581 = vmatprep.mubr.f32.mxu0 0.0
    %3582 = vmatmul.mubr.f32.gmra.mrb[0].mxu0 %v3510
    %v3583 = vpop.f32.mrb[0].mxu0
    %v3584 = vadd.f32 %v3504, %v3583
    %v3585 = vpop.f32.mrb[0].mxu0
    %3586 = vdwg.mxu0
    %v3587 = vadd.f32 %v3579, %v2037
    %v3588 = vadd.f32 %v3584, %v2038
    %v3589 = vld [vmem:[%s43] sm:$0x1]
    %v3590 = vld [vmem:[%s45] sm:$0x1]
    %v3591 = vsel %vm151, %v3587, 0.0
    %3592 = vadd.xlane.f32.xlu0 %v3591
    %v3593 = vpop.xlane.xlu0 %3592
    %v3594 = vsel %vm151, %v3588, 0.0
    %3595 = vadd.xlane.f32.xlu0 %v3594
    %v3596 = vpop.xlane.xlu0 %3595
    %v3597 = vmul.f32 %v3593, %v158
    %v3598 = vmul.f32 %v3596, %v158
    %v3599 = vsub.f32 %v3587, %v3597
    %v3600 = vsub.f32 %v3588, %v3598
    %v3601 = vmul.f32 %v3599, %v3599
    %v3602 = vmul.f32 %v3600, %v3600
    %v3603 = vsel %vm151, %v3601, 0.0
    %3604 = vadd.xlane.f32.xlu0 %v3603
    %v3605 = vpop.xlane.xlu0 %3604
    %v3606 = vsel %vm151, %v3602, 0.0
    %3607 = vadd.xlane.f32.xlu0 %v3606
    %v3608 = vpop.xlane.xlu0 %3607
    %v3609 = vmul.f32 %v3605, %v158
    %v3610 = vmul.f32 %v3608, %v158
    %v3611 = vadd.f32 %v3609, 1e-05
    %v3612 = vadd.f32 %v3610, 1e-05
    %v3613 = vrsqrt.pop %v3611
    %v3614 = vrsqrt.pop %v3612
    %v3615 = vmul.f32 %v3599, %v3613
    %v3616 = vmul.f32 %v3600, %v3614
    %v3618 = vlaneseq
    %v3619 = vshrl.u32 %v3618, 7
    %v3620 = vsub.s32 0, %v3619
    %v3621 = vrot.slane %v3589, %v3620
    %v3623 = vmul.f32 %v3615, %v3621
    %v3624 = vmul.f32 %v3616, %v3621
    %v3626 = vlaneseq
    %v3627 = vshrl.u32 %v3626, 7
    %v3628 = vsub.s32 0, %v3627
    %v3629 = vrot.slane %v3590, %v3628
    %v3631 = vadd.f32 %v3623, %v3629
    %v3632 = vadd.f32 %v3624, %v3629
    %v3633 = vld [vmem:[%s47] sm:$0xff]
    %v3634 = vld [vmem:[%s47 + $0x8] sm:$0xff]
    %v3635 = vld [vmem:[%s47 + $0x10] sm:$0xff]
    %v3636 = vld [vmem:[%s47 + $0x18] sm:$0xff]
    %v3637 = vld [vmem:[%s49] sm:$0x1]
    %v3639 = vlaneseq
    %v3640 = vshrl.u32 %v3639, 7
    %v3641 = vsub.s32 0, %v3640
    %v3642 = vrot.slane %v3637, %v3641
    %v3645 = vsel %vm151, %v3631, 0
    %v3648 = vsel %vm151, %v3632, 0
    %3650 = vmatprep.subr.mxu0 0.0
    %3651 = vmatpush1.msra.mxu0 %v3633
    %3652 = vmatprep.subr.mxu0 0.0
    %3653 = vmatpush1.msra.mxu0 %v3634
    %3654 = vmatprep.subr.mxu0 0.0
    %3655 = vmatpush1.msra.mxu0 %v3635
    %3656 = vmatprep.subr.mxu0 0.0
    %3657 = vmatpush1.msra.mxu0 %v3636
    %3658 = vmatprep.subr.mxu0 0.0
    %3659 = vmatpush1.msra.mxu0 0.0
    %3660 = vmatprep.subr.mxu0 0.0
    %3661 = vmatpush1.msra.mxu0 0.0
    %3662 = vmatprep.subr.mxu0 0.0
    %3663 = vmatpush1.msra.mxu0 0.0
    %3664 = vmatprep.subr.mxu0 0.0
    %3665 = vmatpush1.msra.mxu0 0.0
    %3666 = vmatprep.subr.mxu0 0.0
    %3667 = vmatpush1.msra.mxu0 0.0
    %3668 = vmatprep.subr.mxu0 0.0
    %3669 = vmatpush1.msra.mxu0 0.0
    %3670 = vmatprep.subr.mxu0 0.0
    %3671 = vmatpush1.msra.mxu0 0.0
    %3672 = vmatprep.subr.mxu0 0.0
    %3673 = vmatpush1.msra.mxu0 0.0
    %3674 = vmatprep.subr.mxu0 0.0
    %3675 = vmatpush1.msra.mxu0 0.0
    %3676 = vmatprep.subr.mxu0 0.0
    %3677 = vmatpush1.msra.mxu0 0.0
    %3678 = vmatprep.subr.mxu0 0.0
    %3679 = vmatpush1.msra.mxu0 0.0
    %3680 = vmatprep.subr.mxu0 0.0
    %3681 = vmatpush1.msra.mxu0 0.0
    %3682 = vmatprep.subr.mxu0 0.0
    %3683 = vmatpush1.msra.mxu0 0.0
    %3684 = vmatprep.subr.mxu0 0.0
    %3685 = vmatpush1.msra.mxu0 0.0
    %3686 = vmatprep.subr.mxu0 0.0
    %3687 = vmatpush1.msra.mxu0 0.0
    %3688 = vmatprep.subr.mxu0 0.0
    %3689 = vmatpush1.msra.mxu0 0.0
    %3690 = vmatprep.subr.mxu0 0.0
    %3691 = vmatpush1.msra.mxu0 0.0
    %3692 = vmatprep.subr.mxu0 0.0
    %3693 = vmatpush1.msra.mxu0 0.0
    %3694 = vmatprep.subr.mxu0 0.0
    %3695 = vmatpush1.msra.mxu0 0.0
    %3696 = vmatprep.subr.mxu0 0.0
    %3697 = vmatpush1.msra.mxu0 0.0
    %3698 = vmatprep.subr.mxu0 0.0
    %3699 = vmatpush1.msra.mxu0 0.0
    %3700 = vmatprep.subr.mxu0 0.0
    %3701 = vmatpush1.msra.mxu0 0.0
    %3702 = vmatprep.subr.mxu0 0.0
    %3703 = vmatpush1.msra.mxu0 0.0
    %3704 = vmatprep.subr.mxu0 0.0
    %3705 = vmatpush1.msra.mxu0 0.0
    %3706 = vmatprep.subr.mxu0 0.0
    %3707 = vmatpush1.msra.mxu0 0.0
    %3708 = vmatprep.subr.mxu0 0.0
    %3709 = vmatpush1.msra.mxu0 0.0
    %3710 = vmatprep.subr.mxu0 0.0
    %3711 = vmatpush1.msra.mxu0 0.0
    %3712 = vmatprep.subr.mxu0 0.0
    %3713 = vmatpush1.msra.mxu0 0.0
    %3714 = vmatprep.mubr.f32.mxu0 0.0
    %3715 = vmatmul.mubr.f32.gmra.mrb[0].mxu0 %v3645
    %v3716 = vpop.f32.mrb[0].mxu0
    %v3717 = vadd.f32 %v3642, %v3716
    %v3718 = vpop.f32.mrb[0].mxu0
    %3719 = vmatprep.mubr.f32.mxu0 0.0
    %3720 = vmatmul.mubr.f32.gmra.mrb[0].mxu0 %v3648
    %v3721 = vpop.f32.mrb[0].mxu0
    %v3722 = vadd.f32 %v3642, %v3721
    %v3723 = vpop.f32.mrb[0].mxu0
    %3724 = vdwg.mxu0
    %v3725 = vmax.f32 %v3717, 0.0
    %v3726 = vmax.f32 %v3722, 0.0
    %v3727 = vld [vmem:[%s51] sm:$0xff]
    %v3728 = vld [vmem:[%s51 + $0x8] sm:$0xff]
    %v3729 = vld [vmem:[%s51 + $0x10] sm:$0xff]
    %v3730 = vld [vmem:[%s51 + $0x18] sm:$0xff]
    %v3731 = vld [vmem:[%s51 + $0x20] sm:$0xff]
    %v3732 = vld [vmem:[%s51 + $0x28] sm:$0xff]
    %v3733 = vld [vmem:[%s51 + $0x30] sm:$0xff]
    %v3734 = vld [vmem:[%s51 + $0x38] sm:$0xff]
    %v3735 = vld [vmem:[%s51 + $0x40] sm:$0xff]
    %v3736 = vld [vmem:[%s51 + $0x48] sm:$0xff]
    %v3737 = vld [vmem:[%s51 + $0x50] sm:$0xff]
    %v3738 = vld [vmem:[%s51 + $0x58] sm:$0xff]
    %v3739 = vld [vmem:[%s51 + $0x60] sm:$0xff]
    %v3740 = vld [vmem:[%s51 + $0x68] sm:$0xff]
    %v3741 = vld [vmem:[%s51 + $0x70] sm:$0xff]
    %v3742 = vld [vmem:[%s51 + $0x78] sm:$0xff]
    %v3743 = vld [vmem:[%s53] sm:$0x1]
    %v3745 = vlaneseq
    %v3746 = vshrl.u32 %v3745, 7
    %v3747 = vsub.s32 0, %v3746
    %v3748 = vrot.slane %v3743, %v3747
    %3750 = vmatprep.subr.mxu0 0.0
    %3751 = vmatpush1.msra.mxu0 %v3727
    %3752 = vmatprep.subr.mxu0 0.0
    %3753 = vmatpush1.msra.mxu0 %v3728
    %3754 = vmatprep.subr.mxu0 0.0
    %3755 = vmatpush1.msra.mxu0 %v3729
    %3756 = vmatprep.subr.mxu0 0.0
    %3757 = vmatpush1.msra.mxu0 %v3730
    %3758 = vmatprep.subr.mxu0 0.0
    %3759 = vmatpush1.msra.mxu0 %v3731
    %3760 = vmatprep.subr.mxu0 0.0
    %3761 = vmatpush1.msra.mxu0 %v3732
    %3762 = vmatprep.subr.mxu0 0.0
    %3763 = vmatpush1.msra.mxu0 %v3733
    %3764 = vmatprep.subr.mxu0 0.0
    %3765 = vmatpush1.msra.mxu0 %v3734
    %3766 = vmatprep.subr.mxu0 0.0
    %3767 = vmatpush1.msra.mxu0 %v3735
    %3768 = vmatprep.subr.mxu0 0.0
    %3769 = vmatpush1.msra.mxu0 %v3736
    %3770 = vmatprep.subr.mxu0 0.0
    %3771 = vmatpush1.msra.mxu0 %v3737
    %3772 = vmatprep.subr.mxu0 0.0
    %3773 = vmatpush1.msra.mxu0 %v3738
    %3774 = vmatprep.subr.mxu0 0.0
    %3775 = vmatpush1.msra.mxu0 %v3739
    %3776 = vmatprep.subr.mxu0 0.0
    %3777 = vmatpush1.msra.mxu0 %v3740
    %3778 = vmatprep.subr.mxu0 0.0
    %3779 = vmatpush1.msra.mxu0 %v3741
    %3780 = vmatprep.subr.mxu0 0.0
    %3781 = vmatpush1.msra.mxu0 %v3742
    %3782 = vmatprep.subr.mxu0 0.0
    %3783 = vmatpush1.msra.mxu0 0.0
    %3784 = vmatprep.subr.mxu0 0.0
    %3785 = vmatpush1.msra.mxu0 0.0
    %3786 = vmatprep.subr.mxu0 0.0
    %3787 = vmatpush1.msra.mxu0 0.0
    %3788 = vmatprep.subr.mxu0 0.0
    %3789 = vmatpush1.msra.mxu0 0.0
    %3790 = vmatprep.subr.mxu0 0.0
    %3791 = vmatpush1.msra.mxu0 0.0
    %3792 = vmatprep.subr.mxu0 0.0
    %3793 = vmatpush1.msra.mxu0 0.0
    %3794 = vmatprep.subr.mxu0 0.0
    %3795 = vmatpush1.msra.mxu0 0.0
    %3796 = vmatprep.subr.mxu0 0.0
    %3797 = vmatpush1.msra.mxu0 0.0
    %3798 = vmatprep.subr.mxu0 0.0
    %3799 = vmatpush1.msra.mxu0 0.0
    %3800 = vmatprep.subr.mxu0 0.0
    %3801 = vmatpush1.msra.mxu0 0.0
    %3802 = vmatprep.subr.mxu0 0.0
    %3803 = vmatpush1.msra.mxu0 0.0
    %3804 = vmatprep.subr.mxu0 0.0
    %3805 = vmatpush1.msra.mxu0 0.0
    %3806 = vmatprep.subr.mxu0 0.0
    %3807 = vmatpush1.msra.mxu0 0.0
    %3808 = vmatprep.subr.mxu0 0.0
    %3809 = vmatpush1.msra.mxu0 0.0
    %3810 = vmatprep.subr.mxu0 0.0
    %3811 = vmatpush1.msra.mxu0 0.0
    %3812 = vmatprep.subr.mxu0 0.0
    %3813 = vmatpush1.msra.mxu0 0.0
    %3814 = vmatprep.mubr.f32.mxu0 0.0
    %3815 = vmatmul.mubr.f32.gmra.mrb[0].mxu0 %v3725
    %v3816 = vpop.f32.mrb[0].mxu0
    %v3817 = vadd.f32 %v3748, %v3816
    %v3818 = vpop.f32.mrb[0].mxu0
    %3819 = vmatprep.mubr.f32.mxu0 0.0
    %3820 = vmatmul.mubr.f32.gmra.mrb[0].mxu0 %v3726
    %v3821 = vpop.f32.mrb[0].mxu0
    %v3822 = vadd.f32 %v3748, %v3821
    %v3823 = vpop.f32.mrb[0].mxu0
    %3824 = vdwg.mxu0
    %v3825 = vadd.f32 %v3817, %v3631
    %v3826 = vadd.f32 %v3822, %v3632
    %v3827 = vld [vmem:[%s55] sm:$0x1]
    %v3828 = vld [vmem:[%s57] sm:$0x1]
    %v3829 = vsel %vm151, %v3825, 0.0
    %3830 = vadd.xlane.f32.xlu0 %v3829
    %v3831 = vpop.xlane.xlu0 %3830
    %v3832 = vsel %vm151, %v3826, 0.0
    %3833 = vadd.xlane.f32.xlu0 %v3832
    %v3834 = vpop.xlane.xlu0 %3833
    %v3835 = vmul.f32 %v3831, %v158
    %v3836 = vmul.f32 %v3834, %v158
    %v3837 = vsub.f32 %v3825, %v3835
    %v3838 = vsub.f32 %v3826, %v3836
    %v3839 = vmul.f32 %v3837, %v3837
    %v3840 = vmul.f32 %v3838, %v3838
    %v3841 = vsel %vm151, %v3839, 0.0
    %3842 = vadd.xlane.f32.xlu0 %v3841
    %v3843 = vpop.xlane.xlu0 %3842
    %v3844 = vsel %vm151, %v3840, 0.0
    %3845 = vadd.xlane.f32.xlu0 %v3844
    %v3846 = vpop.xlane.xlu0 %3845
    %v3847 = vmul.f32 %v3843, %v158
    %v3848 = vmul.f32 %v3846, %v158
    %v3849 = vadd.f32 %v3847, 1e-05
    %v3850 = vadd.f32 %v3848, 1e-05
    %v3851 = vrsqrt.pop %v3849
    %v3852 = vrsqrt.pop %v3850
    %v3853 = vmul.f32 %v3837, %v3851
    %v3854 = vmul.f32 %v3838, %v3852
    %v3856 = vlaneseq
    %v3857 = vshrl.u32 %v3856, 7
    %v3858 = vsub.s32 0, %v3857
    %v3859 = vrot.slane %v3827, %v3858
    %v3861 = vmul.f32 %v3853, %v3859
    %v3862 = vmul.f32 %v3854, %v3859
    %v3864 = vlaneseq
    %v3865 = vshrl.u32 %v3864, 7
    %v3866 = vsub.s32 0, %v3865
    %v3867 = vrot.slane %v3828, %v3866
    %v3869 = vadd.f32 %v3861, %v3867
    %v3870 = vadd.f32 %v3862, %v3867
    %v3871 = vld [vmem:[%s5] sm:$0xff]
    %v3872 = vlaneseq
    %v3873 = vand.u32 %v3872, 127
    %3874 = vset.pattern.permute.xlu0 0
    %3875 = vperm.xlu0 %3874, %v3871
    %v3876 = vpop.permute.xlu0 %3875
    %vm3877 = vcmp.eq.s32.totalorder %v3873, %v3876
    %v3878 = vsel %vm3877, 1.0, 0.0
    %v3880 = vsel %vm973, %v3878, 0
    %3882 = vmatprep.subr.mxu0 0.0
    %3883 = vmatpush1.msra.mxu0 %v3869
    %3884 = vmatprep.subr.mxu0 0.0
    %3885 = vmatpush1.msra.mxu0 %v3870
    %3886 = vmatprep.subr.mxu0 0.0
    %3887 = vmatpush1.msra.mxu0 0.0
    %3888 = vmatprep.subr.mxu0 0.0
    %3889 = vmatpush1.msra.mxu0 0.0
    %3890 = vmatprep.subr.mxu0 0.0
    %3891 = vmatpush1.msra.mxu0 0.0
    %3892 = vmatprep.subr.mxu0 0.0
    %3893 = vmatpush1.msra.mxu0 0.0
    %3894 = vmatprep.subr.mxu0 0.0
    %3895 = vmatpush1.msra.mxu0 0.0
    %3896 = vmatprep.subr.mxu0 0.0
    %3897 = vmatpush1.msra.mxu0 0.0
    %3898 = vmatprep.subr.mxu0 0.0
    %3899 = vmatpush1.msra.mxu0 0.0
    %3900 = vmatprep.subr.mxu0 0.0
    %3901 = vmatpush1.msra.mxu0 0.0
    %3902 = vmatprep.subr.mxu0 0.0
    %3903 = vmatpush1.msra.mxu0 0.0
    %3904 = vmatprep.subr.mxu0 0.0
    %3905 = vmatpush1.msra.mxu0 0.0
    %3906 = vmatprep.subr.mxu0 0.0
    %3907 = vmatpush1.msra.mxu0 0.0
    %3908 = vmatprep.subr.mxu0 0.0
    %3909 = vmatpush1.msra.mxu0 0.0
    %3910 = vmatprep.subr.mxu0 0.0
    %3911 = vmatpush1.msra.mxu0 0.0
    %3912 = vmatprep.subr.mxu0 0.0
    %3913 = vmatpush1.msra.mxu0 0.0
    %3914 = vmatprep.subr.mxu0 0.0
    %3915 = vmatpush1.msra.mxu0 0.0
    %3916 = vmatprep.subr.mxu0 0.0
    %3917 = vmatpush1.msra.mxu0 0.0
    %3918 = vmatprep.subr.mxu0 0.0
    %3919 = vmatpush1.msra.mxu0 0.0
    %3920 = vmatprep.subr.mxu0 0.0
    %3921 = vmatpush1.msra.mxu0 0.0
    %3922 = vmatprep.subr.mxu0 0.0
    %3923 = vmatpush1.msra.mxu0 0.0
    %3924 = vmatprep.subr.mxu0 0.0
    %3925 = vmatpush1.msra.mxu0 0.0
    %3926 = vmatprep.subr.mxu0 0.0
    %3927 = vmatpush1.msra.mxu0 0.0
    %3928 = vmatprep.subr.mxu0 0.0
    %3929 = vmatpush1.msra.mxu0 0.0
    %3930 = vmatprep.subr.mxu0 0.0
    %3931 = vmatpush1.msra.mxu0 0.0
    %3932 = vmatprep.subr.mxu0 0.0
    %3933 = vmatpush1.msra.mxu0 0.0
    %3934 = vmatprep.subr.mxu0 0.0
    %3935 = vmatpush1.msra.mxu0 0.0
    %3936 = vmatprep.subr.mxu0 0.0
    %3937 = vmatpush1.msra.mxu0 0.0
    %3938 = vmatprep.subr.mxu0 0.0
    %3939 = vmatpush1.msra.mxu0 0.0
    %3940 = vmatprep.subr.mxu0 0.0
    %3941 = vmatpush1.msra.mxu0 0.0
    %3942 = vmatprep.subr.mxu0 0.0
    %3943 = vmatpush1.msra.mxu0 0.0
    %3944 = vmatprep.subr.mxu0 0.0
    %3945 = vmatpush1.msra.mxu0 0.0
    %3946 = vmatprep.mubr.f32.mxu0 0.0
    %3947 = vmatmul.mubr.f32.gmra.mrb[0].mxu0 %v3880
    %v3948 = vpop.f32.mrb[0].mxu0
    %v3949 = vadd.f32 0.0, %v3948
    %v3950 = vpop.f32.mrb[0].mxu0
    %3951 = vdwg.mxu0
    %v3952 = vld [vmem:[%s59] sm:$0xff]
    %v3953 = vld [vmem:[%s59 + $0x8] sm:$0xff]
    %v3954 = vld [vmem:[%s59 + $0x10] sm:$0xff]
    %v3955 = vld [vmem:[%s59 + $0x18] sm:$0xff]
    %v3956 = vld [vmem:[%s61] sm:$0x1]
    %v3958 = vlaneseq
    %v3959 = vshrl.u32 %v3958, 7
    %v3960 = vsub.s32 0, %v3959
    %v3961 = vrot.slane %v3956, %v3960
    %v3964 = vsel %vm151, %v3949, 0
    %3966 = vmatprep.subr.mxu0 0.0
    %3967 = vmatpush1.msra.mxu0 %v3952
    %3968 = vmatprep.subr.mxu0 0.0
    %3969 = vmatpush1.msra.mxu0 %v3953
    %3970 = vmatprep.subr.mxu0 0.0
    %3971 = vmatpush1.msra.mxu0 %v3954
    %3972 = vmatprep.subr.mxu0 0.0
    %3973 = vmatpush1.msra.mxu0 %v3955
    %3974 = vmatprep.subr.mxu0 0.0
    %3975 = vmatpush1.msra.mxu0 0.0
    %3976 = vmatprep.subr.mxu0 0.0
    %3977 = vmatpush1.msra.mxu0 0.0
    %3978 = vmatprep.subr.mxu0 0.0
    %3979 = vmatpush1.msra.mxu0 0.0
    %3980 = vmatprep.subr.mxu0 0.0
    %3981 = vmatpush1.msra.mxu0 0.0
    %3982 = vmatprep.subr.mxu0 0.0
    %3983 = vmatpush1.msra.mxu0 0.0
    %3984 = vmatprep.subr.mxu0 0.0
    %3985 = vmatpush1.msra.mxu0 0.0
    %3986 = vmatprep.subr.mxu0 0.0
    %3987 = vmatpush1.msra.mxu0 0.0
    %3988 = vmatprep.subr.mxu0 0.0
    %3989 = vmatpush1.msra.mxu0 0.0
    %3990 = vmatprep.subr.mxu0 0.0
    %3991 = vmatpush1.msra.mxu0 0.0
    %3992 = vmatprep.subr.mxu0 0.0
    %3993 = vmatpush1.msra.mxu0 0.0
    %3994 = vmatprep.subr.mxu0 0.0
    %3995 = vmatpush1.msra.mxu0 0.0
    %3996 = vmatprep.subr.mxu0 0.0
    %3997 = vmatpush1.msra.mxu0 0.0
    %3998 = vmatprep.subr.mxu0 0.0
    %3999 = vmatpush1.msra.mxu0 0.0
    %4000 = vmatprep.subr.mxu0 0.0
    %4001 = vmatpush1.msra.mxu0 0.0
    %4002 = vmatprep.subr.mxu0 0.0
    %4003 = vmatpush1.msra.mxu0 0.0
    %4004 = vmatprep.subr.mxu0 0.0
    %4005 = vmatpush1.msra.mxu0 0.0
    %4006 = vmatprep.subr.mxu0 0.0
    %4007 = vmatpush1.msra.mxu0 0.0
    %4008 = vmatprep.subr.mxu0 0.0
    %4009 = vmatpush1.msra.mxu0 0.0
    %4010 = vmatprep.subr.mxu0 0.0
    %4011 = vmatpush1.msra.mxu0 0.0
    %4012 = vmatprep.subr.mxu0 0.0
    %4013 = vmatpush1.msra.mxu0 0.0
    %4014 = vmatprep.subr.mxu0 0.0
    %4015 = vmatpush1.msra.mxu0 0.0
    %4016 = vmatprep.subr.mxu0 0.0
    %4017 = vmatpush1.msra.mxu0 0.0
    %4018 = vmatprep.subr.mxu0 0.0
    %4019 = vmatpush1.msra.mxu0 0.0
    %4020 = vmatprep.subr.mxu0 0.0
    %4021 = vmatpush1.msra.mxu0 0.0
    %4022 = vmatprep.subr.mxu0 0.0
    %4023 = vmatpush1.msra.mxu0 0.0
    %4024 = vmatprep.subr.mxu0 0.0
    %4025 = vmatpush1.msra.mxu0 0.0
    %4026 = vmatprep.subr.mxu0 0.0
    %4027 = vmatpush1.msra.mxu0 0.0
    %4028 = vmatprep.subr.mxu0 0.0
    %4029 = vmatpush1.msra.mxu0 0.0
    %4030 = vmatprep.mubr.f32.mxu0 0.0
    %4031 = vmatmul.mubr.f32.gmra.mrb[0].mxu0 %v3964
    %v4032 = vpop.f32.mrb[0].mxu0
    %v4033 = vadd.f32 %v3961, %v4032
    %v4034 = vpop.f32.mrb[0].mxu0
    %4035 = vdwg.mxu0
    %v4036 = vmul.f32 %v4033, 0.5
    %v4037 = vmul.f32 %v4033, 0.70710677
    %v4038 = vand.u32 2147483647, %v4037
    %v4039 = vmul.f32 %v4038, 0.3275911
    %v4040 = vadd.f32 %v4039, 1.0
    %v4041 = vrcp.pop %v4040
    %v4042 = vmul.f32 1.0, %v4041
    %v4043 = vmul.f32 %v4042, 1.0614054
    %v4044 = vadd.f32 %v4043, -1.4531521
    %v4045 = vmul.f32 %v4042, %v4044
    %v4046 = vadd.f32 %v4045, 1.4214138
    %v4047 = vmul.f32 %v4042, %v4046
    %v4048 = vadd.f32 %v4047, -0.28449672
    %v4049 = vmul.f32 %v4042, %v4048
    %v4050 = vadd.f32 %v4049, 0.2548296
    %v4051 = vmul.f32 %v4042, %v4050
    %v4052 = vsub.f32 0.0, %v4038
    %v4053 = vmul.f32 %v4052, %v4038
    %v4054 = vmul.f32 %v4053, 1.442695
    %v4055 = vpow.pop %v4054
    %v4056 = vmul.f32 %v4051, %v4055
    %v4057 = vsub.f32 1.0, %v4056
    %vm4058 = vcmp.lt.f32.partialorder %v4037, 0.0
    %v4059 = vsub.f32 0.0, %v4057
    %v4060 = vsel %vm4058, %v4059, %v4057
    %v4061 = vadd.f32 %v4060, 1.0
    %v4062 = vmul.f32 %v4036, %v4061
    %v4063 = vld [vmem:[%s63] sm:$0x1]
    %v4064 = vld [vmem:[%s65] sm:$0x1]
    %v4065 = vsel %vm151, %v4062, 0.0
    %4066 = vadd.xlane.f32.xlu0 %v4065
    %v4067 = vpop.xlane.xlu0 %4066
    %v4068 = vmul.f32 %v4067, %v158
    %v4069 = vsub.f32 %v4062, %v4068
    %v4070 = vmul.f32 %v4069, %v4069
    %v4071 = vsel %vm151, %v4070, 0.0
    %4072 = vadd.xlane.f32.xlu0 %v4071
    %v4073 = vpop.xlane.xlu0 %4072
    %v4074 = vmul.f32 %v4073, %v158
    %v4075 = vadd.f32 %v4074, 1e-05
    %v4076 = vrsqrt.pop %v4075
    %v4077 = vmul.f32 %v4069, %v4076
    %v4079 = vlaneseq
    %v4080 = vshrl.u32 %v4079, 7
    %v4081 = vsub.s32 0, %v4080
    %v4082 = vrot.slane %v4063, %v4081
    %v4084 = vmul.f32 %v4077, %v4082
    %v4086 = vlaneseq
    %v4087 = vshrl.u32 %v4086, 7
    %v4088 = vsub.s32 0, %v4087
    %v4089 = vrot.slane %v4064, %v4088
    %v4091 = vadd.f32 %v4084, %v4089
    %v4092 = vld [vmem:[%s67] sm:$0xff]
    %v4093 = vld [vmem:[%s67 + $0x8] sm:$0xff]
    %v4094 = vld [vmem:[%s67 + $0x10] sm:$0xff]
    %v4095 = vld [vmem:[%s67 + $0x18] sm:$0xff]
    %v4096 = vld [vmem:[%s69] sm:$0x1]
    %v4098 = vlaneseq
    %v4099 = vshrl.u32 %v4098, 7
    %v4100 = vsub.s32 0, %v4099
    %v4101 = vrot.slane %v4096, %v4100
    %v4104 = vsel %vm151, %v4091, 0
    %4106 = vmatprep.subr.mxu0 0.0
    %4107 = vmatpush1.msra.mxu0 %v4092
    %4108 = vmatprep.subr.mxu0 0.0
    %4109 = vmatpush1.msra.mxu0 %v4093
    %4110 = vmatprep.subr.mxu0 0.0
    %4111 = vmatpush1.msra.mxu0 %v4094
    %4112 = vmatprep.subr.mxu0 0.0
    %4113 = vmatpush1.msra.mxu0 %v4095
    %4114 = vmatprep.subr.mxu0 0.0
    %4115 = vmatpush1.msra.mxu0 0.0
    %4116 = vmatprep.subr.mxu0 0.0
    %4117 = vmatpush1.msra.mxu0 0.0
    %4118 = vmatprep.subr.mxu0 0.0
    %4119 = vmatpush1.msra.mxu0 0.0
    %4120 = vmatprep.subr.mxu0 0.0
    %4121 = vmatpush1.msra.mxu0 0.0
    %4122 = vmatprep.subr.mxu0 0.0
    %4123 = vmatpush1.msra.mxu0 0.0
    %4124 = vmatprep.subr.mxu0 0.0
    %4125 = vmatpush1.msra.mxu0 0.0
    %4126 = vmatprep.subr.mxu0 0.0
    %4127 = vmatpush1.msra.mxu0 0.0
    %4128 = vmatprep.subr.mxu0 0.0
    %4129 = vmatpush1.msra.mxu0 0.0
    %4130 = vmatprep.subr.mxu0 0.0
    %4131 = vmatpush1.msra.mxu0 0.0
    %4132 = vmatprep.subr.mxu0 0.0
    %4133 = vmatpush1.msra.mxu0 0.0
    %4134 = vmatprep.subr.mxu0 0.0
    %4135 = vmatpush1.msra.mxu0 0.0
    %4136 = vmatprep.subr.mxu0 0.0
    %4137 = vmatpush1.msra.mxu0 0.0
    %4138 = vmatprep.subr.mxu0 0.0
    %4139 = vmatpush1.msra.mxu0 0.0
    %4140 = vmatprep.subr.mxu0 0.0
    %4141 = vmatpush1.msra.mxu0 0.0
    %4142 = vmatprep.subr.mxu0 0.0
    %4143 = vmatpush1.msra.mxu0 0.0
    %4144 = vmatprep.subr.mxu0 0.0
    %4145 = vmatpush1.msra.mxu0 0.0
    %4146 = vmatprep.subr.mxu0 0.0
    %4147 = vmatpush1.msra.mxu0 0.0
    %4148 = vmatprep.subr.mxu0 0.0
    %4149 = vmatpush1.msra.mxu0 0.0
    %4150 = vmatprep.subr.mxu0 0.0
    %4151 = vmatpush1.msra.mxu0 0.0
    %4152 = vmatprep.subr.mxu0 0.0
    %4153 = vmatpush1.msra.mxu0 0.0
    %4154 = vmatprep.subr.mxu0 0.0
    %4155 = vmatpush1.msra.mxu0 0.0
    %4156 = vmatprep.subr.mxu0 0.0
    %4157 = vmatpush1.msra.mxu0 0.0
    %4158 = vmatprep.subr.mxu0 0.0
    %4159 = vmatpush1.msra.mxu0 0.0
    %4160 = vmatprep.subr.mxu0 0.0
    %4161 = vmatpush1.msra.mxu0 0.0
    %4162 = vmatprep.subr.mxu0 0.0
    %4163 = vmatpush1.msra.mxu0 0.0
    %4164 = vmatprep.subr.mxu0 0.0
    %4165 = vmatpush1.msra.mxu0 0.0
    %4166 = vmatprep.subr.mxu0 0.0
    %4167 = vmatpush1.msra.mxu0 0.0
    %4168 = vmatprep.subr.mxu0 0.0
    %4169 = vmatpush1.msra.mxu0 0.0
    %4170 = vmatprep.mubr.f32.mxu0 0.0
    %4171 = vmatmul.mubr.f32.gmra.mrb[0].mxu0 %v4104
    %v4172 = vpop.f32.mrb[0].mxu0
    %v4173 = vadd.f32 %v4101, %v4172
    %v4174 = vpop.f32.mrb[0].mxu0
    %4175 = vdwg.mxu0
    %4176 = vst [vmem:[#allocation2] sm:$0xff] %v4173
    // Predicated region
    $region142: #{bert_forward.1} parent=1 // pred_check
      _
    $region143: #{bert_forward.1} parent=1 // pred_check_branch
      %4178 = sbr.rel (0) target = $region145
    $region144: #{bert_forward.1} parent=1 // pred_region
      %s4180 = ssub.s32 128, 128
      %4181 = vsyncadd [#allocation3], %s4180
      %s4183 = sshll.u32 [#allocation2], 4
      %s4184 = int_to_ptr.vmem [resolvable:$true] %s4183
      %4186 = dma.vmem_to_hbm [thread:$0]  %s4184, 128, %s71, [#allocation3]
    $region145: #{bert_forward.1} parent=1 // pred_fallthru
      _
    // Predicated region
    $region146: #{bert_forward.1} parent=1 // pred_check
      _
    $region147: #{bert_forward.1} parent=1 // pred_check_branch
      %4188 = sbr.rel (0) target = $region149
    $region148: #{bert_forward.1} parent=1 // pred_region
      %4189 = dma.done [#allocation3], 128
    $region149: #{bert_forward.1} parent=1 // pred_fallthru
      _
    %4190 = vsyncpa [#allocation3], 1

</llo_original>
